<compile_context>
chip_gen: v5e
topology: v5e:2x2
jax: 0.10.0
libtpu: 0.0.40
codegen_flags: <defaults>
</compile_context>

<pallas_src>
import functools
import math

import jax
import jax.numpy as jnp
from jax import lax
from jax.experimental import pallas as pl
from jax.experimental.pallas import tpu as pltpu

WEIGHT_DTYPE = jnp.bfloat16   # MXU inputs for the big matmuls; accum stays f32
LN_EPS = 1e-5


def _round_up(x, m):
    return ((x + m - 1) // m) * m


def _pick_chunk(S, max_chunk):
    """Largest divisor of S that is <= max_chunk (time steps per grid step)."""
    for c in range(min(S, max_chunk), 0, -1):
        if S % c == 0:
            return c
    return 1


# ----------------------------------------------------------------------------
# Fused kernel: per grid step (= chunk of T time steps) run all L GRU layers
# over the chunk; on the last chunk apply LayerNorm + alpha-folded head.
# ----------------------------------------------------------------------------
def _rem_fused_kernel(*refs, chunk, batch_p, hidden_p, hidden, num_layers):
    T, Bp, Hp = chunk, batch_p, hidden_p
    L = num_layers

    x_ref = refs[0]
    layer_refs = refs[1:1 + 4 * L]
    gamma_ref, beta_ref, weff_ref, beff_ref = refs[1 + 4 * L:5 + 4 * L]
    out_ref = refs[5 + 4 * L]
    h_scr = refs[6 + 4 * L]                      # (L, Bp, Hp) f32 hidden carry

    c = pl.program_id(0)

    @pl.when(c == 0)
    def _():
        # torch: h0 = zeros -- no input DMA, just zero the carry once.
        h_scr[...] = jnp.zeros_like(h_scr)

    cur = x_ref[...]                             # (T*Bp, Ep) bf16
    h = None
    for l in range(L):
        wih_ref, whh_ref, bias_ref, bhn_ref = layer_refs[4 * l:4 * l + 4]

        # Hoisted input-to-hidden matmul for the whole chunk: one MXU op of
        # shape (T*Bp, D) @ (D, 3Hp).  b_ih (all gates) and b_hh (r,z gates)
        # are pre-folded into bias_ref, added once per chunk.
        gi = jnp.dot(cur, wih_ref[...], preferred_element_type=jnp.float32)
        gi = gi + bias_ref[...]                  # (T*Bp, 3Hp) f32

        whh = whh_ref[...]                       # (Hp, 3Hp) f32, loaded once
        bhn = jnp.broadcast_to(bhn_ref[...], (Bp, Hp))   # hoisted broadcast

        h = h_scr[l]                             # (Bp, Hp) f32 carry
        outs = []
        # Short static (unrolled) loop; T is capped by the wrapper so code
        # size / vreg pressure stay modest.
        for t in range(T):
            gi_t = gi[t * Bp:(t + 1) * Bp]       # static, sublane-aligned
            gh = jnp.dot(h, whh, preferred_element_type=jnp.float32)
            # PyTorch GRU gate order [r, z, n]; gate slices on 128 boundaries.
            r = jax.nn.sigmoid(gi_t[:, :Hp] + gh[:, :Hp])
            z = jax.nn.sigmoid(gi_t[:, Hp:2 * Hp] + gh[:, Hp:2 * Hp])
            n = jnp.tanh(gi_t[:, 2 * Hp:] + r * (gh[:, 2 * Hp:] + bhn))
            h = (1.0 - z) * n + z * h
            if l < L - 1:
                outs.append(h)
        h_scr[l] = h
        if l < L - 1:
            cur = jnp.concatenate(outs, axis=0).astype(WEIGHT_DTYPE)

    @pl.when(c == pl.num_programs(0) - 1)
    def _():
        hf = h                                   # final hidden state (Bp, Hp)
        # LayerNorm over the *real* H lanes only (padded lanes are zero, so
        # sum / sum-of-squares over the padded vector are exact).
        inv_h = 1.0 / hidden
        mean = jnp.sum(hf, axis=-1, keepdims=True) * inv_h
        ex2 = jnp.sum(hf * hf, axis=-1, keepdims=True) * inv_h
        var = jnp.maximum(ex2 - mean * mean, 0.0)
        hn = (hf - mean) * lax.rsqrt(var + LN_EPS)
        hn = hn * gamma_ref[...] + beta_ref[...]     # padded lanes -> 0
        logits = jnp.dot(hn.astype(weff_ref.dtype), weff_ref[...],
                         preferred_element_type=jnp.float32) + beff_ref[...]
        out_ref[...] = logits.astype(out_ref.dtype)


def rem_fused_call(x2d, layers, gamma, beta, w_eff, b_eff, *,
                   batch_p, hidden, chunk):
    """x2d: (S*Bp, Ep) bf16 time-major-flattened input. Returns (Bp, Vp) f32."""
    SBp, Ep = x2d.shape
    Bp = batch_p
    Hp, Vp = w_eff.shape
    L = len(layers)
    S = SBp // Bp
    T = chunk
    n_chunks = S // T

    kernel = functools.partial(_rem_fused_kernel, chunk=T, batch_p=Bp,
                               hidden_p=Hp, hidden=hidden, num_layers=L)

    in_specs = [pl.BlockSpec((T * Bp, Ep), lambda c: (c, 0))]     # x chunk
    args = [x2d]
    for lyr in layers:
        Dp = lyr["wih"].shape[0]
        in_specs += [
            pl.BlockSpec((Dp, 3 * Hp), lambda c: (0, 0)),          # Wih packed
            pl.BlockSpec((Hp, 3 * Hp), lambda c: (0, 0)),          # Whh packed
            pl.BlockSpec((1, 3 * Hp), lambda c: (0, 0)),           # bias packed
            pl.BlockSpec((1, Hp), lambda c: (0, 0)),               # b_hn
        ]
        args += [lyr["wih"], lyr["whh"], lyr["bias"], lyr["bhn"]]
    in_specs += [
        pl.BlockSpec((1, Hp), lambda c: (0, 0)),                   # gamma
        pl.BlockSpec((1, Hp), lambda c: (0, 0)),                   # beta
        pl.BlockSpec((Hp, Vp), lambda c: (0, 0)),                  # w_eff
        pl.BlockSpec((1, Vp), lambda c: (0, 0)),                   # b_eff
    ]
    args += [gamma, beta, w_eff, b_eff]

    return pl.pallas_call(
        kernel,
        out_shape=jax.ShapeDtypeStruct((Bp, Vp), jnp.float32),
        grid_spec=pltpu.PrefetchScalarGridSpec(
            num_scalar_prefetch=0,
            grid=(n_chunks,),
            in_specs=in_specs,
            out_specs=pl.BlockSpec((Bp, Vp), lambda c: (0, 0)),
            scratch_shapes=[pltpu.VMEM((L, Bp, Hp), jnp.float32)],
        ),
        compiler_params=pltpu.CompilerParams(
            # Recurrence: the chunk axis must stay serial.
            dimension_semantics=("arbitrary",),
            vmem_limit_bytes=32 * 1024 * 1024),
    )(*args)


# ----------------------------------------------------------------------------
# Parameters: raw (torch-layout) init and kernel-layout preparation.
# ----------------------------------------------------------------------------
def init_params(key, *, E, H, L, V, vocab, K):
    bound = 1.0 / math.sqrt(H)
    raw = {}
    key, k = jax.random.split(key)
    raw["emb"] = jax.random.normal(k, (vocab, E), jnp.float32) * 0.1
    gru = []
    in_dim = E
    for _ in range(L):
        key, k1, k2, k3, k4 = jax.random.split(key, 5)
        gru.append(dict(
            w_ih=jax.random.uniform(k1, (3 * H, in_dim), jnp.float32, -bound, bound),
            w_hh=jax.random.uniform(k2, (3 * H, H), jnp.float32, -bound, bound),
            b_ih=jax.random.uniform(k3, (3 * H,), jnp.float32, -bound, bound),
            b_hh=jax.random.uniform(k4, (3 * H,), jnp.float32, -bound, bound),
        ))
        in_dim = H
    raw["gru"] = gru
    raw["gamma"] = jnp.ones((H,), jnp.float32)      # LayerNorm affine init
    raw["beta"] = jnp.zeros((H,), jnp.float32)
    key, kw, kb = jax.random.split(key, 3)
    raw["heads_w"] = jax.random.uniform(kw, (K, V, H), jnp.float32, -bound, bound)
    raw["heads_b"] = jax.random.uniform(kb, (K, V), jnp.float32, -bound, bound)
    raw["alpha"] = jax.nn.softmax(jnp.ones((K, 1), jnp.float32), axis=0)  # = 1/K
    return raw


def prepare_params(raw):
    """Pack gates [r|z|n] lane-padded to 128, fold r/z recurrent biases and
    alpha into effective weights, pad E/H/V for lane/sublane density."""
    E = raw["emb"].shape[1]
    H = raw["gru"][0]["w_hh"].shape[1]
    Hp = _round_up(H, 128)
    Ep = _round_up(E, 128)

    prep = {"emb": jnp.pad(raw["emb"], ((0, 0), (0, Ep - E)))}     # (vocab, Ep)

    layers = []
    for li, layer in enumerate(raw["gru"]):
        D = E if li == 0 else H
        Dp = Ep if li == 0 else Hp
        w_ih, w_hh = layer["w_ih"], layer["w_hh"]
        b_ih, b_hh = layer["b_ih"], layer["b_hh"]
        wih_p = jnp.zeros((Dp, 3 * Hp), jnp.float32)
        whh_p = jnp.zeros((Hp, 3 * Hp), jnp.float32)
        for g in range(3):
            wih_p = wih_p.at[:D, g * Hp:g * Hp + H].set(w_ih[g * H:(g + 1) * H, :].T)
            whh_p = whh_p.at[:H, g * Hp:g * Hp + H].set(w_hh[g * H:(g + 1) * H, :].T)
        bias_p = jnp.zeros((1, 3 * Hp), jnp.float32)
        bias_p = bias_p.at[0, 0 * Hp:0 * Hp + H].set(b_ih[0:H] + b_hh[0:H])        # r
        bias_p = bias_p.at[0, 1 * Hp:1 * Hp + H].set(b_ih[H:2 * H] + b_hh[H:2 * H])  # z
        bias_p = bias_p.at[0, 2 * Hp:2 * Hp + H].set(b_ih[2 * H:3 * H])             # n
        bhn_p = jnp.zeros((1, Hp), jnp.float32).at[0, :H].set(b_hh[2 * H:3 * H])
        layers.append(dict(
            wih=wih_p.astype(WEIGHT_DTYPE),   # bf16: hoisted gi matmul operand
            whh=whh_p,                        # f32: recurrent path stays exact
            bias=bias_p,
            bhn=bhn_p,
        ))
    prep["layers"] = layers

    prep["gamma"] = jnp.zeros((1, Hp), jnp.float32).at[0, :H].set(raw["gamma"])
    prep["beta"] = jnp.zeros((1, Hp), jnp.float32).at[0, :H].set(raw["beta"])

    # Heads combine linearly -> fold alpha once (exact).
    alpha = raw["alpha"][:, 0]                                   # (K,)
    w_eff = jnp.einsum("k,kvh->hv", alpha, raw["heads_w"])       # (H, V)
    b_eff = jnp.einsum("k,kv->v", alpha, raw["heads_b"])         # (V,)
    V = w_eff.shape[-1]
    Vp = _round_up(V, 128)
    w_eff_p = jnp.zeros((Hp, Vp), jnp.float32).at[:H, :V].set(w_eff)
    prep["w_eff"] = w_eff_p.astype(WEIGHT_DTYPE)
    prep["b_eff"] = jnp.zeros((1, Vp), jnp.float32).at[0, :V].set(b_eff)
    return prep


@functools.partial(jax.jit, static_argnums=(2, 3))
def rem_forward(prep, ids, v_out, hidden):
    """ids: (B, S) int32 item ids -> logits (B, v_out). (is_train=True path)"""
    B, S = ids.shape
    Ep = prep["emb"].shape[1]
    Bp = _round_up(B, 8)                         # sublane-aligned batch rows

    x = jnp.take(prep["emb"], ids, axis=0)       # (B, S, Ep)  TODO(synk): fuse
    x = jnp.transpose(x, (1, 0, 2))              # (S, B, Ep) time-major
    x = jnp.pad(x, ((0, 0), (0, Bp - B), (0, 0)))          # (S, Bp, Ep)
    x2d = x.reshape(S * Bp, Ep).astype(WEIGHT_DTYPE)       # (S*Bp, Ep)

    # Chunk so T*Bp is a few hundred MXU rows at most; T divides S.
    T = _pick_chunk(S, max(1, 256 // Bp))

    logits_p = rem_fused_call(x2d, prep["layers"], prep["gamma"], prep["beta"],
                              prep["w_eff"], prep["b_eff"],
                              batch_p=Bp, hidden=hidden, chunk=T)
    return logits_p[:B, :v_out]


# ----------------------------------------------------------------------------
# Pure-JAX f32 reference of the original PyTorch forward (tolerance check).
# ----------------------------------------------------------------------------
def rem_reference(raw, ids):
    B = ids.shape[0]
    H = raw["gru"][0]["w_hh"].shape[1]
    x = jnp.take(raw["emb"][:, :raw["gru"][0]["w_ih"].shape[1]], ids, axis=0)
    for layer in raw["gru"]:
        w_ih, w_hh = layer["w_ih"], layer["w_hh"]
        b_ih, b_hh = layer["b_ih"], layer["b_hh"]

        def step(h, x_t):
            gi = x_t @ w_ih.T + b_ih
            gh = h @ w_hh.T + b_hh
            r = jax.nn.sigmoid(gi[:, :H] + gh[:, :H])
            z = jax.nn.sigmoid(gi[:, H:2 * H] + gh[:, H:2 * H])
            n = jnp.tanh(gi[:, 2 * H:] + r * gh[:, 2 * H:])
            h = (1.0 - z) * n + z * h
            return h, h

        h0 = jnp.zeros((B, H), jnp.float32)
        _, ys = lax.scan(step, h0, jnp.transpose(x, (1, 0, 2)))
        x = jnp.transpose(ys, (1, 0, 2))
    out = x[:, -1, :]
    mean = out.mean(-1, keepdims=True)
    var = jnp.square(out - mean).mean(-1, keepdims=True)
    out = (out - mean) * lax.rsqrt(var + LN_EPS)
    out = out * raw["gamma"][None, :] + raw["beta"][None, :]
    alpha = raw["alpha"][:, 0]
    logits = jnp.zeros((B, raw["heads_w"].shape[1]), jnp.float32)
    for k in range(alpha.shape[0]):
        logits = logits + alpha[k] * (out @ raw["heads_w"][k].T + raw["heads_b"][k])
    return logits


if __name__ == "__main__":
    # Small config: seq_hidden_size=32, seq_layer_num=2, i_emb_dim=16,
    # max_iid=63, K=3, layer_trick='ln', dropout=0.0.
    B, S = 2, 8
    E, H, L = 16, 32, 2
    max_iid = 63
    V = max_iid + 1              # fc0 output dim
    vocab = max_iid + 1 + 1      # embedding rows
    K = 3

    raw = init_params(jax.random.PRNGKey(0), E=E, H=H, L=L, V=V, vocab=vocab, K=K)
    prep = prepare_params(raw)
    ids = jax.random.randint(jax.random.PRNGKey(0), (B, S), 0, vocab,
                             dtype=jnp.int32)

    out = rem_forward(prep, ids, V, H)
    out = jax.block_until_ready(out)
    assert out.shape == (B, V) and out.dtype == jnp.float32

    ref = rem_reference(raw, ids)
    err = float(jnp.max(jnp.abs(out - ref)))
    assert err < 5e-2, f"max |pallas - ref| = {err}"
    print("KERNEL_OK")
</pallas_src>

<mosaic_0001>
module attributes {stable_mosaic.version = 11 : i64} {
  func.func @_rem_fused_kernel(%arg0: i32, %arg1: memref<64x128xbf16, #tpu.memory_space<vmem>>, %arg2: memref<128x384xbf16, #tpu.memory_space<vmem>>, %arg3: memref<128x384xf32, #tpu.memory_space<vmem>>, %arg4: memref<1x384xf32, #tpu.memory_space<vmem>>, %arg5: memref<1x128xf32, #tpu.memory_space<vmem>>, %arg6: memref<128x384xbf16, #tpu.memory_space<vmem>>, %arg7: memref<128x384xf32, #tpu.memory_space<vmem>>, %arg8: memref<1x384xf32, #tpu.memory_space<vmem>>, %arg9: memref<1x128xf32, #tpu.memory_space<vmem>>, %arg10: memref<1x128xf32, #tpu.memory_space<vmem>>, %arg11: memref<1x128xf32, #tpu.memory_space<vmem>>, %arg12: memref<128x128xbf16, #tpu.memory_space<vmem>>, %arg13: memref<1x128xf32, #tpu.memory_space<vmem>>, %arg14: memref<8x128xf32, #tpu.memory_space<vmem>>, %arg15: memref<2x8x128xf32, #tpu.memory_space<vmem>>) attributes {dimension_semantics = [#tpu.dimension_semantics<arbitrary>], iteration_bounds = array<i64: 1>, scalar_prefetch = 0 : i64, scratch_operands = 1 : i64, tpu.core_type = #tpu.core_type<tc>, window_params = [{transform_indices = @transform_0, window_bounds = array<i64: 64, 128>}, {pipeline_mode = #tpu.pipeline_mode<synchronous>, transform_indices = @transform_1, window_bounds = array<i64: 128, 384>}, {pipeline_mode = #tpu.pipeline_mode<synchronous>, transform_indices = @transform_2, window_bounds = array<i64: 128, 384>}, {pipeline_mode = #tpu.pipeline_mode<synchronous>, transform_indices = @transform_3, window_bounds = array<i64: 1, 384>}, {pipeline_mode = #tpu.pipeline_mode<synchronous>, transform_indices = @transform_4, window_bounds = array<i64: 1, 128>}, {pipeline_mode = #tpu.pipeline_mode<synchronous>, transform_indices = @transform_5, window_bounds = array<i64: 128, 384>}, {pipeline_mode = #tpu.pipeline_mode<synchronous>, transform_indices = @transform_6, window_bounds = array<i64: 128, 384>}, {pipeline_mode = #tpu.pipeline_mode<synchronous>, transform_indices = @transform_7, window_bounds = array<i64: 1, 384>}, {pipeline_mode = #tpu.pipeline_mode<synchronous>, transform_indices = @transform_8, window_bounds = array<i64: 1, 128>}, {pipeline_mode = #tpu.pipeline_mode<synchronous>, transform_indices = @transform_9, window_bounds = array<i64: 1, 128>}, {pipeline_mode = #tpu.pipeline_mode<synchronous>, transform_indices = @transform_10, window_bounds = array<i64: 1, 128>}, {pipeline_mode = #tpu.pipeline_mode<synchronous>, transform_indices = @transform_11, window_bounds = array<i64: 128, 128>}, {pipeline_mode = #tpu.pipeline_mode<synchronous>, transform_indices = @transform_12, window_bounds = array<i64: 1, 128>}, {pipeline_mode = #tpu.pipeline_mode<synchronous>, transform_indices = @transform_13, window_bounds = array<i64: 8, 128>}]} {
    %c0_i32 = arith.constant 0 : i32
    %0 = arith.cmpi eq, %arg0, %c0_i32 : i32
    %1 = arith.extui %0 : i1 to i32
    %c0_i32_0 = arith.constant 0 : i32
    %2 = arith.cmpi ne, %1, %c0_i32_0 : i32
    scf.if %2 {
      %cst_96 = arith.constant 0.000000e+00 : f32
      %501 = vector.broadcast %cst_96 : f32 to vector<2x8x128xf32>
      %c0_97 = arith.constant 0 : index
      %c0_98 = arith.constant 0 : index
      %c0_99 = arith.constant 0 : index
      %502 = vector.load %arg15[%c0_97, %c0_98, %c0_99] : memref<2x8x128xf32, #tpu.memory_space<vmem>>, vector<2x8x128xf32>
      tpu.vector_store %arg15[%c0_97, %c0_98, %c0_99], %501 {strides = array<i32>} : memref<2x8x128xf32, #tpu.memory_space<vmem>>, vector<2x8x128xf32>,
    } else {
    }
    %c0 = arith.constant 0 : index
    %c0_1 = arith.constant 0 : index
    %3 = vector.load %arg1[%c0, %c0_1] : memref<64x128xbf16, #tpu.memory_space<vmem>>, vector<64x128xbf16>
    %c0_2 = arith.constant 0 : index
    %c0_3 = arith.constant 0 : index
    %4 = vector.load %arg2[%c0_2, %c0_3] : memref<128x384xbf16, #tpu.memory_space<vmem>>, vector<128x384xbf16>
    %cst = arith.constant dense<0.000000e+00> : vector<64x384xf32>
    %5 = tpu.matmul %3, %4, %cst {dimension_numbers = #tpu.dot_dimension_numbers<[1], [0], [0], [1], [0, 0, 1, 1], [], []>} : vector<64x128xbf16>, vector<128x384xbf16>, vector<64x384xf32> -> vector<64x384xf32>
    %c0_4 = arith.constant 0 : index
    %c0_5 = arith.constant 0 : index
    %6 = vector.load %arg4[%c0_4, %c0_5] : memref<1x384xf32, #tpu.memory_space<vmem>>, vector<1x384xf32>
    %7 = vector.broadcast %6 : vector<1x384xf32> to vector<64x384xf32>
    %8 = arith.addf %5, %7 : vector<64x384xf32>
    %c0_6 = arith.constant 0 : index
    %c0_7 = arith.constant 0 : index
    %9 = vector.load %arg3[%c0_6, %c0_7] : memref<128x384xf32, #tpu.memory_space<vmem>>, vector<128x384xf32>
    %c0_8 = arith.constant 0 : index
    %c0_9 = arith.constant 0 : index
    %10 = vector.load %arg5[%c0_8, %c0_9] : memref<1x128xf32, #tpu.memory_space<vmem>>, vector<1x128xf32>
    %11 = vector.shape_cast %10 : vector<1x128xf32> to vector<1x128xf32>
    %12 = vector.broadcast %11 : vector<1x128xf32> to vector<8x128xf32>
    %c0_10 = arith.constant 0 : index
    %c0_11 = arith.constant 0 : index
    %c0_12 = arith.constant 0 : index
    %13 = vector.load %arg15[%c0_10, %c0_11, %c0_12] : memref<2x8x128xf32, #tpu.memory_space<vmem>>, vector<1x8x128xf32>
    %14 = vector.shape_cast %13 : vector<1x8x128xf32> to vector<8x128xf32>
    %15 = vector.extract_strided_slice %8 {offsets = [0, 0], sizes = [8, 384], strides = [1, 1]} : vector<64x384xf32> to vector<8x384xf32>
    %cst_13 = arith.constant dense<0.000000e+00> : vector<8x384xf32>
    %16 = tpu.matmul %14, %9, %cst_13 {dimension_numbers = #tpu.dot_dimension_numbers<[1], [0], [0], [1], [0, 0, 1, 1], [], []>} : vector<8x128xf32>, vector<128x384xf32>, vector<8x384xf32> -> vector<8x384xf32>
    %17 = vector.extract_strided_slice %15 {offsets = [0, 0], sizes = [8, 128], strides = [1, 1]} : vector<8x384xf32> to vector<8x128xf32>
    %18 = vector.extract_strided_slice %16 {offsets = [0, 0], sizes = [8, 128], strides = [1, 1]} : vector<8x384xf32> to vector<8x128xf32>
    %19 = arith.addf %17, %18 : vector<8x128xf32>
    %20 = arith.negf %19 : vector<8x128xf32>
    %21 = math.exp %20 : vector<8x128xf32>
    %cst_14 = arith.constant 1.000000e+00 : f32
    %22 = vector.broadcast %cst_14 : f32 to vector<8x128xf32>
    %23 = arith.addf %22, %21 : vector<8x128xf32>
    %24 = arith.divf %22, %23 : vector<8x128xf32>
    %25 = vector.extract_strided_slice %15 {offsets = [0, 128], sizes = [8, 128], strides = [1, 1]} : vector<8x384xf32> to vector<8x128xf32>
    %26 = vector.extract_strided_slice %16 {offsets = [0, 128], sizes = [8, 128], strides = [1, 1]} : vector<8x384xf32> to vector<8x128xf32>
    %27 = arith.addf %25, %26 : vector<8x128xf32>
    %28 = arith.negf %27 : vector<8x128xf32>
    %29 = math.exp %28 : vector<8x128xf32>
    %cst_15 = arith.constant 1.000000e+00 : f32
    %30 = vector.broadcast %cst_15 : f32 to vector<8x128xf32>
    %31 = arith.addf %30, %29 : vector<8x128xf32>
    %32 = arith.divf %30, %31 : vector<8x128xf32>
    %33 = vector.extract_strided_slice %15 {offsets = [0, 256], sizes = [8, 128], strides = [1, 1]} : vector<8x384xf32> to vector<8x128xf32>
    %34 = vector.extract_strided_slice %16 {offsets = [0, 256], sizes = [8, 128], strides = [1, 1]} : vector<8x384xf32> to vector<8x128xf32>
    %35 = arith.addf %34, %12 : vector<8x128xf32>
    %36 = arith.mulf %24, %35 : vector<8x128xf32>
    %37 = arith.addf %33, %36 : vector<8x128xf32>
    %38 = math.tanh %37 : vector<8x128xf32>
    %cst_16 = arith.constant 1.000000e+00 : f32
    %39 = vector.broadcast %cst_16 : f32 to vector<8x128xf32>
    %40 = arith.subf %39, %32 : vector<8x128xf32>
    %41 = arith.mulf %40, %38 : vector<8x128xf32>
    %42 = arith.mulf %32, %14 : vector<8x128xf32>
    %43 = arith.addf %41, %42 : vector<8x128xf32>
    %44 = vector.extract_strided_slice %8 {offsets = [8, 0], sizes = [8, 384], strides = [1, 1]} : vector<64x384xf32> to vector<8x384xf32>
    %cst_17 = arith.constant dense<0.000000e+00> : vector<8x384xf32>
    %45 = tpu.matmul %43, %9, %cst_17 {dimension_numbers = #tpu.dot_dimension_numbers<[1], [0], [0], [1], [0, 0, 1, 1], [], []>} : vector<8x128xf32>, vector<128x384xf32>, vector<8x384xf32> -> vector<8x384xf32>
    %46 = vector.extract_strided_slice %44 {offsets = [0, 0], sizes = [8, 128], strides = [1, 1]} : vector<8x384xf32> to vector<8x128xf32>
    %47 = vector.extract_strided_slice %45 {offsets = [0, 0], sizes = [8, 128], strides = [1, 1]} : vector<8x384xf32> to vector<8x128xf32>
    %48 = arith.addf %46, %47 : vector<8x128xf32>
    %49 = arith.negf %48 : vector<8x128xf32>
    %50 = math.exp %49 : vector<8x128xf32>
    %cst_18 = arith.constant 1.000000e+00 : f32
    %51 = vector.broadcast %cst_18 : f32 to vector<8x128xf32>
    %52 = arith.addf %51, %50 : vector<8x128xf32>
    %53 = arith.divf %51, %52 : vector<8x128xf32>
    %54 = vector.extract_strided_slice %44 {offsets = [0, 128], sizes = [8, 128], strides = [1, 1]} : vector<8x384xf32> to vector<8x128xf32>
    %55 = vector.extract_strided_slice %45 {offsets = [0, 128], sizes = [8, 128], strides = [1, 1]} : vector<8x384xf32> to vector<8x128xf32>
    %56 = arith.addf %54, %55 : vector<8x128xf32>
    %57 = arith.negf %56 : vector<8x128xf32>
    %58 = math.exp %57 : vector<8x128xf32>
    %cst_19 = arith.constant 1.000000e+00 : f32
    %59 = vector.broadcast %cst_19 : f32 to vector<8x128xf32>
    %60 = arith.addf %59, %58 : vector<8x128xf32>
    %61 = arith.divf %59, %60 : vector<8x128xf32>
    %62 = vector.extract_strided_slice %44 {offsets = [0, 256], sizes = [8, 128], strides = [1, 1]} : vector<8x384xf32> to vector<8x128xf32>
    %63 = vector.extract_strided_slice %45 {offsets = [0, 256], sizes = [8, 128], strides = [1, 1]} : vector<8x384xf32> to vector<8x128xf32>
    %64 = arith.addf %63, %12 : vector<8x128xf32>
    %65 = arith.mulf %53, %64 : vector<8x128xf32>
    %66 = arith.addf %62, %65 : vector<8x128xf32>
    %67 = math.tanh %66 : vector<8x128xf32>
    %cst_20 = arith.constant 1.000000e+00 : f32
    %68 = vector.broadcast %cst_20 : f32 to vector<8x128xf32>
    %69 = arith.subf %68, %61 : vector<8x128xf32>
    %70 = arith.mulf %69, %67 : vector<8x128xf32>
    %71 = arith.mulf %61, %43 : vector<8x128xf32>
    %72 = arith.addf %70, %71 : vector<8x128xf32>
    %73 = vector.extract_strided_slice %8 {offsets = [16, 0], sizes = [8, 384], strides = [1, 1]} : vector<64x384xf32> to vector<8x384xf32>
    %cst_21 = arith.constant dense<0.000000e+00> : vector<8x384xf32>
    %74 = tpu.matmul %72, %9, %cst_21 {dimension_numbers = #tpu.dot_dimension_numbers<[1], [0], [0], [1], [0, 0, 1, 1], [], []>} : vector<8x128xf32>, vector<128x384xf32>, vector<8x384xf32> -> vector<8x384xf32>
    %75 = vector.extract_strided_slice %73 {offsets = [0, 0], sizes = [8, 128], strides = [1, 1]} : vector<8x384xf32> to vector<8x128xf32>
    %76 = vector.extract_strided_slice %74 {offsets = [0, 0], sizes = [8, 128], strides = [1, 1]} : vector<8x384xf32> to vector<8x128xf32>
    %77 = arith.addf %75, %76 : vector<8x128xf32>
    %78 = arith.negf %77 : vector<8x128xf32>
    %79 = math.exp %78 : vector<8x128xf32>
    %cst_22 = arith.constant 1.000000e+00 : f32
    %80 = vector.broadcast %cst_22 : f32 to vector<8x128xf32>
    %81 = arith.addf %80, %79 : vector<8x128xf32>
    %82 = arith.divf %80, %81 : vector<8x128xf32>
    %83 = vector.extract_strided_slice %73 {offsets = [0, 128], sizes = [8, 128], strides = [1, 1]} : vector<8x384xf32> to vector<8x128xf32>
    %84 = vector.extract_strided_slice %74 {offsets = [0, 128], sizes = [8, 128], strides = [1, 1]} : vector<8x384xf32> to vector<8x128xf32>
    %85 = arith.addf %83, %84 : vector<8x128xf32>
    %86 = arith.negf %85 : vector<8x128xf32>
    %87 = math.exp %86 : vector<8x128xf32>
    %cst_23 = arith.constant 1.000000e+00 : f32
    %88 = vector.broadcast %cst_23 : f32 to vector<8x128xf32>
    %89 = arith.addf %88, %87 : vector<8x128xf32>
    %90 = arith.divf %88, %89 : vector<8x128xf32>
    %91 = vector.extract_strided_slice %73 {offsets = [0, 256], sizes = [8, 128], strides = [1, 1]} : vector<8x384xf32> to vector<8x128xf32>
    %92 = vector.extract_strided_slice %74 {offsets = [0, 256], sizes = [8, 128], strides = [1, 1]} : vector<8x384xf32> to vector<8x128xf32>
    %93 = arith.addf %92, %12 : vector<8x128xf32>
    %94 = arith.mulf %82, %93 : vector<8x128xf32>
    %95 = arith.addf %91, %94 : vector<8x128xf32>
    %96 = math.tanh %95 : vector<8x128xf32>
    %cst_24 = arith.constant 1.000000e+00 : f32
    %97 = vector.broadcast %cst_24 : f32 to vector<8x128xf32>
    %98 = arith.subf %97, %90 : vector<8x128xf32>
    %99 = arith.mulf %98, %96 : vector<8x128xf32>
    %100 = arith.mulf %90, %72 : vector<8x128xf32>
    %101 = arith.addf %99, %100 : vector<8x128xf32>
    %102 = vector.extract_strided_slice %8 {offsets = [24, 0], sizes = [8, 384], strides = [1, 1]} : vector<64x384xf32> to vector<8x384xf32>
    %cst_25 = arith.constant dense<0.000000e+00> : vector<8x384xf32>
    %103 = tpu.matmul %101, %9, %cst_25 {dimension_numbers = #tpu.dot_dimension_numbers<[1], [0], [0], [1], [0, 0, 1, 1], [], []>} : vector<8x128xf32>, vector<128x384xf32>, vector<8x384xf32> -> vector<8x384xf32>
    %104 = vector.extract_strided_slice %102 {offsets = [0, 0], sizes = [8, 128], strides = [1, 1]} : vector<8x384xf32> to vector<8x128xf32>
    %105 = vector.extract_strided_slice %103 {offsets = [0, 0], sizes = [8, 128], strides = [1, 1]} : vector<8x384xf32> to vector<8x128xf32>
    %106 = arith.addf %104, %105 : vector<8x128xf32>
    %107 = arith.negf %106 : vector<8x128xf32>
    %108 = math.exp %107 : vector<8x128xf32>
    %cst_26 = arith.constant 1.000000e+00 : f32
    %109 = vector.broadcast %cst_26 : f32 to vector<8x128xf32>
    %110 = arith.addf %109, %108 : vector<8x128xf32>
    %111 = arith.divf %109, %110 : vector<8x128xf32>
    %112 = vector.extract_strided_slice %102 {offsets = [0, 128], sizes = [8, 128], strides = [1, 1]} : vector<8x384xf32> to vector<8x128xf32>
    %113 = vector.extract_strided_slice %103 {offsets = [0, 128], sizes = [8, 128], strides = [1, 1]} : vector<8x384xf32> to vector<8x128xf32>
    %114 = arith.addf %112, %113 : vector<8x128xf32>
    %115 = arith.negf %114 : vector<8x128xf32>
    %116 = math.exp %115 : vector<8x128xf32>
    %cst_27 = arith.constant 1.000000e+00 : f32
    %117 = vector.broadcast %cst_27 : f32 to vector<8x128xf32>
    %118 = arith.addf %117, %116 : vector<8x128xf32>
    %119 = arith.divf %117, %118 : vector<8x128xf32>
    %120 = vector.extract_strided_slice %102 {offsets = [0, 256], sizes = [8, 128], strides = [1, 1]} : vector<8x384xf32> to vector<8x128xf32>
    %121 = vector.extract_strided_slice %103 {offsets = [0, 256], sizes = [8, 128], strides = [1, 1]} : vector<8x384xf32> to vector<8x128xf32>
    %122 = arith.addf %121, %12 : vector<8x128xf32>
    %123 = arith.mulf %111, %122 : vector<8x128xf32>
    %124 = arith.addf %120, %123 : vector<8x128xf32>
    %125 = math.tanh %124 : vector<8x128xf32>
    %cst_28 = arith.constant 1.000000e+00 : f32
    %126 = vector.broadcast %cst_28 : f32 to vector<8x128xf32>
    %127 = arith.subf %126, %119 : vector<8x128xf32>
    %128 = arith.mulf %127, %125 : vector<8x128xf32>
    %129 = arith.mulf %119, %101 : vector<8x128xf32>
    %130 = arith.addf %128, %129 : vector<8x128xf32>
    %131 = vector.extract_strided_slice %8 {offsets = [32, 0], sizes = [8, 384], strides = [1, 1]} : vector<64x384xf32> to vector<8x384xf32>
    %cst_29 = arith.constant dense<0.000000e+00> : vector<8x384xf32>
    %132 = tpu.matmul %130, %9, %cst_29 {dimension_numbers = #tpu.dot_dimension_numbers<[1], [0], [0], [1], [0, 0, 1, 1], [], []>} : vector<8x128xf32>, vector<128x384xf32>, vector<8x384xf32> -> vector<8x384xf32>
    %133 = vector.extract_strided_slice %131 {offsets = [0, 0], sizes = [8, 128], strides = [1, 1]} : vector<8x384xf32> to vector<8x128xf32>
    %134 = vector.extract_strided_slice %132 {offsets = [0, 0], sizes = [8, 128], strides = [1, 1]} : vector<8x384xf32> to vector<8x128xf32>
    %135 = arith.addf %133, %134 : vector<8x128xf32>
    %136 = arith.negf %135 : vector<8x128xf32>
    %137 = math.exp %136 : vector<8x128xf32>
    %cst_30 = arith.constant 1.000000e+00 : f32
    %138 = vector.broadcast %cst_30 : f32 to vector<8x128xf32>
    %139 = arith.addf %138, %137 : vector<8x128xf32>
    %140 = arith.divf %138, %139 : vector<8x128xf32>
    %141 = vector.extract_strided_slice %131 {offsets = [0, 128], sizes = [8, 128], strides = [1, 1]} : vector<8x384xf32> to vector<8x128xf32>
    %142 = vector.extract_strided_slice %132 {offsets = [0, 128], sizes = [8, 128], strides = [1, 1]} : vector<8x384xf32> to vector<8x128xf32>
    %143 = arith.addf %141, %142 : vector<8x128xf32>
    %144 = arith.negf %143 : vector<8x128xf32>
    %145 = math.exp %144 : vector<8x128xf32>
    %cst_31 = arith.constant 1.000000e+00 : f32
    %146 = vector.broadcast %cst_31 : f32 to vector<8x128xf32>
    %147 = arith.addf %146, %145 : vector<8x128xf32>
    %148 = arith.divf %146, %147 : vector<8x128xf32>
    %149 = vector.extract_strided_slice %131 {offsets = [0, 256], sizes = [8, 128], strides = [1, 1]} : vector<8x384xf32> to vector<8x128xf32>
    %150 = vector.extract_strided_slice %132 {offsets = [0, 256], sizes = [8, 128], strides = [1, 1]} : vector<8x384xf32> to vector<8x128xf32>
    %151 = arith.addf %150, %12 : vector<8x128xf32>
    %152 = arith.mulf %140, %151 : vector<8x128xf32>
    %153 = arith.addf %149, %152 : vector<8x128xf32>
    %154 = math.tanh %153 : vector<8x128xf32>
    %cst_32 = arith.constant 1.000000e+00 : f32
    %155 = vector.broadcast %cst_32 : f32 to vector<8x128xf32>
    %156 = arith.subf %155, %148 : vector<8x128xf32>
    %157 = arith.mulf %156, %154 : vector<8x128xf32>
    %158 = arith.mulf %148, %130 : vector<8x128xf32>
    %159 = arith.addf %157, %158 : vector<8x128xf32>
    %160 = vector.extract_strided_slice %8 {offsets = [40, 0], sizes = [8, 384], strides = [1, 1]} : vector<64x384xf32> to vector<8x384xf32>
    %cst_33 = arith.constant dense<0.000000e+00> : vector<8x384xf32>
    %161 = tpu.matmul %159, %9, %cst_33 {dimension_numbers = #tpu.dot_dimension_numbers<[1], [0], [0], [1], [0, 0, 1, 1], [], []>} : vector<8x128xf32>, vector<128x384xf32>, vector<8x384xf32> -> vector<8x384xf32>
    %162 = vector.extract_strided_slice %160 {offsets = [0, 0], sizes = [8, 128], strides = [1, 1]} : vector<8x384xf32> to vector<8x128xf32>
    %163 = vector.extract_strided_slice %161 {offsets = [0, 0], sizes = [8, 128], strides = [1, 1]} : vector<8x384xf32> to vector<8x128xf32>
    %164 = arith.addf %162, %163 : vector<8x128xf32>
    %165 = arith.negf %164 : vector<8x128xf32>
    %166 = math.exp %165 : vector<8x128xf32>
    %cst_34 = arith.constant 1.000000e+00 : f32
    %167 = vector.broadcast %cst_34 : f32 to vector<8x128xf32>
    %168 = arith.addf %167, %166 : vector<8x128xf32>
    %169 = arith.divf %167, %168 : vector<8x128xf32>
    %170 = vector.extract_strided_slice %160 {offsets = [0, 128], sizes = [8, 128], strides = [1, 1]} : vector<8x384xf32> to vector<8x128xf32>
    %171 = vector.extract_strided_slice %161 {offsets = [0, 128], sizes = [8, 128], strides = [1, 1]} : vector<8x384xf32> to vector<8x128xf32>
    %172 = arith.addf %170, %171 : vector<8x128xf32>
    %173 = arith.negf %172 : vector<8x128xf32>
    %174 = math.exp %173 : vector<8x128xf32>
    %cst_35 = arith.constant 1.000000e+00 : f32
    %175 = vector.broadcast %cst_35 : f32 to vector<8x128xf32>
    %176 = arith.addf %175, %174 : vector<8x128xf32>
    %177 = arith.divf %175, %176 : vector<8x128xf32>
    %178 = vector.extract_strided_slice %160 {offsets = [0, 256], sizes = [8, 128], strides = [1, 1]} : vector<8x384xf32> to vector<8x128xf32>
    %179 = vector.extract_strided_slice %161 {offsets = [0, 256], sizes = [8, 128], strides = [1, 1]} : vector<8x384xf32> to vector<8x128xf32>
    %180 = arith.addf %179, %12 : vector<8x128xf32>
    %181 = arith.mulf %169, %180 : vector<8x128xf32>
    %182 = arith.addf %178, %181 : vector<8x128xf32>
    %183 = math.tanh %182 : vector<8x128xf32>
    %cst_36 = arith.constant 1.000000e+00 : f32
    %184 = vector.broadcast %cst_36 : f32 to vector<8x128xf32>
    %185 = arith.subf %184, %177 : vector<8x128xf32>
    %186 = arith.mulf %185, %183 : vector<8x128xf32>
    %187 = arith.mulf %177, %159 : vector<8x128xf32>
    %188 = arith.addf %186, %187 : vector<8x128xf32>
    %189 = vector.extract_strided_slice %8 {offsets = [48, 0], sizes = [8, 384], strides = [1, 1]} : vector<64x384xf32> to vector<8x384xf32>
    %cst_37 = arith.constant dense<0.000000e+00> : vector<8x384xf32>
    %190 = tpu.matmul %188, %9, %cst_37 {dimension_numbers = #tpu.dot_dimension_numbers<[1], [0], [0], [1], [0, 0, 1, 1], [], []>} : vector<8x128xf32>, vector<128x384xf32>, vector<8x384xf32> -> vector<8x384xf32>
    %191 = vector.extract_strided_slice %189 {offsets = [0, 0], sizes = [8, 128], strides = [1, 1]} : vector<8x384xf32> to vector<8x128xf32>
    %192 = vector.extract_strided_slice %190 {offsets = [0, 0], sizes = [8, 128], strides = [1, 1]} : vector<8x384xf32> to vector<8x128xf32>
    %193 = arith.addf %191, %192 : vector<8x128xf32>
    %194 = arith.negf %193 : vector<8x128xf32>
    %195 = math.exp %194 : vector<8x128xf32>
    %cst_38 = arith.constant 1.000000e+00 : f32
    %196 = vector.broadcast %cst_38 : f32 to vector<8x128xf32>
    %197 = arith.addf %196, %195 : vector<8x128xf32>
    %198 = arith.divf %196, %197 : vector<8x128xf32>
    %199 = vector.extract_strided_slice %189 {offsets = [0, 128], sizes = [8, 128], strides = [1, 1]} : vector<8x384xf32> to vector<8x128xf32>
    %200 = vector.extract_strided_slice %190 {offsets = [0, 128], sizes = [8, 128], strides = [1, 1]} : vector<8x384xf32> to vector<8x128xf32>
    %201 = arith.addf %199, %200 : vector<8x128xf32>
    %202 = arith.negf %201 : vector<8x128xf32>
    %203 = math.exp %202 : vector<8x128xf32>
    %cst_39 = arith.constant 1.000000e+00 : f32
    %204 = vector.broadcast %cst_39 : f32 to vector<8x128xf32>
    %205 = arith.addf %204, %203 : vector<8x128xf32>
    %206 = arith.divf %204, %205 : vector<8x128xf32>
    %207 = vector.extract_strided_slice %189 {offsets = [0, 256], sizes = [8, 128], strides = [1, 1]} : vector<8x384xf32> to vector<8x128xf32>
    %208 = vector.extract_strided_slice %190 {offsets = [0, 256], sizes = [8, 128], strides = [1, 1]} : vector<8x384xf32> to vector<8x128xf32>
    %209 = arith.addf %208, %12 : vector<8x128xf32>
    %210 = arith.mulf %198, %209 : vector<8x128xf32>
    %211 = arith.addf %207, %210 : vector<8x128xf32>
    %212 = math.tanh %211 : vector<8x128xf32>
    %cst_40 = arith.constant 1.000000e+00 : f32
    %213 = vector.broadcast %cst_40 : f32 to vector<8x128xf32>
    %214 = arith.subf %213, %206 : vector<8x128xf32>
    %215 = arith.mulf %214, %212 : vector<8x128xf32>
    %216 = arith.mulf %206, %188 : vector<8x128xf32>
    %217 = arith.addf %215, %216 : vector<8x128xf32>
    %218 = vector.extract_strided_slice %8 {offsets = [56, 0], sizes = [8, 384], strides = [1, 1]} : vector<64x384xf32> to vector<8x384xf32>
    %cst_41 = arith.constant dense<0.000000e+00> : vector<8x384xf32>
    %219 = tpu.matmul %217, %9, %cst_41 {dimension_numbers = #tpu.dot_dimension_numbers<[1], [0], [0], [1], [0, 0, 1, 1], [], []>} : vector<8x128xf32>, vector<128x384xf32>, vector<8x384xf32> -> vector<8x384xf32>
    %220 = vector.extract_strided_slice %218 {offsets = [0, 0], sizes = [8, 128], strides = [1, 1]} : vector<8x384xf32> to vector<8x128xf32>
    %221 = vector.extract_strided_slice %219 {offsets = [0, 0], sizes = [8, 128], strides = [1, 1]} : vector<8x384xf32> to vector<8x128xf32>
    %222 = arith.addf %220, %221 : vector<8x128xf32>
    %223 = arith.negf %222 : vector<8x128xf32>
    %224 = math.exp %223 : vector<8x128xf32>
    %cst_42 = arith.constant 1.000000e+00 : f32
    %225 = vector.broadcast %cst_42 : f32 to vector<8x128xf32>
    %226 = arith.addf %225, %224 : vector<8x128xf32>
    %227 = arith.divf %225, %226 : vector<8x128xf32>
    %228 = vector.extract_strided_slice %218 {offsets = [0, 128], sizes = [8, 128], strides = [1, 1]} : vector<8x384xf32> to vector<8x128xf32>
    %229 = vector.extract_strided_slice %219 {offsets = [0, 128], sizes = [8, 128], strides = [1, 1]} : vector<8x384xf32> to vector<8x128xf32>
    %230 = arith.addf %228, %229 : vector<8x128xf32>
    %231 = arith.negf %230 : vector<8x128xf32>
    %232 = math.exp %231 : vector<8x128xf32>
    %cst_43 = arith.constant 1.000000e+00 : f32
    %233 = vector.broadcast %cst_43 : f32 to vector<8x128xf32>
    %234 = arith.addf %233, %232 : vector<8x128xf32>
    %235 = arith.divf %233, %234 : vector<8x128xf32>
    %236 = vector.extract_strided_slice %218 {offsets = [0, 256], sizes = [8, 128], strides = [1, 1]} : vector<8x384xf32> to vector<8x128xf32>
    %237 = vector.extract_strided_slice %219 {offsets = [0, 256], sizes = [8, 128], strides = [1, 1]} : vector<8x384xf32> to vector<8x128xf32>
    %238 = arith.addf %237, %12 : vector<8x128xf32>
    %239 = arith.mulf %227, %238 : vector<8x128xf32>
    %240 = arith.addf %236, %239 : vector<8x128xf32>
    %241 = math.tanh %240 : vector<8x128xf32>
    %cst_44 = arith.constant 1.000000e+00 : f32
    %242 = vector.broadcast %cst_44 : f32 to vector<8x128xf32>
    %243 = arith.subf %242, %235 : vector<8x128xf32>
    %244 = arith.mulf %243, %241 : vector<8x128xf32>
    %245 = arith.mulf %235, %217 : vector<8x128xf32>
    %246 = arith.addf %244, %245 : vector<8x128xf32>
    %c0_45 = arith.constant 0 : index
    %c0_46 = arith.constant 0 : index
    %c0_47 = arith.constant 0 : index
    %247 = vector.load %arg15[%c0_45, %c0_46, %c0_47] : memref<2x8x128xf32, #tpu.memory_space<vmem>>, vector<1x8x128xf32>
    %248 = vector.shape_cast %247 : vector<1x8x128xf32> to vector<8x128xf32>
    %249 = vector.shape_cast %246 : vector<8x128xf32> to vector<1x8x128xf32>
    tpu.vector_store %arg15[%c0_45, %c0_46, %c0_47], %249 {strides = array<i32>} : memref<2x8x128xf32, #tpu.memory_space<vmem>>, vector<1x8x128xf32>,
    %250 = tpu.concatenate %43, %72, %101, %130, %159, %188, %217, %246 in 0 : vector<8x128xf32>, vector<8x128xf32>, vector<8x128xf32>, vector<8x128xf32>, vector<8x128xf32>, vector<8x128xf32>, vector<8x128xf32>, vector<8x128xf32> -> vector<64x128xf32>
    %251 = arith.truncf %250 : vector<64x128xf32> to vector<64x128xbf16>
    %c0_48 = arith.constant 0 : index
    %c0_49 = arith.constant 0 : index
    %252 = vector.load %arg6[%c0_48, %c0_49] : memref<128x384xbf16, #tpu.memory_space<vmem>>, vector<128x384xbf16>
    %cst_50 = arith.constant dense<0.000000e+00> : vector<64x384xf32>
    %253 = tpu.matmul %251, %252, %cst_50 {dimension_numbers = #tpu.dot_dimension_numbers<[1], [0], [0], [1], [0, 0, 1, 1], [], []>} : vector<64x128xbf16>, vector<128x384xbf16>, vector<64x384xf32> -> vector<64x384xf32>
    %c0_51 = arith.constant 0 : index
    %c0_52 = arith.constant 0 : index
    %254 = vector.load %arg8[%c0_51, %c0_52] : memref<1x384xf32, #tpu.memory_space<vmem>>, vector<1x384xf32>
    %255 = vector.broadcast %254 : vector<1x384xf32> to vector<64x384xf32>
    %256 = arith.addf %253, %255 : vector<64x384xf32>
    %c0_53 = arith.constant 0 : index
    %c0_54 = arith.constant 0 : index
    %257 = vector.load %arg7[%c0_53, %c0_54] : memref<128x384xf32, #tpu.memory_space<vmem>>, vector<128x384xf32>
    %c0_55 = arith.constant 0 : index
    %c0_56 = arith.constant 0 : index
    %258 = vector.load %arg9[%c0_55, %c0_56] : memref<1x128xf32, #tpu.memory_space<vmem>>, vector<1x128xf32>
    %259 = vector.shape_cast %258 : vector<1x128xf32> to vector<1x128xf32>
    %260 = vector.broadcast %259 : vector<1x128xf32> to vector<8x128xf32>
    %c1 = arith.constant 1 : index
    %c0_57 = arith.constant 0 : index
    %c0_58 = arith.constant 0 : index
    %261 = vector.load %arg15[%c1, %c0_57, %c0_58] : memref<2x8x128xf32, #tpu.memory_space<vmem>>, vector<1x8x128xf32>
    %262 = vector.shape_cast %261 : vector<1x8x128xf32> to vector<8x128xf32>
    %263 = vector.extract_strided_slice %256 {offsets = [0, 0], sizes = [8, 384], strides = [1, 1]} : vector<64x384xf32> to vector<8x384xf32>
    %cst_59 = arith.constant dense<0.000000e+00> : vector<8x384xf32>
    %264 = tpu.matmul %262, %257, %cst_59 {dimension_numbers = #tpu.dot_dimension_numbers<[1], [0], [0], [1], [0, 0, 1, 1], [], []>} : vector<8x128xf32>, vector<128x384xf32>, vector<8x384xf32> -> vector<8x384xf32>
    %265 = vector.extract_strided_slice %263 {offsets = [0, 0], sizes = [8, 128], strides = [1, 1]} : vector<8x384xf32> to vector<8x128xf32>
    %266 = vector.extract_strided_slice %264 {offsets = [0, 0], sizes = [8, 128], strides = [1, 1]} : vector<8x384xf32> to vector<8x128xf32>
    %267 = arith.addf %265, %266 : vector<8x128xf32>
    %268 = arith.negf %267 : vector<8x128xf32>
    %269 = math.exp %268 : vector<8x128xf32>
    %cst_60 = arith.constant 1.000000e+00 : f32
    %270 = vector.broadcast %cst_60 : f32 to vector<8x128xf32>
    %271 = arith.addf %270, %269 : vector<8x128xf32>
    %272 = arith.divf %270, %271 : vector<8x128xf32>
    %273 = vector.extract_strided_slice %263 {offsets = [0, 128], sizes = [8, 128], strides = [1, 1]} : vector<8x384xf32> to vector<8x128xf32>
    %274 = vector.extract_strided_slice %264 {offsets = [0, 128], sizes = [8, 128], strides = [1, 1]} : vector<8x384xf32> to vector<8x128xf32>
    %275 = arith.addf %273, %274 : vector<8x128xf32>
    %276 = arith.negf %275 : vector<8x128xf32>
    %277 = math.exp %276 : vector<8x128xf32>
    %cst_61 = arith.constant 1.000000e+00 : f32
    %278 = vector.broadcast %cst_61 : f32 to vector<8x128xf32>
    %279 = arith.addf %278, %277 : vector<8x128xf32>
    %280 = arith.divf %278, %279 : vector<8x128xf32>
    %281 = vector.extract_strided_slice %263 {offsets = [0, 256], sizes = [8, 128], strides = [1, 1]} : vector<8x384xf32> to vector<8x128xf32>
    %282 = vector.extract_strided_slice %264 {offsets = [0, 256], sizes = [8, 128], strides = [1, 1]} : vector<8x384xf32> to vector<8x128xf32>
    %283 = arith.addf %282, %260 : vector<8x128xf32>
    %284 = arith.mulf %272, %283 : vector<8x128xf32>
    %285 = arith.addf %281, %284 : vector<8x128xf32>
    %286 = math.tanh %285 : vector<8x128xf32>
    %cst_62 = arith.constant 1.000000e+00 : f32
    %287 = vector.broadcast %cst_62 : f32 to vector<8x128xf32>
    %288 = arith.subf %287, %280 : vector<8x128xf32>
    %289 = arith.mulf %288, %286 : vector<8x128xf32>
    %290 = arith.mulf %280, %262 : vector<8x128xf32>
    %291 = arith.addf %289, %290 : vector<8x128xf32>
    %292 = vector.extract_strided_slice %256 {offsets = [8, 0], sizes = [8, 384], strides = [1, 1]} : vector<64x384xf32> to vector<8x384xf32>
    %cst_63 = arith.constant dense<0.000000e+00> : vector<8x384xf32>
    %293 = tpu.matmul %291, %257, %cst_63 {dimension_numbers = #tpu.dot_dimension_numbers<[1], [0], [0], [1], [0, 0, 1, 1], [], []>} : vector<8x128xf32>, vector<128x384xf32>, vector<8x384xf32> -> vector<8x384xf32>
    %294 = vector.extract_strided_slice %292 {offsets = [0, 0], sizes = [8, 128], strides = [1, 1]} : vector<8x384xf32> to vector<8x128xf32>
    %295 = vector.extract_strided_slice %293 {offsets = [0, 0], sizes = [8, 128], strides = [1, 1]} : vector<8x384xf32> to vector<8x128xf32>
    %296 = arith.addf %294, %295 : vector<8x128xf32>
    %297 = arith.negf %296 : vector<8x128xf32>
    %298 = math.exp %297 : vector<8x128xf32>
    %cst_64 = arith.constant 1.000000e+00 : f32
    %299 = vector.broadcast %cst_64 : f32 to vector<8x128xf32>
    %300 = arith.addf %299, %298 : vector<8x128xf32>
    %301 = arith.divf %299, %300 : vector<8x128xf32>
    %302 = vector.extract_strided_slice %292 {offsets = [0, 128], sizes = [8, 128], strides = [1, 1]} : vector<8x384xf32> to vector<8x128xf32>
    %303 = vector.extract_strided_slice %293 {offsets = [0, 128], sizes = [8, 128], strides = [1, 1]} : vector<8x384xf32> to vector<8x128xf32>
    %304 = arith.addf %302, %303 : vector<8x128xf32>
    %305 = arith.negf %304 : vector<8x128xf32>
    %306 = math.exp %305 : vector<8x128xf32>
    %cst_65 = arith.constant 1.000000e+00 : f32
    %307 = vector.broadcast %cst_65 : f32 to vector<8x128xf32>
    %308 = arith.addf %307, %306 : vector<8x128xf32>
    %309 = arith.divf %307, %308 : vector<8x128xf32>
    %310 = vector.extract_strided_slice %292 {offsets = [0, 256], sizes = [8, 128], strides = [1, 1]} : vector<8x384xf32> to vector<8x128xf32>
    %311 = vector.extract_strided_slice %293 {offsets = [0, 256], sizes = [8, 128], strides = [1, 1]} : vector<8x384xf32> to vector<8x128xf32>
    %312 = arith.addf %311, %260 : vector<8x128xf32>
    %313 = arith.mulf %301, %312 : vector<8x128xf32>
    %314 = arith.addf %310, %313 : vector<8x128xf32>
    %315 = math.tanh %314 : vector<8x128xf32>
    %cst_66 = arith.constant 1.000000e+00 : f32
    %316 = vector.broadcast %cst_66 : f32 to vector<8x128xf32>
    %317 = arith.subf %316, %309 : vector<8x128xf32>
    %318 = arith.mulf %317, %315 : vector<8x128xf32>
    %319 = arith.mulf %309, %291 : vector<8x128xf32>
    %320 = arith.addf %318, %319 : vector<8x128xf32>
    %321 = vector.extract_strided_slice %256 {offsets = [16, 0], sizes = [8, 384], strides = [1, 1]} : vector<64x384xf32> to vector<8x384xf32>
    %cst_67 = arith.constant dense<0.000000e+00> : vector<8x384xf32>
    %322 = tpu.matmul %320, %257, %cst_67 {dimension_numbers = #tpu.dot_dimension_numbers<[1], [0], [0], [1], [0, 0, 1, 1], [], []>} : vector<8x128xf32>, vector<128x384xf32>, vector<8x384xf32> -> vector<8x384xf32>
    %323 = vector.extract_strided_slice %321 {offsets = [0, 0], sizes = [8, 128], strides = [1, 1]} : vector<8x384xf32> to vector<8x128xf32>
    %324 = vector.extract_strided_slice %322 {offsets = [0, 0], sizes = [8, 128], strides = [1, 1]} : vector<8x384xf32> to vector<8x128xf32>
    %325 = arith.addf %323, %324 : vector<8x128xf32>
    %326 = arith.negf %325 : vector<8x128xf32>
    %327 = math.exp %326 : vector<8x128xf32>
    %cst_68 = arith.constant 1.000000e+00 : f32
    %328 = vector.broadcast %cst_68 : f32 to vector<8x128xf32>
    %329 = arith.addf %328, %327 : vector<8x128xf32>
    %330 = arith.divf %328, %329 : vector<8x128xf32>
    %331 = vector.extract_strided_slice %321 {offsets = [0, 128], sizes = [8, 128], strides = [1, 1]} : vector<8x384xf32> to vector<8x128xf32>
    %332 = vector.extract_strided_slice %322 {offsets = [0, 128], sizes = [8, 128], strides = [1, 1]} : vector<8x384xf32> to vector<8x128xf32>
    %333 = arith.addf %331, %332 : vector<8x128xf32>
    %334 = arith.negf %333 : vector<8x128xf32>
    %335 = math.exp %334 : vector<8x128xf32>
    %cst_69 = arith.constant 1.000000e+00 : f32
    %336 = vector.broadcast %cst_69 : f32 to vector<8x128xf32>
    %337 = arith.addf %336, %335 : vector<8x128xf32>
    %338 = arith.divf %336, %337 : vector<8x128xf32>
    %339 = vector.extract_strided_slice %321 {offsets = [0, 256], sizes = [8, 128], strides = [1, 1]} : vector<8x384xf32> to vector<8x128xf32>
    %340 = vector.extract_strided_slice %322 {offsets = [0, 256], sizes = [8, 128], strides = [1, 1]} : vector<8x384xf32> to vector<8x128xf32>
    %341 = arith.addf %340, %260 : vector<8x128xf32>
    %342 = arith.mulf %330, %341 : vector<8x128xf32>
    %343 = arith.addf %339, %342 : vector<8x128xf32>
    %344 = math.tanh %343 : vector<8x128xf32>
    %cst_70 = arith.constant 1.000000e+00 : f32
    %345 = vector.broadcast %cst_70 : f32 to vector<8x128xf32>
    %346 = arith.subf %345, %338 : vector<8x128xf32>
    %347 = arith.mulf %346, %344 : vector<8x128xf32>
    %348 = arith.mulf %338, %320 : vector<8x128xf32>
    %349 = arith.addf %347, %348 : vector<8x128xf32>
    %350 = vector.extract_strided_slice %256 {offsets = [24, 0], sizes = [8, 384], strides = [1, 1]} : vector<64x384xf32> to vector<8x384xf32>
    %cst_71 = arith.constant dense<0.000000e+00> : vector<8x384xf32>
    %351 = tpu.matmul %349, %257, %cst_71 {dimension_numbers = #tpu.dot_dimension_numbers<[1], [0], [0], [1], [0, 0, 1, 1], [], []>} : vector<8x128xf32>, vector<128x384xf32>, vector<8x384xf32> -> vector<8x384xf32>
    %352 = vector.extract_strided_slice %350 {offsets = [0, 0], sizes = [8, 128], strides = [1, 1]} : vector<8x384xf32> to vector<8x128xf32>
    %353 = vector.extract_strided_slice %351 {offsets = [0, 0], sizes = [8, 128], strides = [1, 1]} : vector<8x384xf32> to vector<8x128xf32>
    %354 = arith.addf %352, %353 : vector<8x128xf32>
    %355 = arith.negf %354 : vector<8x128xf32>
    %356 = math.exp %355 : vector<8x128xf32>
    %cst_72 = arith.constant 1.000000e+00 : f32
    %357 = vector.broadcast %cst_72 : f32 to vector<8x128xf32>
    %358 = arith.addf %357, %356 : vector<8x128xf32>
    %359 = arith.divf %357, %358 : vector<8x128xf32>
    %360 = vector.extract_strided_slice %350 {offsets = [0, 128], sizes = [8, 128], strides = [1, 1]} : vector<8x384xf32> to vector<8x128xf32>
    %361 = vector.extract_strided_slice %351 {offsets = [0, 128], sizes = [8, 128], strides = [1, 1]} : vector<8x384xf32> to vector<8x128xf32>
    %362 = arith.addf %360, %361 : vector<8x128xf32>
    %363 = arith.negf %362 : vector<8x128xf32>
    %364 = math.exp %363 : vector<8x128xf32>
    %cst_73 = arith.constant 1.000000e+00 : f32
    %365 = vector.broadcast %cst_73 : f32 to vector<8x128xf32>
    %366 = arith.addf %365, %364 : vector<8x128xf32>
    %367 = arith.divf %365, %366 : vector<8x128xf32>
    %368 = vector.extract_strided_slice %350 {offsets = [0, 256], sizes = [8, 128], strides = [1, 1]} : vector<8x384xf32> to vector<8x128xf32>
    %369 = vector.extract_strided_slice %351 {offsets = [0, 256], sizes = [8, 128], strides = [1, 1]} : vector<8x384xf32> to vector<8x128xf32>
    %370 = arith.addf %369, %260 : vector<8x128xf32>
    %371 = arith.mulf %359, %370 : vector<8x128xf32>
    %372 = arith.addf %368, %371 : vector<8x128xf32>
    %373 = math.tanh %372 : vector<8x128xf32>
    %cst_74 = arith.constant 1.000000e+00 : f32
    %374 = vector.broadcast %cst_74 : f32 to vector<8x128xf32>
    %375 = arith.subf %374, %367 : vector<8x128xf32>
    %376 = arith.mulf %375, %373 : vector<8x128xf32>
    %377 = arith.mulf %367, %349 : vector<8x128xf32>
    %378 = arith.addf %376, %377 : vector<8x128xf32>
    %379 = vector.extract_strided_slice %256 {offsets = [32, 0], sizes = [8, 384], strides = [1, 1]} : vector<64x384xf32> to vector<8x384xf32>
    %cst_75 = arith.constant dense<0.000000e+00> : vector<8x384xf32>
    %380 = tpu.matmul %378, %257, %cst_75 {dimension_numbers = #tpu.dot_dimension_numbers<[1], [0], [0], [1], [0, 0, 1, 1], [], []>} : vector<8x128xf32>, vector<128x384xf32>, vector<8x384xf32> -> vector<8x384xf32>
    %381 = vector.extract_strided_slice %379 {offsets = [0, 0], sizes = [8, 128], strides = [1, 1]} : vector<8x384xf32> to vector<8x128xf32>
    %382 = vector.extract_strided_slice %380 {offsets = [0, 0], sizes = [8, 128], strides = [1, 1]} : vector<8x384xf32> to vector<8x128xf32>
    %383 = arith.addf %381, %382 : vector<8x128xf32>
    %384 = arith.negf %383 : vector<8x128xf32>
    %385 = math.exp %384 : vector<8x128xf32>
    %cst_76 = arith.constant 1.000000e+00 : f32
    %386 = vector.broadcast %cst_76 : f32 to vector<8x128xf32>
    %387 = arith.addf %386, %385 : vector<8x128xf32>
    %388 = arith.divf %386, %387 : vector<8x128xf32>
    %389 = vector.extract_strided_slice %379 {offsets = [0, 128], sizes = [8, 128], strides = [1, 1]} : vector<8x384xf32> to vector<8x128xf32>
    %390 = vector.extract_strided_slice %380 {offsets = [0, 128], sizes = [8, 128], strides = [1, 1]} : vector<8x384xf32> to vector<8x128xf32>
    %391 = arith.addf %389, %390 : vector<8x128xf32>
    %392 = arith.negf %391 : vector<8x128xf32>
    %393 = math.exp %392 : vector<8x128xf32>
    %cst_77 = arith.constant 1.000000e+00 : f32
    %394 = vector.broadcast %cst_77 : f32 to vector<8x128xf32>
    %395 = arith.addf %394, %393 : vector<8x128xf32>
    %396 = arith.divf %394, %395 : vector<8x128xf32>
    %397 = vector.extract_strided_slice %379 {offsets = [0, 256], sizes = [8, 128], strides = [1, 1]} : vector<8x384xf32> to vector<8x128xf32>
    %398 = vector.extract_strided_slice %380 {offsets = [0, 256], sizes = [8, 128], strides = [1, 1]} : vector<8x384xf32> to vector<8x128xf32>
    %399 = arith.addf %398, %260 : vector<8x128xf32>
    %400 = arith.mulf %388, %399 : vector<8x128xf32>
    %401 = arith.addf %397, %400 : vector<8x128xf32>
    %402 = math.tanh %401 : vector<8x128xf32>
    %cst_78 = arith.constant 1.000000e+00 : f32
    %403 = vector.broadcast %cst_78 : f32 to vector<8x128xf32>
    %404 = arith.subf %403, %396 : vector<8x128xf32>
    %405 = arith.mulf %404, %402 : vector<8x128xf32>
    %406 = arith.mulf %396, %378 : vector<8x128xf32>
    %407 = arith.addf %405, %406 : vector<8x128xf32>
    %408 = vector.extract_strided_slice %256 {offsets = [40, 0], sizes = [8, 384], strides = [1, 1]} : vector<64x384xf32> to vector<8x384xf32>
    %cst_79 = arith.constant dense<0.000000e+00> : vector<8x384xf32>
    %409 = tpu.matmul %407, %257, %cst_79 {dimension_numbers = #tpu.dot_dimension_numbers<[1], [0], [0], [1], [0, 0, 1, 1], [], []>} : vector<8x128xf32>, vector<128x384xf32>, vector<8x384xf32> -> vector<8x384xf32>
    %410 = vector.extract_strided_slice %408 {offsets = [0, 0], sizes = [8, 128], strides = [1, 1]} : vector<8x384xf32> to vector<8x128xf32>
    %411 = vector.extract_strided_slice %409 {offsets = [0, 0], sizes = [8, 128], strides = [1, 1]} : vector<8x384xf32> to vector<8x128xf32>
    %412 = arith.addf %410, %411 : vector<8x128xf32>
    %413 = arith.negf %412 : vector<8x128xf32>
    %414 = math.exp %413 : vector<8x128xf32>
    %cst_80 = arith.constant 1.000000e+00 : f32
    %415 = vector.broadcast %cst_80 : f32 to vector<8x128xf32>
    %416 = arith.addf %415, %414 : vector<8x128xf32>
    %417 = arith.divf %415, %416 : vector<8x128xf32>
    %418 = vector.extract_strided_slice %408 {offsets = [0, 128], sizes = [8, 128], strides = [1, 1]} : vector<8x384xf32> to vector<8x128xf32>
    %419 = vector.extract_strided_slice %409 {offsets = [0, 128], sizes = [8, 128], strides = [1, 1]} : vector<8x384xf32> to vector<8x128xf32>
    %420 = arith.addf %418, %419 : vector<8x128xf32>
    %421 = arith.negf %420 : vector<8x128xf32>
    %422 = math.exp %421 : vector<8x128xf32>
    %cst_81 = arith.constant 1.000000e+00 : f32
    %423 = vector.broadcast %cst_81 : f32 to vector<8x128xf32>
    %424 = arith.addf %423, %422 : vector<8x128xf32>
    %425 = arith.divf %423, %424 : vector<8x128xf32>
    %426 = vector.extract_strided_slice %408 {offsets = [0, 256], sizes = [8, 128], strides = [1, 1]} : vector<8x384xf32> to vector<8x128xf32>
    %427 = vector.extract_strided_slice %409 {offsets = [0, 256], sizes = [8, 128], strides = [1, 1]} : vector<8x384xf32> to vector<8x128xf32>
    %428 = arith.addf %427, %260 : vector<8x128xf32>
    %429 = arith.mulf %417, %428 : vector<8x128xf32>
    %430 = arith.addf %426, %429 : vector<8x128xf32>
    %431 = math.tanh %430 : vector<8x128xf32>
    %cst_82 = arith.constant 1.000000e+00 : f32
    %432 = vector.broadcast %cst_82 : f32 to vector<8x128xf32>
    %433 = arith.subf %432, %425 : vector<8x128xf32>
    %434 = arith.mulf %433, %431 : vector<8x128xf32>
    %435 = arith.mulf %425, %407 : vector<8x128xf32>
    %436 = arith.addf %434, %435 : vector<8x128xf32>
    %437 = vector.extract_strided_slice %256 {offsets = [48, 0], sizes = [8, 384], strides = [1, 1]} : vector<64x384xf32> to vector<8x384xf32>
    %cst_83 = arith.constant dense<0.000000e+00> : vector<8x384xf32>
    %438 = tpu.matmul %436, %257, %cst_83 {dimension_numbers = #tpu.dot_dimension_numbers<[1], [0], [0], [1], [0, 0, 1, 1], [], []>} : vector<8x128xf32>, vector<128x384xf32>, vector<8x384xf32> -> vector<8x384xf32>
    %439 = vector.extract_strided_slice %437 {offsets = [0, 0], sizes = [8, 128], strides = [1, 1]} : vector<8x384xf32> to vector<8x128xf32>
    %440 = vector.extract_strided_slice %438 {offsets = [0, 0], sizes = [8, 128], strides = [1, 1]} : vector<8x384xf32> to vector<8x128xf32>
    %441 = arith.addf %439, %440 : vector<8x128xf32>
    %442 = arith.negf %441 : vector<8x128xf32>
    %443 = math.exp %442 : vector<8x128xf32>
    %cst_84 = arith.constant 1.000000e+00 : f32
    %444 = vector.broadcast %cst_84 : f32 to vector<8x128xf32>
    %445 = arith.addf %444, %443 : vector<8x128xf32>
    %446 = arith.divf %444, %445 : vector<8x128xf32>
    %447 = vector.extract_strided_slice %437 {offsets = [0, 128], sizes = [8, 128], strides = [1, 1]} : vector<8x384xf32> to vector<8x128xf32>
    %448 = vector.extract_strided_slice %438 {offsets = [0, 128], sizes = [8, 128], strides = [1, 1]} : vector<8x384xf32> to vector<8x128xf32>
    %449 = arith.addf %447, %448 : vector<8x128xf32>
    %450 = arith.negf %449 : vector<8x128xf32>
    %451 = math.exp %450 : vector<8x128xf32>
    %cst_85 = arith.constant 1.000000e+00 : f32
    %452 = vector.broadcast %cst_85 : f32 to vector<8x128xf32>
    %453 = arith.addf %452, %451 : vector<8x128xf32>
    %454 = arith.divf %452, %453 : vector<8x128xf32>
    %455 = vector.extract_strided_slice %437 {offsets = [0, 256], sizes = [8, 128], strides = [1, 1]} : vector<8x384xf32> to vector<8x128xf32>
    %456 = vector.extract_strided_slice %438 {offsets = [0, 256], sizes = [8, 128], strides = [1, 1]} : vector<8x384xf32> to vector<8x128xf32>
    %457 = arith.addf %456, %260 : vector<8x128xf32>
    %458 = arith.mulf %446, %457 : vector<8x128xf32>
    %459 = arith.addf %455, %458 : vector<8x128xf32>
    %460 = math.tanh %459 : vector<8x128xf32>
    %cst_86 = arith.constant 1.000000e+00 : f32
    %461 = vector.broadcast %cst_86 : f32 to vector<8x128xf32>
    %462 = arith.subf %461, %454 : vector<8x128xf32>
    %463 = arith.mulf %462, %460 : vector<8x128xf32>
    %464 = arith.mulf %454, %436 : vector<8x128xf32>
    %465 = arith.addf %463, %464 : vector<8x128xf32>
    %466 = vector.extract_strided_slice %256 {offsets = [56, 0], sizes = [8, 384], strides = [1, 1]} : vector<64x384xf32> to vector<8x384xf32>
    %cst_87 = arith.constant dense<0.000000e+00> : vector<8x384xf32>
    %467 = tpu.matmul %465, %257, %cst_87 {dimension_numbers = #tpu.dot_dimension_numbers<[1], [0], [0], [1], [0, 0, 1, 1], [], []>} : vector<8x128xf32>, vector<128x384xf32>, vector<8x384xf32> -> vector<8x384xf32>
    %468 = vector.extract_strided_slice %466 {offsets = [0, 0], sizes = [8, 128], strides = [1, 1]} : vector<8x384xf32> to vector<8x128xf32>
    %469 = vector.extract_strided_slice %467 {offsets = [0, 0], sizes = [8, 128], strides = [1, 1]} : vector<8x384xf32> to vector<8x128xf32>
    %470 = arith.addf %468, %469 : vector<8x128xf32>
    %471 = arith.negf %470 : vector<8x128xf32>
    %472 = math.exp %471 : vector<8x128xf32>
    %cst_88 = arith.constant 1.000000e+00 : f32
    %473 = vector.broadcast %cst_88 : f32 to vector<8x128xf32>
    %474 = arith.addf %473, %472 : vector<8x128xf32>
    %475 = arith.divf %473, %474 : vector<8x128xf32>
    %476 = vector.extract_strided_slice %466 {offsets = [0, 128], sizes = [8, 128], strides = [1, 1]} : vector<8x384xf32> to vector<8x128xf32>
    %477 = vector.extract_strided_slice %467 {offsets = [0, 128], sizes = [8, 128], strides = [1, 1]} : vector<8x384xf32> to vector<8x128xf32>
    %478 = arith.addf %476, %477 : vector<8x128xf32>
    %479 = arith.negf %478 : vector<8x128xf32>
    %480 = math.exp %479 : vector<8x128xf32>
    %cst_89 = arith.constant 1.000000e+00 : f32
    %481 = vector.broadcast %cst_89 : f32 to vector<8x128xf32>
    %482 = arith.addf %481, %480 : vector<8x128xf32>
    %483 = arith.divf %481, %482 : vector<8x128xf32>
    %484 = vector.extract_strided_slice %466 {offsets = [0, 256], sizes = [8, 128], strides = [1, 1]} : vector<8x384xf32> to vector<8x128xf32>
    %485 = vector.extract_strided_slice %467 {offsets = [0, 256], sizes = [8, 128], strides = [1, 1]} : vector<8x384xf32> to vector<8x128xf32>
    %486 = arith.addf %485, %260 : vector<8x128xf32>
    %487 = arith.mulf %475, %486 : vector<8x128xf32>
    %488 = arith.addf %484, %487 : vector<8x128xf32>
    %489 = math.tanh %488 : vector<8x128xf32>
    %cst_90 = arith.constant 1.000000e+00 : f32
    %490 = vector.broadcast %cst_90 : f32 to vector<8x128xf32>
    %491 = arith.subf %490, %483 : vector<8x128xf32>
    %492 = arith.mulf %491, %489 : vector<8x128xf32>
    %493 = arith.mulf %483, %465 : vector<8x128xf32>
    %494 = arith.addf %492, %493 : vector<8x128xf32>
    %c1_91 = arith.constant 1 : index
    %c0_92 = arith.constant 0 : index
    %c0_93 = arith.constant 0 : index
    %495 = vector.load %arg15[%c1_91, %c0_92, %c0_93] : memref<2x8x128xf32, #tpu.memory_space<vmem>>, vector<1x8x128xf32>
    %496 = vector.shape_cast %495 : vector<1x8x128xf32> to vector<8x128xf32>
    %497 = vector.shape_cast %494 : vector<8x128xf32> to vector<1x8x128xf32>
    tpu.vector_store %arg15[%c1_91, %c0_92, %c0_93], %497 {strides = array<i32>} : memref<2x8x128xf32, #tpu.memory_space<vmem>>, vector<1x8x128xf32>,
    %c0_i32_94 = arith.constant 0 : i32
    %498 = arith.cmpi eq, %arg0, %c0_i32_94 : i32
    %499 = arith.extui %498 : i1 to i32
    %c0_i32_95 = arith.constant 0 : i32
    %500 = arith.cmpi ne, %499, %c0_i32_95 : i32
    scf.if %500 {
      %cst_96 = arith.constant dense<0.000000e+00> : vector<8xf32>
      %501 = vector.multi_reduction <add>, %494, %cst_96 [1] : vector<8x128xf32> to vector<8xf32>
      %502 = vector.shape_cast %501 : vector<8xf32> to vector<8x1xf32>
      %cst_97 = arith.constant 3.125000e-02 : f32
      %503 = vector.broadcast %cst_97 : f32 to vector<8x1xf32>
      %504 = arith.mulf %502, %503 : vector<8x1xf32>
      %505 = arith.mulf %494, %494 : vector<8x128xf32>
      %cst_98 = arith.constant dense<0.000000e+00> : vector<8xf32>
      %506 = vector.multi_reduction <add>, %505, %cst_98 [1] : vector<8x128xf32> to vector<8xf32>
      %507 = vector.shape_cast %506 : vector<8xf32> to vector<8x1xf32>
      %cst_99 = arith.constant 3.125000e-02 : f32
      %508 = vector.broadcast %cst_99 : f32 to vector<8x1xf32>
      %509 = arith.mulf %507, %508 : vector<8x1xf32>
      %510 = arith.mulf %504, %504 : vector<8x1xf32>
      %511 = arith.subf %509, %510 : vector<8x1xf32>
      %cst_100 = arith.constant 0.000000e+00 : f32
      %512 = vector.broadcast %cst_100 : f32 to vector<8x1xf32>
      %513 = arith.maximumf %511, %512 : vector<8x1xf32>
      %514 = vector.broadcast %504 : vector<8x1xf32> to vector<8x128xf32>
      %515 = arith.subf %494, %514 : vector<8x128xf32>
      %cst_101 = arith.constant 9.99999974E-6 : f32
      %516 = vector.broadcast %cst_101 : f32 to vector<8x1xf32>
      %517 = arith.addf %513, %516 : vector<8x1xf32>
      %518 = math.rsqrt %517 : vector<8x1xf32>
      %519 = vector.broadcast %518 : vector<8x1xf32> to vector<8x128xf32>
      %520 = arith.mulf %515, %519 : vector<8x128xf32>
      %c0_102 = arith.constant 0 : index
      %c0_103 = arith.constant 0 : index
      %521 = vector.load %arg10[%c0_102, %c0_103] : memref<1x128xf32, #tpu.memory_space<vmem>>, vector<1x128xf32>
      %522 = vector.broadcast %521 : vector<1x128xf32> to vector<8x128xf32>
      %523 = arith.mulf %520, %522 : vector<8x128xf32>
      %c0_104 = arith.constant 0 : index
      %c0_105 = arith.constant 0 : index
      %524 = vector.load %arg11[%c0_104, %c0_105] : memref<1x128xf32, #tpu.memory_space<vmem>>, vector<1x128xf32>
      %525 = vector.broadcast %524 : vector<1x128xf32> to vector<8x128xf32>
      %526 = arith.addf %523, %525 : vector<8x128xf32>
      %527 = arith.truncf %526 : vector<8x128xf32> to vector<8x128xbf16>
      %c0_106 = arith.constant 0 : index
      %c0_107 = arith.constant 0 : index
      %528 = vector.load %arg12[%c0_106, %c0_107] : memref<128x128xbf16, #tpu.memory_space<vmem>>, vector<128x128xbf16>
      %cst_108 = arith.constant dense<0.000000e+00> : vector<8x128xf32>
      %529 = tpu.matmul %527, %528, %cst_108 {dimension_numbers = #tpu.dot_dimension_numbers<[1], [0], [0], [1], [0, 0, 1, 1], [], []>} : vector<8x128xbf16>, vector<128x128xbf16>, vector<8x128xf32> -> vector<8x128xf32>
      %c0_109 = arith.constant 0 : index
      %c0_110 = arith.constant 0 : index
      %530 = vector.load %arg13[%c0_109, %c0_110] : memref<1x128xf32, #tpu.memory_space<vmem>>, vector<1x128xf32>
      %531 = vector.broadcast %530 : vector<1x128xf32> to vector<8x128xf32>
      %532 = arith.addf %529, %531 : vector<8x128xf32>
      %c0_111 = arith.constant 0 : index
      %c0_112 = arith.constant 0 : index
      %533 = vector.load %arg14[%c0_111, %c0_112] : memref<8x128xf32, #tpu.memory_space<vmem>>, vector<8x128xf32>
      tpu.vector_store %arg14[%c0_111, %c0_112], %532 {strides = array<i32>} : memref<8x128xf32, #tpu.memory_space<vmem>>, vector<8x128xf32>,
    } else {
    }
    return
  }
  func.func @transform_0(%arg0: i32) -> (i32, i32) {
    %c0_i32 = arith.constant 0 : i32
    %c0_i32_0 = arith.constant 0 : i32
    return %arg0, %c0_i32 : i32, i32
  }
  func.func @transform_1(%arg0: i32) -> (i32, i32) {
    %c0_i32 = arith.constant 0 : i32
    %c0_i32_0 = arith.constant 0 : i32
    %c0_i32_1 = arith.constant 0 : i32
    return %c0_i32, %c0_i32_0 : i32, i32
  }
  func.func @transform_2(%arg0: i32) -> (i32, i32) {
    %c0_i32 = arith.constant 0 : i32
    %c0_i32_0 = arith.constant 0 : i32
    %c0_i32_1 = arith.constant 0 : i32
    return %c0_i32, %c0_i32_0 : i32, i32
  }
  func.func @transform_3(%arg0: i32) -> (i32, i32) {
    %c0_i32 = arith.constant 0 : i32
    %c0_i32_0 = arith.constant 0 : i32
    %c0_i32_1 = arith.constant 0 : i32
    return %c0_i32, %c0_i32_0 : i32, i32
  }
  func.func @transform_4(%arg0: i32) -> (i32, i32) {
    %c0_i32 = arith.constant 0 : i32
    %c0_i32_0 = arith.constant 0 : i32
    %c0_i32_1 = arith.constant 0 : i32
    return %c0_i32, %c0_i32_0 : i32, i32
  }
  func.func @transform_5(%arg0: i32) -> (i32, i32) {
    %c0_i32 = arith.constant 0 : i32
    %c0_i32_0 = arith.constant 0 : i32
    %c0_i32_1 = arith.constant 0 : i32
    return %c0_i32, %c0_i32_0 : i32, i32
  }
  func.func @transform_6(%arg0: i32) -> (i32, i32) {
    %c0_i32 = arith.constant 0 : i32
    %c0_i32_0 = arith.constant 0 : i32
    %c0_i32_1 = arith.constant 0 : i32
    return %c0_i32, %c0_i32_0 : i32, i32
  }
  func.func @transform_7(%arg0: i32) -> (i32, i32) {
    %c0_i32 = arith.constant 0 : i32
    %c0_i32_0 = arith.constant 0 : i32
    %c0_i32_1 = arith.constant 0 : i32
    return %c0_i32, %c0_i32_0 : i32, i32
  }
  func.func @transform_8(%arg0: i32) -> (i32, i32) {
    %c0_i32 = arith.constant 0 : i32
    %c0_i32_0 = arith.constant 0 : i32
    %c0_i32_1 = arith.constant 0 : i32
    return %c0_i32, %c0_i32_0 : i32, i32
  }
  func.func @transform_9(%arg0: i32) -> (i32, i32) {
    %c0_i32 = arith.constant 0 : i32
    %c0_i32_0 = arith.constant 0 : i32
    %c0_i32_1 = arith.constant 0 : i32
    return %c0_i32, %c0_i32_0 : i32, i32
  }
  func.func @transform_10(%arg0: i32) -> (i32, i32) {
    %c0_i32 = arith.constant 0 : i32
    %c0_i32_0 = arith.constant 0 : i32
    %c0_i32_1 = arith.constant 0 : i32
    return %c0_i32, %c0_i32_0 : i32, i32
  }
  func.func @transform_11(%arg0: i32) -> (i32, i32) {
    %c0_i32 = arith.constant 0 : i32
    %c0_i32_0 = arith.constant 0 : i32
    %c0_i32_1 = arith.constant 0 : i32
    return %c0_i32, %c0_i32_0 : i32, i32
  }
  func.func @transform_12(%arg0: i32) -> (i32, i32) {
    %c0_i32 = arith.constant 0 : i32
    %c0_i32_0 = arith.constant 0 : i32
    %c0_i32_1 = arith.constant 0 : i32
    return %c0_i32, %c0_i32_0 : i32, i32
  }
  func.func @transform_13(%arg0: i32) -> (i32, i32) {
    %c0_i32 = arith.constant 0 : i32
    %c0_i32_0 = arith.constant 0 : i32
    %c0_i32_1 = arith.constant 0 : i32
    return %c0_i32, %c0_i32_0 : i32, i32
  }
}

</mosaic_0001>

<llo_original>
// kernel: rem_forward.1
$region0: #{rem_forward.1}
  #allocation0 [shape = 'u32[]', space=smem, size = 0x4, offset = 0x4, fixed_abs, tag = 'smem constant byte address 0x4 - core index']
  #allocation1 [shape = 'u32[72,128]{1,0:T(1,128)}', space=vmem, size = 0x9000, scoped, tag = 'internal scratch']
  #allocation2 [shape = 'f32[2,8,128]{2,1,0:T(8,128)}', space=vmem, size = 0x2000, scoped, tag = 'scratch operand']
  %s0 = inlined_call_operand.vmem [shape: bf16[64,128], index: 0, kind: input, shape index: {}]
  %s1 = inlined_call_operand.hbm [shape: bf16[128,384], index: 1, kind: input, shape index: {}]
  %s2 = inlined_call_operand.hbm [shape: f32[128,384], index: 2, kind: input, shape index: {}]
  %s3 = inlined_call_operand.vmem [shape: f32[1,384], index: 3, kind: input, shape index: {}]
  %s4 = inlined_call_operand.vmem [shape: f32[1,128], index: 4, kind: input, shape index: {}]
  %s5 = inlined_call_operand.hbm [shape: bf16[128,384], index: 5, kind: input, shape index: {}]
  %s6 = inlined_call_operand.hbm [shape: f32[128,384], index: 6, kind: input, shape index: {}]
  %s7 = inlined_call_operand.vmem [shape: f32[1,384], index: 7, kind: input, shape index: {}]
  %s8 = inlined_call_operand.vmem [shape: f32[1,128], index: 8, kind: input, shape index: {}]
  %s9 = inlined_call_operand.vmem [shape: f32[1,128], index: 9, kind: input, shape index: {}]
  %s10 = inlined_call_operand.vmem [shape: f32[1,128], index: 10, kind: input, shape index: {}]
  %s11 = inlined_call_operand.vmem [shape: bf16[128,128], index: 11, kind: input, shape index: {}]
  %s12 = inlined_call_operand.vmem [shape: f32[1,128], index: 12, kind: input, shape index: {}]
  %s13 = inlined_call_operand.vmem [shape: f32[8,128], index: 13, kind: output, shape index: {}]
  %s14 = sld [smem:[#allocation0]]
  $region86: #{rem_forward.1} parent=0
    _
  %s16 = ssub.s32 1, %s14
  %s17 = scalar_select 0, %s16, %s14
  $region1: #{rem_forward.1} parent=0
    #allocation3 [shape = 'u8[98304]{0}', space=vmem, size = 0x18000, scoped, tag = 'input window, operand 1, single buffered']
    #allocation4 [shape = 's32[1]{0}', space=sflag, size = 0x4, scoped, tag = 'scoped memory for rem_forward.1']
    #allocation5 [shape = 'u8[196608]{0}', space=vmem, size = 0x30000, scoped, tag = 'input window, operand 2, single buffered']
    #allocation6 [shape = 's32[1]{0}', space=sflag, size = 0x4, scoped, tag = 'scoped memory for rem_forward.1']
    #allocation7 [shape = 'u8[98304]{0}', space=vmem, size = 0x18000, scoped, tag = 'input window, operand 5, single buffered']
    #allocation8 [shape = 'u8[196608]{0}', space=vmem, size = 0x30000, scoped, tag = 'input window, operand 6, single buffered']
    #allocation9 [shape = 's32[1]{0}', space=sflag, size = 0x4, scoped, tag = 'scoped memory for rem_forward.1']
    %18 = vsyncpa [#allocation4], 0
    %19 = vsyncpa [#allocation6], 0
    %20 = vsyncpa [#allocation9], 0
    // Predicated region
    $region2: #{rem_forward.1} parent=1 // pred_check
      _
    $region3: #{rem_forward.1} parent=1 // pred_check_branch
      %22 = sbr.rel (0) target = $region5
    $region4: #{rem_forward.1} parent=1 // pred_region
      _
    $region5: #{rem_forward.1} parent=1 // pred_fallthru
      _
    // Predicated region
    $region6: #{rem_forward.1} parent=1 // pred_check
      _
    $region7: #{rem_forward.1} parent=1 // pred_check_branch
      %24 = sbr.rel (0) target = $region9
    $region8: #{rem_forward.1} parent=1 // pred_region
      %26 = vsyncadd [#allocation4], 0
      %s27 = sshll.u32 %s1, 4
      %s28 = int_to_ptr.hbm [resolvable:$true] %s27
      %s29 = sshll.u32 [#allocation3], 4
      %s30 = int_to_ptr.vmem [resolvable:$true] %s29
      %35 = dma.hbm_to_vmem [thread:$0]  %s28, 3072, %s30, [#allocation4], 192, 192, 12
    $region9: #{rem_forward.1} parent=1 // pred_fallthru
      _
    // Predicated region
    $region10: #{rem_forward.1} parent=1 // pred_check
      _
    $region11: #{rem_forward.1} parent=1 // pred_check_branch
      %37 = sbr.rel (0) target = $region13
    $region12: #{rem_forward.1} parent=1 // pred_region
      %39 = vsyncadd [#allocation6], 0
      %s40 = sshll.u32 %s2, 4
      %s41 = int_to_ptr.hbm [resolvable:$true] %s40
      %s42 = sshll.u32 [#allocation5], 4
      %s43 = int_to_ptr.vmem [resolvable:$true] %s42
      %48 = dma.hbm_to_vmem [thread:$0]  %s41, 6144, %s43, [#allocation6], 384, 384, 24
    $region13: #{rem_forward.1} parent=1 // pred_fallthru
      _
    // Predicated region
    $region14: #{rem_forward.1} parent=1 // pred_check
      _
    $region15: #{rem_forward.1} parent=1 // pred_check_branch
      %50 = sbr.rel (0) target = $region17
    $region16: #{rem_forward.1} parent=1 // pred_region
      _
    $region17: #{rem_forward.1} parent=1 // pred_fallthru
      _
    // Predicated region
    $region18: #{rem_forward.1} parent=1 // pred_check
      _
    $region19: #{rem_forward.1} parent=1 // pred_check_branch
      %52 = sbr.rel (0) target = $region21
    $region20: #{rem_forward.1} parent=1 // pred_region
      _
    $region21: #{rem_forward.1} parent=1 // pred_fallthru
      _
    // Predicated region
    $region22: #{rem_forward.1} parent=1 // pred_check
      _
    $region23: #{rem_forward.1} parent=1 // pred_check_branch
      %54 = sbr.rel (0) target = $region25
    $region24: #{rem_forward.1} parent=1 // pred_region
      %56 = vsyncadd [#allocation6], 0
      %s57 = sshll.u32 %s5, 4
      %s58 = int_to_ptr.hbm [resolvable:$true] %s57
      %s59 = sshll.u32 [#allocation7], 4
      %s60 = int_to_ptr.vmem [resolvable:$true] %s59
      %65 = dma.hbm_to_vmem [thread:$0]  %s58, 3072, %s60, [#allocation6], 192, 192, 12
    $region25: #{rem_forward.1} parent=1 // pred_fallthru
      _
    // Predicated region
    $region26: #{rem_forward.1} parent=1 // pred_check
      _
    $region27: #{rem_forward.1} parent=1 // pred_check_branch
      %67 = sbr.rel (0) target = $region29
    $region28: #{rem_forward.1} parent=1 // pred_region
      %69 = vsyncadd [#allocation9], 0
      %s70 = sshll.u32 %s6, 4
      %s71 = int_to_ptr.hbm [resolvable:$true] %s70
      %s72 = sshll.u32 [#allocation8], 4
      %s73 = int_to_ptr.vmem [resolvable:$true] %s72
      %78 = dma.hbm_to_vmem [thread:$0]  %s71, 6144, %s73, [#allocation9], 384, 384, 24
    $region29: #{rem_forward.1} parent=1 // pred_fallthru
      _
    // Predicated region
    $region30: #{rem_forward.1} parent=1 // pred_check
      _
    $region31: #{rem_forward.1} parent=1 // pred_check_branch
      %80 = sbr.rel (0) target = $region33
    $region32: #{rem_forward.1} parent=1 // pred_region
      _
    $region33: #{rem_forward.1} parent=1 // pred_fallthru
      _
    // Predicated region
    $region34: #{rem_forward.1} parent=1 // pred_check
      _
    $region35: #{rem_forward.1} parent=1 // pred_check_branch
      %82 = sbr.rel (0) target = $region37
    $region36: #{rem_forward.1} parent=1 // pred_region
      _
    $region37: #{rem_forward.1} parent=1 // pred_fallthru
      _
    // Predicated region
    $region38: #{rem_forward.1} parent=1 // pred_check
      _
    $region39: #{rem_forward.1} parent=1 // pred_check_branch
      %84 = sbr.rel (0) target = $region41
    $region40: #{rem_forward.1} parent=1 // pred_region
      _
    $region41: #{rem_forward.1} parent=1 // pred_fallthru
      _
    // Predicated region
    $region42: #{rem_forward.1} parent=1 // pred_check
      _
    $region43: #{rem_forward.1} parent=1 // pred_check_branch
      %86 = sbr.rel (0) target = $region45
    $region44: #{rem_forward.1} parent=1 // pred_region
      _
    $region45: #{rem_forward.1} parent=1 // pred_fallthru
      _
    // Predicated region
    $region46: #{rem_forward.1} parent=1 // pred_check
      _
    $region47: #{rem_forward.1} parent=1 // pred_check_branch
      %88 = sbr.rel (0) target = $region49
    $region48: #{rem_forward.1} parent=1 // pred_region
      _
    $region49: #{rem_forward.1} parent=1 // pred_fallthru
      _
    // Predicated region
    $region50: #{rem_forward.1} parent=1 // pred_check
      _
    $region51: #{rem_forward.1} parent=1 // pred_check_branch
      %90 = sbr.rel (0) target = $region53
    $region52: #{rem_forward.1} parent=1 // pred_region
      _
    $region53: #{rem_forward.1} parent=1 // pred_fallthru
      _
    // Predicated region
    $region54: #{rem_forward.1} parent=1 // pred_check
      _
    $region55: #{rem_forward.1} parent=1 // pred_check_branch
      %92 = sbr.rel (0) target = $region57
    $region56: #{rem_forward.1} parent=1 // pred_region
      %94 = dma.done [#allocation4], 3072
    $region57: #{rem_forward.1} parent=1 // pred_fallthru
      _
    // Predicated region
    $region58: #{rem_forward.1} parent=1 // pred_check
      _
    $region59: #{rem_forward.1} parent=1 // pred_check_branch
      %96 = sbr.rel (0) target = $region61
    $region60: #{rem_forward.1} parent=1 // pred_region
      %98 = dma.done [#allocation6], 6144
    $region61: #{rem_forward.1} parent=1 // pred_fallthru
      _
    // Predicated region
    $region62: #{rem_forward.1} parent=1 // pred_check
      _
    $region63: #{rem_forward.1} parent=1 // pred_check_branch
      %100 = sbr.rel (0) target = $region65
    $region64: #{rem_forward.1} parent=1 // pred_region
      %102 = dma.done [#allocation6], 3072
    $region65: #{rem_forward.1} parent=1 // pred_fallthru
      _
    // Predicated region
    $region66: #{rem_forward.1} parent=1 // pred_check
      _
    $region67: #{rem_forward.1} parent=1 // pred_check_branch
      %104 = sbr.rel (0) target = $region69
    $region68: #{rem_forward.1} parent=1 // pred_region
      %106 = dma.done [#allocation9], 6144
    $region69: #{rem_forward.1} parent=1 // pred_fallthru
      _
    %p107 = scmp.eq.s32.totalorder 0, 0
    // Predicated region
    $region70: #{rem_forward.1} parent=1 // pred_check
      %p108 = pneg %p107
    $region71: #{rem_forward.1} parent=1 // pred_check_branch
      %110 = sbr.rel (%p108) target = $region73
    $region72: #{rem_forward.1} parent=1 // pred_region
      %111 = vst [vmem:[#allocation2] sm:$0xff] 0.0
      %112 = vst [vmem:[#allocation2 + $0x8] sm:$0xff] 0.0
    $region73: #{rem_forward.1} parent=1 // pred_fallthru
      _
    %v113 = vld [vmem:[%s0] sm:$0xf]
    %v114 = vld [vmem:[%s0 + $0x4] sm:$0xf]
    %v115 = vld [vmem:[%s0 + $0x8] sm:$0xf]
    %v116 = vld [vmem:[%s0 + $0xc] sm:$0xf]
    %v117 = vld [vmem:[%s0 + $0x10] sm:$0xf]
    %v118 = vld [vmem:[%s0 + $0x14] sm:$0xf]
    %v119 = vld [vmem:[%s0 + $0x18] sm:$0xf]
    %v120 = vld [vmem:[%s0 + $0x1c] sm:$0xf]
    %v121 = vld [vmem:[#allocation3] sm:$0xff]
    %v122 = vld [vmem:[#allocation3 + $0x8] sm:$0xf]
    %v123 = vld [vmem:[#allocation3 + $0xc] sm:$0xff]
    %v124 = vld [vmem:[#allocation3 + $0x14] sm:$0xf]
    %v125 = vld [vmem:[#allocation3 + $0x18] sm:$0xff]
    %v126 = vld [vmem:[#allocation3 + $0x20] sm:$0xf]
    %v127 = vld [vmem:[#allocation3 + $0x24] sm:$0xff]
    %v128 = vld [vmem:[#allocation3 + $0x2c] sm:$0xf]
    %v129 = vld [vmem:[#allocation3 + $0x30] sm:$0xff]
    %v130 = vld [vmem:[#allocation3 + $0x38] sm:$0xf]
    %v131 = vld [vmem:[#allocation3 + $0x3c] sm:$0xff]
    %v132 = vld [vmem:[#allocation3 + $0x44] sm:$0xf]
    %v133 = vld [vmem:[#allocation3 + $0x48] sm:$0xff]
    %v134 = vld [vmem:[#allocation3 + $0x50] sm:$0xf]
    %v135 = vld [vmem:[#allocation3 + $0x54] sm:$0xff]
    %v136 = vld [vmem:[#allocation3 + $0x5c] sm:$0xf]
    %v137 = vld [vmem:[#allocation3 + $0x60] sm:$0xff]
    %v138 = vld [vmem:[#allocation3 + $0x68] sm:$0xf]
    %v139 = vld [vmem:[#allocation3 + $0x6c] sm:$0xff]
    %v140 = vld [vmem:[#allocation3 + $0x74] sm:$0xf]
    %v141 = vld [vmem:[#allocation3 + $0x78] sm:$0xff]
    %v142 = vld [vmem:[#allocation3 + $0x80] sm:$0xf]
    %v143 = vld [vmem:[#allocation3 + $0x84] sm:$0xff]
    %v144 = vld [vmem:[#allocation3 + $0x8c] sm:$0xf]
    %v145 = vld [vmem:[#allocation3 + $0x90] sm:$0xff]
    %v146 = vld [vmem:[#allocation3 + $0x98] sm:$0xf]
    %v147 = vld [vmem:[#allocation3 + $0x9c] sm:$0xff]
    %v148 = vld [vmem:[#allocation3 + $0xa4] sm:$0xf]
    %v149 = vld [vmem:[#allocation3 + $0xa8] sm:$0xff]
    %v150 = vld [vmem:[#allocation3 + $0xb0] sm:$0xf]
    %v151 = vld [vmem:[#allocation3 + $0xb4] sm:$0xff]
    %v152 = vld [vmem:[#allocation3 + $0xbc] sm:$0xf]
    %v153 = vld [vmem:[%s3] sm:$0x7]
    %v155 = vperm.slane %v153, 0
    %v156 = vperm.slane %v153, 1
    %v157 = vperm.slane %v153, 2
    %v169 = vunpack.c.l.b16 %v113
    %v170 = vunpack.c.l.b16 %v114
    %v171 = vunpack.c.l.b16 %v115
    %v172 = vunpack.c.l.b16 %v116
    %v173 = vunpack.c.l.b16 %v117
    %v174 = vunpack.c.l.b16 %v118
    %v175 = vunpack.c.l.b16 %v119
    %v176 = vunpack.c.l.b16 %v120
    %v177 = vpack.c.b16 %v170, %v169
    %v178 = vpack.c.b16 %v172, %v171
    %v179 = vpack.c.b16 %v174, %v173
    %v180 = vpack.c.b16 %v176, %v175
    %v217 = vunpack.c.l.b16 %v121
    %v218 = vunpack.c.h.b16 %v121
    %v219 = vunpack.c.l.b16 %v122
    %v220 = vunpack.c.l.b16 %v123
    %v221 = vunpack.c.h.b16 %v123
    %v222 = vunpack.c.l.b16 %v124
    %v223 = vunpack.c.l.b16 %v125
    %v224 = vunpack.c.h.b16 %v125
    %v225 = vunpack.c.l.b16 %v126
    %v226 = vunpack.c.l.b16 %v127
    %v227 = vunpack.c.h.b16 %v127
    %v228 = vunpack.c.l.b16 %v128
    %v229 = vunpack.c.l.b16 %v129
    %v230 = vunpack.c.h.b16 %v129
    %v231 = vunpack.c.l.b16 %v130
    %v232 = vunpack.c.l.b16 %v131
    %v233 = vunpack.c.h.b16 %v131
    %v234 = vunpack.c.l.b16 %v132
    %v235 = vunpack.c.l.b16 %v133
    %v236 = vunpack.c.h.b16 %v133
    %v237 = vunpack.c.l.b16 %v134
    %v238 = vunpack.c.l.b16 %v135
    %v239 = vunpack.c.h.b16 %v135
    %v240 = vunpack.c.l.b16 %v136
    %v241 = vunpack.c.l.b16 %v137
    %v242 = vunpack.c.h.b16 %v137
    %v243 = vunpack.c.l.b16 %v138
    %v244 = vunpack.c.l.b16 %v139
    %v245 = vunpack.c.h.b16 %v139
    %v246 = vunpack.c.l.b16 %v140
    %v247 = vunpack.c.l.b16 %v141
    %v248 = vunpack.c.h.b16 %v141
    %v249 = vunpack.c.l.b16 %v142
    %v250 = vunpack.c.l.b16 %v143
    %v251 = vunpack.c.h.b16 %v143
    %v252 = vunpack.c.l.b16 %v144
    %v253 = vunpack.c.l.b16 %v145
    %v254 = vunpack.c.h.b16 %v145
    %v255 = vunpack.c.l.b16 %v146
    %v256 = vunpack.c.l.b16 %v147
    %v257 = vunpack.c.h.b16 %v147
    %v258 = vunpack.c.l.b16 %v148
    %v259 = vunpack.c.l.b16 %v149
    %v260 = vunpack.c.h.b16 %v149
    %v261 = vunpack.c.l.b16 %v150
    %v262 = vunpack.c.l.b16 %v151
    %v263 = vunpack.c.h.b16 %v151
    %v264 = vunpack.c.l.b16 %v152
    %v265 = vpack.c.b16 %v220, %v217
    %v266 = vpack.c.b16 %v221, %v218
    %v267 = vpack.c.b16 %v222, %v219
    %v268 = vpack.c.b16 %v226, %v223
    %v269 = vpack.c.b16 %v227, %v224
    %v270 = vpack.c.b16 %v228, %v225
    %v271 = vpack.c.b16 %v232, %v229
    %v272 = vpack.c.b16 %v233, %v230
    %v273 = vpack.c.b16 %v234, %v231
    %v274 = vpack.c.b16 %v238, %v235
    %v275 = vpack.c.b16 %v239, %v236
    %v276 = vpack.c.b16 %v240, %v237
    %v277 = vpack.c.b16 %v244, %v241
    %v278 = vpack.c.b16 %v245, %v242
    %v279 = vpack.c.b16 %v246, %v243
    %v280 = vpack.c.b16 %v250, %v247
    %v281 = vpack.c.b16 %v251, %v248
    %v282 = vpack.c.b16 %v252, %v249
    %v283 = vpack.c.b16 %v256, %v253
    %v284 = vpack.c.b16 %v257, %v254
    %v285 = vpack.c.b16 %v258, %v255
    %v286 = vpack.c.b16 %v262, %v259
    %v287 = vpack.c.b16 %v263, %v260
    %v288 = vpack.c.b16 %v264, %v261
    %313 = vmatpush.bf16.msra.mxu0 %v286
    %314 = vmatpush.bf16.msra.mxu0 %v283
    %315 = vmatpush.bf16.msra.mxu0 %v280
    %316 = vmatpush.bf16.msra.mxu0 %v277
    %317 = vmatpush.bf16.msra.mxu0 %v274
    %318 = vmatpush.bf16.msra.mxu0 %v271
    %319 = vmatpush.bf16.msra.mxu0 %v268
    %320 = vmatpush.bf16.msra.mxu0 %v265
    %321 = vmatmul.bf16.gmra.mxu0 %v177
    %v322 = vpop.f32.mrf.mxu0
    %v323 = vadd.f32 %v155, %v322
    %v324 = vpop.f32.mrf.mxu0
    %v325 = vadd.f32 %v155, %v324
    %326 = vmatmul.bf16.gmra.mxu0 %v178
    %v327 = vpop.f32.mrf.mxu0
    %v328 = vadd.f32 %v155, %v327
    %v329 = vpop.f32.mrf.mxu0
    %v330 = vadd.f32 %v155, %v329
    %331 = vmatmul.bf16.gmra.mxu0 %v179
    %v332 = vpop.f32.mrf.mxu0
    %v333 = vadd.f32 %v155, %v332
    %v334 = vpop.f32.mrf.mxu0
    %v335 = vadd.f32 %v155, %v334
    %336 = vmatmul.bf16.gmra.mxu0 %v180
    %v337 = vpop.f32.mrf.mxu0
    %v338 = vadd.f32 %v155, %v337
    %v339 = vpop.f32.mrf.mxu0
    %v340 = vadd.f32 %v155, %v339
    %341 = vdwg.mxu0
    %342 = vmatpush.bf16.msra.mxu0 %v287
    %343 = vmatpush.bf16.msra.mxu0 %v284
    %344 = vmatpush.bf16.msra.mxu0 %v281
    %345 = vmatpush.bf16.msra.mxu0 %v278
    %346 = vmatpush.bf16.msra.mxu0 %v275
    %347 = vmatpush.bf16.msra.mxu0 %v272
    %348 = vmatpush.bf16.msra.mxu0 %v269
    %349 = vmatpush.bf16.msra.mxu0 %v266
    %350 = vmatmul.bf16.gmra.mxu0 %v177
    %v351 = vpop.f32.mrf.mxu0
    %v352 = vadd.f32 %v156, %v351
    %v353 = vpop.f32.mrf.mxu0
    %v354 = vadd.f32 %v156, %v353
    %355 = vmatmul.bf16.gmra.mxu0 %v178
    %v356 = vpop.f32.mrf.mxu0
    %v357 = vadd.f32 %v156, %v356
    %v358 = vpop.f32.mrf.mxu0
    %v359 = vadd.f32 %v156, %v358
    %360 = vmatmul.bf16.gmra.mxu0 %v179
    %v361 = vpop.f32.mrf.mxu0
    %v362 = vadd.f32 %v156, %v361
    %v363 = vpop.f32.mrf.mxu0
    %v364 = vadd.f32 %v156, %v363
    %365 = vmatmul.bf16.gmra.mxu0 %v180
    %v366 = vpop.f32.mrf.mxu0
    %v367 = vadd.f32 %v156, %v366
    %v368 = vpop.f32.mrf.mxu0
    %v369 = vadd.f32 %v156, %v368
    %370 = vdwg.mxu0
    %371 = vmatpush.bf16.msra.mxu0 %v288
    %372 = vmatpush.bf16.msra.mxu0 %v285
    %373 = vmatpush.bf16.msra.mxu0 %v282
    %374 = vmatpush.bf16.msra.mxu0 %v279
    %375 = vmatpush.bf16.msra.mxu0 %v276
    %376 = vmatpush.bf16.msra.mxu0 %v273
    %377 = vmatpush.bf16.msra.mxu0 %v270
    %378 = vmatpush.bf16.msra.mxu0 %v267
    %379 = vmatmul.bf16.gmra.mxu0 %v177
    %v380 = vpop.f32.mrf.mxu0
    %v381 = vadd.f32 %v157, %v380
    %v382 = vpop.f32.mrf.mxu0
    %v383 = vadd.f32 %v157, %v382
    %384 = vmatmul.bf16.gmra.mxu0 %v178
    %v385 = vpop.f32.mrf.mxu0
    %v386 = vadd.f32 %v157, %v385
    %v387 = vpop.f32.mrf.mxu0
    %v388 = vadd.f32 %v157, %v387
    %389 = vmatmul.bf16.gmra.mxu0 %v179
    %v390 = vpop.f32.mrf.mxu0
    %v391 = vadd.f32 %v157, %v390
    %v392 = vpop.f32.mrf.mxu0
    %v393 = vadd.f32 %v157, %v392
    %394 = vmatmul.bf16.gmra.mxu0 %v180
    %v395 = vpop.f32.mrf.mxu0
    %v396 = vadd.f32 %v157, %v395
    %v397 = vpop.f32.mrf.mxu0
    %v398 = vadd.f32 %v157, %v397
    %399 = vdwg.mxu0
    %v400 = vld [vmem:[#allocation5] sm:$0xff]
    %v401 = vld [vmem:[#allocation5 + $0x8] sm:$0xff]
    %v402 = vld [vmem:[#allocation5 + $0x10] sm:$0xff]
    %v403 = vld [vmem:[#allocation5 + $0x18] sm:$0xff]
    %v404 = vld [vmem:[#allocation5 + $0x20] sm:$0xff]
    %v405 = vld [vmem:[#allocation5 + $0x28] sm:$0xff]
    %v406 = vld [vmem:[#allocation5 + $0x30] sm:$0xff]
    %v407 = vld [vmem:[#allocation5 + $0x38] sm:$0xff]
    %v408 = vld [vmem:[#allocation5 + $0x40] sm:$0xff]
    %v409 = vld [vmem:[#allocation5 + $0x48] sm:$0xff]
    %v410 = vld [vmem:[#allocation5 + $0x50] sm:$0xff]
    %v411 = vld [vmem:[#allocation5 + $0x58] sm:$0xff]
    %v412 = vld [vmem:[#allocation5 + $0x60] sm:$0xff]
    %v413 = vld [vmem:[#allocation5 + $0x68] sm:$0xff]
    %v414 = vld [vmem:[#allocation5 + $0x70] sm:$0xff]
    %v415 = vld [vmem:[#allocation5 + $0x78] sm:$0xff]
    %v416 = vld [vmem:[#allocation5 + $0x80] sm:$0xff]
    %v417 = vld [vmem:[#allocation5 + $0x88] sm:$0xff]
    %v418 = vld [vmem:[#allocation5 + $0x90] sm:$0xff]
    %v419 = vld [vmem:[#allocation5 + $0x98] sm:$0xff]
    %v420 = vld [vmem:[#allocation5 + $0xa0] sm:$0xff]
    %v421 = vld [vmem:[#allocation5 + $0xa8] sm:$0xff]
    %v422 = vld [vmem:[#allocation5 + $0xb0] sm:$0xff]
    %v423 = vld [vmem:[#allocation5 + $0xb8] sm:$0xff]
    %v424 = vld [vmem:[#allocation5 + $0xc0] sm:$0xff]
    %v425 = vld [vmem:[#allocation5 + $0xc8] sm:$0xff]
    %v426 = vld [vmem:[#allocation5 + $0xd0] sm:$0xff]
    %v427 = vld [vmem:[#allocation5 + $0xd8] sm:$0xff]
    %v428 = vld [vmem:[#allocation5 + $0xe0] sm:$0xff]
    %v429 = vld [vmem:[#allocation5 + $0xe8] sm:$0xff]
    %v430 = vld [vmem:[#allocation5 + $0xf0] sm:$0xff]
    %v431 = vld [vmem:[#allocation5 + $0xf8] sm:$0xff]
    %v432 = vld [vmem:[#allocation5 + $0x100] sm:$0xff]
    %v433 = vld [vmem:[#allocation5 + $0x108] sm:$0xff]
    %v434 = vld [vmem:[#allocation5 + $0x110] sm:$0xff]
    %v435 = vld [vmem:[#allocation5 + $0x118] sm:$0xff]
    %v436 = vld [vmem:[#allocation5 + $0x120] sm:$0xff]
    %v437 = vld [vmem:[#allocation5 + $0x128] sm:$0xff]
    %v438 = vld [vmem:[#allocation5 + $0x130] sm:$0xff]
    %v439 = vld [vmem:[#allocation5 + $0x138] sm:$0xff]
    %v440 = vld [vmem:[#allocation5 + $0x140] sm:$0xff]
    %v441 = vld [vmem:[#allocation5 + $0x148] sm:$0xff]
    %v442 = vld [vmem:[#allocation5 + $0x150] sm:$0xff]
    %v443 = vld [vmem:[#allocation5 + $0x158] sm:$0xff]
    %v444 = vld [vmem:[#allocation5 + $0x160] sm:$0xff]
    %v445 = vld [vmem:[#allocation5 + $0x168] sm:$0xff]
    %v446 = vld [vmem:[#allocation5 + $0x170] sm:$0xff]
    %v447 = vld [vmem:[#allocation5 + $0x178] sm:$0xff]
    %v448 = vld [vmem:[%s4] sm:$0x1]
    %v450 = vperm.slane %v448, 0
    %v452 = vld [vmem:[#allocation2] sm:$0xff]
    %453 = vmatpush.msra.mxu0 %v445
    %454 = vmatpush.msra.mxu0 %v442
    %455 = vmatpush.msra.mxu0 %v439
    %456 = vmatpush.msra.mxu0 %v436
    %457 = vmatpush.msra.mxu0 %v433
    %458 = vmatpush.msra.mxu0 %v430
    %459 = vmatpush.msra.mxu0 %v427
    %460 = vmatpush.msra.mxu0 %v424
    %461 = vmatpush.msra.mxu0 %v421
    %462 = vmatpush.msra.mxu0 %v418
    %463 = vmatpush.msra.mxu0 %v415
    %464 = vmatpush.msra.mxu0 %v412
    %465 = vmatpush.msra.mxu0 %v409
    %466 = vmatpush.msra.mxu0 %v406
    %467 = vmatpush.msra.mxu0 %v403
    %468 = vmatpush.msra.mxu0 %v400
    %469 = vmatmul.f32.gmra.mxu0 %v452
    %v470 = vpop.f32.mrf.mxu0
    %v471 = vadd.f32 0.0, %v470
    %472 = vdwg.mxu0
    %473 = vmatpush.msra.mxu0 %v446
    %474 = vmatpush.msra.mxu0 %v443
    %475 = vmatpush.msra.mxu0 %v440
    %476 = vmatpush.msra.mxu0 %v437
    %477 = vmatpush.msra.mxu0 %v434
    %478 = vmatpush.msra.mxu0 %v431
    %479 = vmatpush.msra.mxu0 %v428
    %480 = vmatpush.msra.mxu0 %v425
    %481 = vmatpush.msra.mxu0 %v422
    %482 = vmatpush.msra.mxu0 %v419
    %483 = vmatpush.msra.mxu0 %v416
    %484 = vmatpush.msra.mxu0 %v413
    %485 = vmatpush.msra.mxu0 %v410
    %486 = vmatpush.msra.mxu0 %v407
    %487 = vmatpush.msra.mxu0 %v404
    %488 = vmatpush.msra.mxu0 %v401
    %489 = vmatmul.f32.gmra.mxu0 %v452
    %v490 = vpop.f32.mrf.mxu0
    %v491 = vadd.f32 0.0, %v490
    %492 = vdwg.mxu0
    %493 = vmatpush.msra.mxu0 %v447
    %494 = vmatpush.msra.mxu0 %v444
    %495 = vmatpush.msra.mxu0 %v441
    %496 = vmatpush.msra.mxu0 %v438
    %497 = vmatpush.msra.mxu0 %v435
    %498 = vmatpush.msra.mxu0 %v432
    %499 = vmatpush.msra.mxu0 %v429
    %500 = vmatpush.msra.mxu0 %v426
    %501 = vmatpush.msra.mxu0 %v423
    %502 = vmatpush.msra.mxu0 %v420
    %503 = vmatpush.msra.mxu0 %v417
    %504 = vmatpush.msra.mxu0 %v414
    %505 = vmatpush.msra.mxu0 %v411
    %506 = vmatpush.msra.mxu0 %v408
    %507 = vmatpush.msra.mxu0 %v405
    %508 = vmatpush.msra.mxu0 %v402
    %509 = vmatmul.f32.gmra.mxu0 %v452
    %v510 = vpop.f32.mrf.mxu0
    %v511 = vadd.f32 0.0, %v510
    %512 = vdwg.mxu0
    %v513 = vadd.f32 %v323, %v471
    %v514 = vxor.u32 %v513, 2147483648
    %v515 = vmul.f32 %v514, 1.442695
    %v516 = vpow.pop %v515
    %v517 = vadd.f32 %v516, 1.0
    %v518 = vrcp.pop %v517
    %v519 = vmul.f32 %v517, %v518
    %v520 = vsub.f32 1.0, %v519
    %v521 = vmul.f32 %v518, %v520
    %v522 = vadd.f32 %v518, %v521
    %vm523 = vweird.f32 %v517
    %vm524 = vweird.f32 %v518
    %vm525 = vmor %vm523, %vm524
    %v526 = vsel %vm525, %v518, %v522
    %v527 = vand.u32 2147483647, %v517
    %vm528 = vcmp.eq.f32.partialorder %v527, 8.507059e+37
    %v529 = vand.u32 %v517, 2147483648
    %v530 = vor.u32 1.1754944e-38, %v529
    %v531 = vsel %vm528, %v530, %v526
    %v532 = vmul.f32 1.0, %v531
    %v533 = vadd.f32 %v352, %v491
    %v534 = vxor.u32 %v533, 2147483648
    %v535 = vmul.f32 %v534, 1.442695
    %v536 = vpow.pop %v535
    %v537 = vadd.f32 %v536, 1.0
    %v538 = vrcp.pop %v537
    %v539 = vmul.f32 %v537, %v538
    %v540 = vsub.f32 1.0, %v539
    %v541 = vmul.f32 %v538, %v540
    %v542 = vadd.f32 %v538, %v541
    %vm543 = vweird.f32 %v537
    %vm544 = vweird.f32 %v538
    %vm545 = vmor %vm543, %vm544
    %v546 = vsel %vm545, %v538, %v542
    %v547 = vand.u32 2147483647, %v537
    %vm548 = vcmp.eq.f32.partialorder %v547, 8.507059e+37
    %v549 = vand.u32 %v537, 2147483648
    %v550 = vor.u32 1.1754944e-38, %v549
    %v551 = vsel %vm548, %v550, %v546
    %v552 = vmul.f32 1.0, %v551
    %v553 = vadd.f32 %v511, %v450
    %v554 = vmul.f32 %v532, %v553
    %v555 = vadd.f32 %v381, %v554
    %v556 = vtanh.pop %v555
    %v557 = vsub.f32 1.0, %v552
    %v558 = vmul.f32 %v557, %v556
    %v559 = vmul.f32 %v552, %v452
    %v560 = vadd.f32 %v558, %v559
    %561 = vmatpush.msra.mxu0 %v445
    %562 = vmatpush.msra.mxu0 %v442
    %563 = vmatpush.msra.mxu0 %v439
    %564 = vmatpush.msra.mxu0 %v436
    %565 = vmatpush.msra.mxu0 %v433
    %566 = vmatpush.msra.mxu0 %v430
    %567 = vmatpush.msra.mxu0 %v427
    %568 = vmatpush.msra.mxu0 %v424
    %569 = vmatpush.msra.mxu0 %v421
    %570 = vmatpush.msra.mxu0 %v418
    %571 = vmatpush.msra.mxu0 %v415
    %572 = vmatpush.msra.mxu0 %v412
    %573 = vmatpush.msra.mxu0 %v409
    %574 = vmatpush.msra.mxu0 %v406
    %575 = vmatpush.msra.mxu0 %v403
    %576 = vmatpush.msra.mxu0 %v400
    %577 = vmatmul.f32.gmra.mxu0 %v560
    %v578 = vpop.f32.mrf.mxu0
    %v579 = vadd.f32 0.0, %v578
    %580 = vdwg.mxu0
    %581 = vmatpush.msra.mxu0 %v446
    %582 = vmatpush.msra.mxu0 %v443
    %583 = vmatpush.msra.mxu0 %v440
    %584 = vmatpush.msra.mxu0 %v437
    %585 = vmatpush.msra.mxu0 %v434
    %586 = vmatpush.msra.mxu0 %v431
    %587 = vmatpush.msra.mxu0 %v428
    %588 = vmatpush.msra.mxu0 %v425
    %589 = vmatpush.msra.mxu0 %v422
    %590 = vmatpush.msra.mxu0 %v419
    %591 = vmatpush.msra.mxu0 %v416
    %592 = vmatpush.msra.mxu0 %v413
    %593 = vmatpush.msra.mxu0 %v410
    %594 = vmatpush.msra.mxu0 %v407
    %595 = vmatpush.msra.mxu0 %v404
    %596 = vmatpush.msra.mxu0 %v401
    %597 = vmatmul.f32.gmra.mxu0 %v560
    %v598 = vpop.f32.mrf.mxu0
    %v599 = vadd.f32 0.0, %v598
    %600 = vdwg.mxu0
    %601 = vmatpush.msra.mxu0 %v447
    %602 = vmatpush.msra.mxu0 %v444
    %603 = vmatpush.msra.mxu0 %v441
    %604 = vmatpush.msra.mxu0 %v438
    %605 = vmatpush.msra.mxu0 %v435
    %606 = vmatpush.msra.mxu0 %v432
    %607 = vmatpush.msra.mxu0 %v429
    %608 = vmatpush.msra.mxu0 %v426
    %609 = vmatpush.msra.mxu0 %v423
    %610 = vmatpush.msra.mxu0 %v420
    %611 = vmatpush.msra.mxu0 %v417
    %612 = vmatpush.msra.mxu0 %v414
    %613 = vmatpush.msra.mxu0 %v411
    %614 = vmatpush.msra.mxu0 %v408
    %615 = vmatpush.msra.mxu0 %v405
    %616 = vmatpush.msra.mxu0 %v402
    %617 = vmatmul.f32.gmra.mxu0 %v560
    %v618 = vpop.f32.mrf.mxu0
    %v619 = vadd.f32 0.0, %v618
    %620 = vdwg.mxu0
    %v621 = vadd.f32 %v325, %v579
    %v622 = vxor.u32 %v621, 2147483648
    %v623 = vmul.f32 %v622, 1.442695
    %v624 = vpow.pop %v623
    %v625 = vadd.f32 %v624, 1.0
    %v626 = vrcp.pop %v625
    %v627 = vmul.f32 %v625, %v626
    %v628 = vsub.f32 1.0, %v627
    %v629 = vmul.f32 %v626, %v628
    %v630 = vadd.f32 %v626, %v629
    %vm631 = vweird.f32 %v625
    %vm632 = vweird.f32 %v626
    %vm633 = vmor %vm631, %vm632
    %v634 = vsel %vm633, %v626, %v630
    %v635 = vand.u32 2147483647, %v625
    %vm636 = vcmp.eq.f32.partialorder %v635, 8.507059e+37
    %v637 = vand.u32 %v625, 2147483648
    %v638 = vor.u32 1.1754944e-38, %v637
    %v639 = vsel %vm636, %v638, %v634
    %v640 = vmul.f32 1.0, %v639
    %v641 = vadd.f32 %v354, %v599
    %v642 = vxor.u32 %v641, 2147483648
    %v643 = vmul.f32 %v642, 1.442695
    %v644 = vpow.pop %v643
    %v645 = vadd.f32 %v644, 1.0
    %v646 = vrcp.pop %v645
    %v647 = vmul.f32 %v645, %v646
    %v648 = vsub.f32 1.0, %v647
    %v649 = vmul.f32 %v646, %v648
    %v650 = vadd.f32 %v646, %v649
    %vm651 = vweird.f32 %v645
    %vm652 = vweird.f32 %v646
    %vm653 = vmor %vm651, %vm652
    %v654 = vsel %vm653, %v646, %v650
    %v655 = vand.u32 2147483647, %v645
    %vm656 = vcmp.eq.f32.partialorder %v655, 8.507059e+37
    %v657 = vand.u32 %v645, 2147483648
    %v658 = vor.u32 1.1754944e-38, %v657
    %v659 = vsel %vm656, %v658, %v654
    %v660 = vmul.f32 1.0, %v659
    %v661 = vadd.f32 %v619, %v450
    %v662 = vmul.f32 %v640, %v661
    %v663 = vadd.f32 %v383, %v662
    %v664 = vtanh.pop %v663
    %v665 = vsub.f32 1.0, %v660
    %v666 = vmul.f32 %v665, %v664
    %v667 = vmul.f32 %v660, %v560
    %v668 = vadd.f32 %v666, %v667
    %669 = vmatpush.msra.mxu0 %v445
    %670 = vmatpush.msra.mxu0 %v442
    %671 = vmatpush.msra.mxu0 %v439
    %672 = vmatpush.msra.mxu0 %v436
    %673 = vmatpush.msra.mxu0 %v433
    %674 = vmatpush.msra.mxu0 %v430
    %675 = vmatpush.msra.mxu0 %v427
    %676 = vmatpush.msra.mxu0 %v424
    %677 = vmatpush.msra.mxu0 %v421
    %678 = vmatpush.msra.mxu0 %v418
    %679 = vmatpush.msra.mxu0 %v415
    %680 = vmatpush.msra.mxu0 %v412
    %681 = vmatpush.msra.mxu0 %v409
    %682 = vmatpush.msra.mxu0 %v406
    %683 = vmatpush.msra.mxu0 %v403
    %684 = vmatpush.msra.mxu0 %v400
    %685 = vmatmul.f32.gmra.mxu0 %v668
    %v686 = vpop.f32.mrf.mxu0
    %v687 = vadd.f32 0.0, %v686
    %688 = vdwg.mxu0
    %689 = vmatpush.msra.mxu0 %v446
    %690 = vmatpush.msra.mxu0 %v443
    %691 = vmatpush.msra.mxu0 %v440
    %692 = vmatpush.msra.mxu0 %v437
    %693 = vmatpush.msra.mxu0 %v434
    %694 = vmatpush.msra.mxu0 %v431
    %695 = vmatpush.msra.mxu0 %v428
    %696 = vmatpush.msra.mxu0 %v425
    %697 = vmatpush.msra.mxu0 %v422
    %698 = vmatpush.msra.mxu0 %v419
    %699 = vmatpush.msra.mxu0 %v416
    %700 = vmatpush.msra.mxu0 %v413
    %701 = vmatpush.msra.mxu0 %v410
    %702 = vmatpush.msra.mxu0 %v407
    %703 = vmatpush.msra.mxu0 %v404
    %704 = vmatpush.msra.mxu0 %v401
    %705 = vmatmul.f32.gmra.mxu0 %v668
    %v706 = vpop.f32.mrf.mxu0
    %v707 = vadd.f32 0.0, %v706
    %708 = vdwg.mxu0
    %709 = vmatpush.msra.mxu0 %v447
    %710 = vmatpush.msra.mxu0 %v444
    %711 = vmatpush.msra.mxu0 %v441
    %712 = vmatpush.msra.mxu0 %v438
    %713 = vmatpush.msra.mxu0 %v435
    %714 = vmatpush.msra.mxu0 %v432
    %715 = vmatpush.msra.mxu0 %v429
    %716 = vmatpush.msra.mxu0 %v426
    %717 = vmatpush.msra.mxu0 %v423
    %718 = vmatpush.msra.mxu0 %v420
    %719 = vmatpush.msra.mxu0 %v417
    %720 = vmatpush.msra.mxu0 %v414
    %721 = vmatpush.msra.mxu0 %v411
    %722 = vmatpush.msra.mxu0 %v408
    %723 = vmatpush.msra.mxu0 %v405
    %724 = vmatpush.msra.mxu0 %v402
    %725 = vmatmul.f32.gmra.mxu0 %v668
    %v726 = vpop.f32.mrf.mxu0
    %v727 = vadd.f32 0.0, %v726
    %728 = vdwg.mxu0
    %v729 = vadd.f32 %v328, %v687
    %v730 = vxor.u32 %v729, 2147483648
    %v731 = vmul.f32 %v730, 1.442695
    %v732 = vpow.pop %v731
    %v733 = vadd.f32 %v732, 1.0
    %v734 = vrcp.pop %v733
    %v735 = vmul.f32 %v733, %v734
    %v736 = vsub.f32 1.0, %v735
    %v737 = vmul.f32 %v734, %v736
    %v738 = vadd.f32 %v734, %v737
    %vm739 = vweird.f32 %v733
    %vm740 = vweird.f32 %v734
    %vm741 = vmor %vm739, %vm740
    %v742 = vsel %vm741, %v734, %v738
    %v743 = vand.u32 2147483647, %v733
    %vm744 = vcmp.eq.f32.partialorder %v743, 8.507059e+37
    %v745 = vand.u32 %v733, 2147483648
    %v746 = vor.u32 1.1754944e-38, %v745
    %v747 = vsel %vm744, %v746, %v742
    %v748 = vmul.f32 1.0, %v747
    %v749 = vadd.f32 %v357, %v707
    %v750 = vxor.u32 %v749, 2147483648
    %v751 = vmul.f32 %v750, 1.442695
    %v752 = vpow.pop %v751
    %v753 = vadd.f32 %v752, 1.0
    %v754 = vrcp.pop %v753
    %v755 = vmul.f32 %v753, %v754
    %v756 = vsub.f32 1.0, %v755
    %v757 = vmul.f32 %v754, %v756
    %v758 = vadd.f32 %v754, %v757
    %vm759 = vweird.f32 %v753
    %vm760 = vweird.f32 %v754
    %vm761 = vmor %vm759, %vm760
    %v762 = vsel %vm761, %v754, %v758
    %v763 = vand.u32 2147483647, %v753
    %vm764 = vcmp.eq.f32.partialorder %v763, 8.507059e+37
    %v765 = vand.u32 %v753, 2147483648
    %v766 = vor.u32 1.1754944e-38, %v765
    %v767 = vsel %vm764, %v766, %v762
    %v768 = vmul.f32 1.0, %v767
    %v769 = vadd.f32 %v727, %v450
    %v770 = vmul.f32 %v748, %v769
    %v771 = vadd.f32 %v386, %v770
    %v772 = vtanh.pop %v771
    %v773 = vsub.f32 1.0, %v768
    %v774 = vmul.f32 %v773, %v772
    %v775 = vmul.f32 %v768, %v668
    %v776 = vadd.f32 %v774, %v775
    %777 = vmatpush.msra.mxu0 %v445
    %778 = vmatpush.msra.mxu0 %v442
    %779 = vmatpush.msra.mxu0 %v439
    %780 = vmatpush.msra.mxu0 %v436
    %781 = vmatpush.msra.mxu0 %v433
    %782 = vmatpush.msra.mxu0 %v430
    %783 = vmatpush.msra.mxu0 %v427
    %784 = vmatpush.msra.mxu0 %v424
    %785 = vmatpush.msra.mxu0 %v421
    %786 = vmatpush.msra.mxu0 %v418
    %787 = vmatpush.msra.mxu0 %v415
    %788 = vmatpush.msra.mxu0 %v412
    %789 = vmatpush.msra.mxu0 %v409
    %790 = vmatpush.msra.mxu0 %v406
    %791 = vmatpush.msra.mxu0 %v403
    %792 = vmatpush.msra.mxu0 %v400
    %793 = vmatmul.f32.gmra.mxu0 %v776
    %v794 = vpop.f32.mrf.mxu0
    %v795 = vadd.f32 0.0, %v794
    %796 = vdwg.mxu0
    %797 = vmatpush.msra.mxu0 %v446
    %798 = vmatpush.msra.mxu0 %v443
    %799 = vmatpush.msra.mxu0 %v440
    %800 = vmatpush.msra.mxu0 %v437
    %801 = vmatpush.msra.mxu0 %v434
    %802 = vmatpush.msra.mxu0 %v431
    %803 = vmatpush.msra.mxu0 %v428
    %804 = vmatpush.msra.mxu0 %v425
    %805 = vmatpush.msra.mxu0 %v422
    %806 = vmatpush.msra.mxu0 %v419
    %807 = vmatpush.msra.mxu0 %v416
    %808 = vmatpush.msra.mxu0 %v413
    %809 = vmatpush.msra.mxu0 %v410
    %810 = vmatpush.msra.mxu0 %v407
    %811 = vmatpush.msra.mxu0 %v404
    %812 = vmatpush.msra.mxu0 %v401
    %813 = vmatmul.f32.gmra.mxu0 %v776
    %v814 = vpop.f32.mrf.mxu0
    %v815 = vadd.f32 0.0, %v814
    %816 = vdwg.mxu0
    %817 = vmatpush.msra.mxu0 %v447
    %818 = vmatpush.msra.mxu0 %v444
    %819 = vmatpush.msra.mxu0 %v441
    %820 = vmatpush.msra.mxu0 %v438
    %821 = vmatpush.msra.mxu0 %v435
    %822 = vmatpush.msra.mxu0 %v432
    %823 = vmatpush.msra.mxu0 %v429
    %824 = vmatpush.msra.mxu0 %v426
    %825 = vmatpush.msra.mxu0 %v423
    %826 = vmatpush.msra.mxu0 %v420
    %827 = vmatpush.msra.mxu0 %v417
    %828 = vmatpush.msra.mxu0 %v414
    %829 = vmatpush.msra.mxu0 %v411
    %830 = vmatpush.msra.mxu0 %v408
    %831 = vmatpush.msra.mxu0 %v405
    %832 = vmatpush.msra.mxu0 %v402
    %833 = vmatmul.f32.gmra.mxu0 %v776
    %v834 = vpop.f32.mrf.mxu0
    %v835 = vadd.f32 0.0, %v834
    %836 = vdwg.mxu0
    %v837 = vadd.f32 %v330, %v795
    %v838 = vxor.u32 %v837, 2147483648
    %v839 = vmul.f32 %v838, 1.442695
    %v840 = vpow.pop %v839
    %v841 = vadd.f32 %v840, 1.0
    %v842 = vrcp.pop %v841
    %v843 = vmul.f32 %v841, %v842
    %v844 = vsub.f32 1.0, %v843
    %v845 = vmul.f32 %v842, %v844
    %v846 = vadd.f32 %v842, %v845
    %vm847 = vweird.f32 %v841
    %vm848 = vweird.f32 %v842
    %vm849 = vmor %vm847, %vm848
    %v850 = vsel %vm849, %v842, %v846
    %v851 = vand.u32 2147483647, %v841
    %vm852 = vcmp.eq.f32.partialorder %v851, 8.507059e+37
    %v853 = vand.u32 %v841, 2147483648
    %v854 = vor.u32 1.1754944e-38, %v853
    %v855 = vsel %vm852, %v854, %v850
    %v856 = vmul.f32 1.0, %v855
    %v857 = vadd.f32 %v359, %v815
    %v858 = vxor.u32 %v857, 2147483648
    %v859 = vmul.f32 %v858, 1.442695
    %v860 = vpow.pop %v859
    %v861 = vadd.f32 %v860, 1.0
    %v862 = vrcp.pop %v861
    %v863 = vmul.f32 %v861, %v862
    %v864 = vsub.f32 1.0, %v863
    %v865 = vmul.f32 %v862, %v864
    %v866 = vadd.f32 %v862, %v865
    %vm867 = vweird.f32 %v861
    %vm868 = vweird.f32 %v862
    %vm869 = vmor %vm867, %vm868
    %v870 = vsel %vm869, %v862, %v866
    %v871 = vand.u32 2147483647, %v861
    %vm872 = vcmp.eq.f32.partialorder %v871, 8.507059e+37
    %v873 = vand.u32 %v861, 2147483648
    %v874 = vor.u32 1.1754944e-38, %v873
    %v875 = vsel %vm872, %v874, %v870
    %v876 = vmul.f32 1.0, %v875
    %v877 = vadd.f32 %v835, %v450
    %v878 = vmul.f32 %v856, %v877
    %v879 = vadd.f32 %v388, %v878
    %v880 = vtanh.pop %v879
    %v881 = vsub.f32 1.0, %v876
    %v882 = vmul.f32 %v881, %v880
    %v883 = vmul.f32 %v876, %v776
    %v884 = vadd.f32 %v882, %v883
    %885 = vmatpush.msra.mxu0 %v445
    %886 = vmatpush.msra.mxu0 %v442
    %887 = vmatpush.msra.mxu0 %v439
    %888 = vmatpush.msra.mxu0 %v436
    %889 = vmatpush.msra.mxu0 %v433
    %890 = vmatpush.msra.mxu0 %v430
    %891 = vmatpush.msra.mxu0 %v427
    %892 = vmatpush.msra.mxu0 %v424
    %893 = vmatpush.msra.mxu0 %v421
    %894 = vmatpush.msra.mxu0 %v418
    %895 = vmatpush.msra.mxu0 %v415
    %896 = vmatpush.msra.mxu0 %v412
    %897 = vmatpush.msra.mxu0 %v409
    %898 = vmatpush.msra.mxu0 %v406
    %899 = vmatpush.msra.mxu0 %v403
    %900 = vmatpush.msra.mxu0 %v400
    %901 = vmatmul.f32.gmra.mxu0 %v884
    %v902 = vpop.f32.mrf.mxu0
    %v903 = vadd.f32 0.0, %v902
    %904 = vdwg.mxu0
    %905 = vmatpush.msra.mxu0 %v446
    %906 = vmatpush.msra.mxu0 %v443
    %907 = vmatpush.msra.mxu0 %v440
    %908 = vmatpush.msra.mxu0 %v437
    %909 = vmatpush.msra.mxu0 %v434
    %910 = vmatpush.msra.mxu0 %v431
    %911 = vmatpush.msra.mxu0 %v428
    %912 = vmatpush.msra.mxu0 %v425
    %913 = vmatpush.msra.mxu0 %v422
    %914 = vmatpush.msra.mxu0 %v419
    %915 = vmatpush.msra.mxu0 %v416
    %916 = vmatpush.msra.mxu0 %v413
    %917 = vmatpush.msra.mxu0 %v410
    %918 = vmatpush.msra.mxu0 %v407
    %919 = vmatpush.msra.mxu0 %v404
    %920 = vmatpush.msra.mxu0 %v401
    %921 = vmatmul.f32.gmra.mxu0 %v884
    %v922 = vpop.f32.mrf.mxu0
    %v923 = vadd.f32 0.0, %v922
    %924 = vdwg.mxu0
    %925 = vmatpush.msra.mxu0 %v447
    %926 = vmatpush.msra.mxu0 %v444
    %927 = vmatpush.msra.mxu0 %v441
    %928 = vmatpush.msra.mxu0 %v438
    %929 = vmatpush.msra.mxu0 %v435
    %930 = vmatpush.msra.mxu0 %v432
    %931 = vmatpush.msra.mxu0 %v429
    %932 = vmatpush.msra.mxu0 %v426
    %933 = vmatpush.msra.mxu0 %v423
    %934 = vmatpush.msra.mxu0 %v420
    %935 = vmatpush.msra.mxu0 %v417
    %936 = vmatpush.msra.mxu0 %v414
    %937 = vmatpush.msra.mxu0 %v411
    %938 = vmatpush.msra.mxu0 %v408
    %939 = vmatpush.msra.mxu0 %v405
    %940 = vmatpush.msra.mxu0 %v402
    %941 = vmatmul.f32.gmra.mxu0 %v884
    %v942 = vpop.f32.mrf.mxu0
    %v943 = vadd.f32 0.0, %v942
    %944 = vdwg.mxu0
    %v945 = vadd.f32 %v333, %v903
    %v946 = vxor.u32 %v945, 2147483648
    %v947 = vmul.f32 %v946, 1.442695
    %v948 = vpow.pop %v947
    %v949 = vadd.f32 %v948, 1.0
    %v950 = vrcp.pop %v949
    %v951 = vmul.f32 %v949, %v950
    %v952 = vsub.f32 1.0, %v951
    %v953 = vmul.f32 %v950, %v952
    %v954 = vadd.f32 %v950, %v953
    %vm955 = vweird.f32 %v949
    %vm956 = vweird.f32 %v950
    %vm957 = vmor %vm955, %vm956
    %v958 = vsel %vm957, %v950, %v954
    %v959 = vand.u32 2147483647, %v949
    %vm960 = vcmp.eq.f32.partialorder %v959, 8.507059e+37
    %v961 = vand.u32 %v949, 2147483648
    %v962 = vor.u32 1.1754944e-38, %v961
    %v963 = vsel %vm960, %v962, %v958
    %v964 = vmul.f32 1.0, %v963
    %v965 = vadd.f32 %v362, %v923
    %v966 = vxor.u32 %v965, 2147483648
    %v967 = vmul.f32 %v966, 1.442695
    %v968 = vpow.pop %v967
    %v969 = vadd.f32 %v968, 1.0
    %v970 = vrcp.pop %v969
    %v971 = vmul.f32 %v969, %v970
    %v972 = vsub.f32 1.0, %v971
    %v973 = vmul.f32 %v970, %v972
    %v974 = vadd.f32 %v970, %v973
    %vm975 = vweird.f32 %v969
    %vm976 = vweird.f32 %v970
    %vm977 = vmor %vm975, %vm976
    %v978 = vsel %vm977, %v970, %v974
    %v979 = vand.u32 2147483647, %v969
    %vm980 = vcmp.eq.f32.partialorder %v979, 8.507059e+37
    %v981 = vand.u32 %v969, 2147483648
    %v982 = vor.u32 1.1754944e-38, %v981
    %v983 = vsel %vm980, %v982, %v978
    %v984 = vmul.f32 1.0, %v983
    %v985 = vadd.f32 %v943, %v450
    %v986 = vmul.f32 %v964, %v985
    %v987 = vadd.f32 %v391, %v986
    %v988 = vtanh.pop %v987
    %v989 = vsub.f32 1.0, %v984
    %v990 = vmul.f32 %v989, %v988
    %v991 = vmul.f32 %v984, %v884
    %v992 = vadd.f32 %v990, %v991
    %993 = vmatpush.msra.mxu0 %v445
    %994 = vmatpush.msra.mxu0 %v442
    %995 = vmatpush.msra.mxu0 %v439
    %996 = vmatpush.msra.mxu0 %v436
    %997 = vmatpush.msra.mxu0 %v433
    %998 = vmatpush.msra.mxu0 %v430
    %999 = vmatpush.msra.mxu0 %v427
    %1000 = vmatpush.msra.mxu0 %v424
    %1001 = vmatpush.msra.mxu0 %v421
    %1002 = vmatpush.msra.mxu0 %v418
    %1003 = vmatpush.msra.mxu0 %v415
    %1004 = vmatpush.msra.mxu0 %v412
    %1005 = vmatpush.msra.mxu0 %v409
    %1006 = vmatpush.msra.mxu0 %v406
    %1007 = vmatpush.msra.mxu0 %v403
    %1008 = vmatpush.msra.mxu0 %v400
    %1009 = vmatmul.f32.gmra.mxu0 %v992
    %v1010 = vpop.f32.mrf.mxu0
    %v1011 = vadd.f32 0.0, %v1010
    %1012 = vdwg.mxu0
    %1013 = vmatpush.msra.mxu0 %v446
    %1014 = vmatpush.msra.mxu0 %v443
    %1015 = vmatpush.msra.mxu0 %v440
    %1016 = vmatpush.msra.mxu0 %v437
    %1017 = vmatpush.msra.mxu0 %v434
    %1018 = vmatpush.msra.mxu0 %v431
    %1019 = vmatpush.msra.mxu0 %v428
    %1020 = vmatpush.msra.mxu0 %v425
    %1021 = vmatpush.msra.mxu0 %v422
    %1022 = vmatpush.msra.mxu0 %v419
    %1023 = vmatpush.msra.mxu0 %v416
    %1024 = vmatpush.msra.mxu0 %v413
    %1025 = vmatpush.msra.mxu0 %v410
    %1026 = vmatpush.msra.mxu0 %v407
    %1027 = vmatpush.msra.mxu0 %v404
    %1028 = vmatpush.msra.mxu0 %v401
    %1029 = vmatmul.f32.gmra.mxu0 %v992
    %v1030 = vpop.f32.mrf.mxu0
    %v1031 = vadd.f32 0.0, %v1030
    %1032 = vdwg.mxu0
    %1033 = vmatpush.msra.mxu0 %v447
    %1034 = vmatpush.msra.mxu0 %v444
    %1035 = vmatpush.msra.mxu0 %v441
    %1036 = vmatpush.msra.mxu0 %v438
    %1037 = vmatpush.msra.mxu0 %v435
    %1038 = vmatpush.msra.mxu0 %v432
    %1039 = vmatpush.msra.mxu0 %v429
    %1040 = vmatpush.msra.mxu0 %v426
    %1041 = vmatpush.msra.mxu0 %v423
    %1042 = vmatpush.msra.mxu0 %v420
    %1043 = vmatpush.msra.mxu0 %v417
    %1044 = vmatpush.msra.mxu0 %v414
    %1045 = vmatpush.msra.mxu0 %v411
    %1046 = vmatpush.msra.mxu0 %v408
    %1047 = vmatpush.msra.mxu0 %v405
    %1048 = vmatpush.msra.mxu0 %v402
    %1049 = vmatmul.f32.gmra.mxu0 %v992
    %v1050 = vpop.f32.mrf.mxu0
    %v1051 = vadd.f32 0.0, %v1050
    %1052 = vdwg.mxu0
    %v1053 = vadd.f32 %v335, %v1011
    %v1054 = vxor.u32 %v1053, 2147483648
    %v1055 = vmul.f32 %v1054, 1.442695
    %v1056 = vpow.pop %v1055
    %v1057 = vadd.f32 %v1056, 1.0
    %v1058 = vrcp.pop %v1057
    %v1059 = vmul.f32 %v1057, %v1058
    %v1060 = vsub.f32 1.0, %v1059
    %v1061 = vmul.f32 %v1058, %v1060
    %v1062 = vadd.f32 %v1058, %v1061
    %vm1063 = vweird.f32 %v1057
    %vm1064 = vweird.f32 %v1058
    %vm1065 = vmor %vm1063, %vm1064
    %v1066 = vsel %vm1065, %v1058, %v1062
    %v1067 = vand.u32 2147483647, %v1057
    %vm1068 = vcmp.eq.f32.partialorder %v1067, 8.507059e+37
    %v1069 = vand.u32 %v1057, 2147483648
    %v1070 = vor.u32 1.1754944e-38, %v1069
    %v1071 = vsel %vm1068, %v1070, %v1066
    %v1072 = vmul.f32 1.0, %v1071
    %v1073 = vadd.f32 %v364, %v1031
    %v1074 = vxor.u32 %v1073, 2147483648
    %v1075 = vmul.f32 %v1074, 1.442695
    %v1076 = vpow.pop %v1075
    %v1077 = vadd.f32 %v1076, 1.0
    %v1078 = vrcp.pop %v1077
    %v1079 = vmul.f32 %v1077, %v1078
    %v1080 = vsub.f32 1.0, %v1079
    %v1081 = vmul.f32 %v1078, %v1080
    %v1082 = vadd.f32 %v1078, %v1081
    %vm1083 = vweird.f32 %v1077
    %vm1084 = vweird.f32 %v1078
    %vm1085 = vmor %vm1083, %vm1084
    %v1086 = vsel %vm1085, %v1078, %v1082
    %v1087 = vand.u32 2147483647, %v1077
    %vm1088 = vcmp.eq.f32.partialorder %v1087, 8.507059e+37
    %v1089 = vand.u32 %v1077, 2147483648
    %v1090 = vor.u32 1.1754944e-38, %v1089
    %v1091 = vsel %vm1088, %v1090, %v1086
    %v1092 = vmul.f32 1.0, %v1091
    %v1093 = vadd.f32 %v1051, %v450
    %v1094 = vmul.f32 %v1072, %v1093
    %v1095 = vadd.f32 %v393, %v1094
    %v1096 = vtanh.pop %v1095
    %v1097 = vsub.f32 1.0, %v1092
    %v1098 = vmul.f32 %v1097, %v1096
    %v1099 = vmul.f32 %v1092, %v992
    %v1100 = vadd.f32 %v1098, %v1099
    %1101 = vmatpush.msra.mxu0 %v445
    %1102 = vmatpush.msra.mxu0 %v442
    %1103 = vmatpush.msra.mxu0 %v439
    %1104 = vmatpush.msra.mxu0 %v436
    %1105 = vmatpush.msra.mxu0 %v433
    %1106 = vmatpush.msra.mxu0 %v430
    %1107 = vmatpush.msra.mxu0 %v427
    %1108 = vmatpush.msra.mxu0 %v424
    %1109 = vmatpush.msra.mxu0 %v421
    %1110 = vmatpush.msra.mxu0 %v418
    %1111 = vmatpush.msra.mxu0 %v415
    %1112 = vmatpush.msra.mxu0 %v412
    %1113 = vmatpush.msra.mxu0 %v409
    %1114 = vmatpush.msra.mxu0 %v406
    %1115 = vmatpush.msra.mxu0 %v403
    %1116 = vmatpush.msra.mxu0 %v400
    %1117 = vmatmul.f32.gmra.mxu0 %v1100
    %v1118 = vpop.f32.mrf.mxu0
    %v1119 = vadd.f32 0.0, %v1118
    %1120 = vdwg.mxu0
    %1121 = vmatpush.msra.mxu0 %v446
    %1122 = vmatpush.msra.mxu0 %v443
    %1123 = vmatpush.msra.mxu0 %v440
    %1124 = vmatpush.msra.mxu0 %v437
    %1125 = vmatpush.msra.mxu0 %v434
    %1126 = vmatpush.msra.mxu0 %v431
    %1127 = vmatpush.msra.mxu0 %v428
    %1128 = vmatpush.msra.mxu0 %v425
    %1129 = vmatpush.msra.mxu0 %v422
    %1130 = vmatpush.msra.mxu0 %v419
    %1131 = vmatpush.msra.mxu0 %v416
    %1132 = vmatpush.msra.mxu0 %v413
    %1133 = vmatpush.msra.mxu0 %v410
    %1134 = vmatpush.msra.mxu0 %v407
    %1135 = vmatpush.msra.mxu0 %v404
    %1136 = vmatpush.msra.mxu0 %v401
    %1137 = vmatmul.f32.gmra.mxu0 %v1100
    %v1138 = vpop.f32.mrf.mxu0
    %v1139 = vadd.f32 0.0, %v1138
    %1140 = vdwg.mxu0
    %1141 = vmatpush.msra.mxu0 %v447
    %1142 = vmatpush.msra.mxu0 %v444
    %1143 = vmatpush.msra.mxu0 %v441
    %1144 = vmatpush.msra.mxu0 %v438
    %1145 = vmatpush.msra.mxu0 %v435
    %1146 = vmatpush.msra.mxu0 %v432
    %1147 = vmatpush.msra.mxu0 %v429
    %1148 = vmatpush.msra.mxu0 %v426
    %1149 = vmatpush.msra.mxu0 %v423
    %1150 = vmatpush.msra.mxu0 %v420
    %1151 = vmatpush.msra.mxu0 %v417
    %1152 = vmatpush.msra.mxu0 %v414
    %1153 = vmatpush.msra.mxu0 %v411
    %1154 = vmatpush.msra.mxu0 %v408
    %1155 = vmatpush.msra.mxu0 %v405
    %1156 = vmatpush.msra.mxu0 %v402
    %1157 = vmatmul.f32.gmra.mxu0 %v1100
    %v1158 = vpop.f32.mrf.mxu0
    %v1159 = vadd.f32 0.0, %v1158
    %1160 = vdwg.mxu0
    %v1161 = vadd.f32 %v338, %v1119
    %v1162 = vxor.u32 %v1161, 2147483648
    %v1163 = vmul.f32 %v1162, 1.442695
    %v1164 = vpow.pop %v1163
    %v1165 = vadd.f32 %v1164, 1.0
    %v1166 = vrcp.pop %v1165
    %v1167 = vmul.f32 %v1165, %v1166
    %v1168 = vsub.f32 1.0, %v1167
    %v1169 = vmul.f32 %v1166, %v1168
    %v1170 = vadd.f32 %v1166, %v1169
    %vm1171 = vweird.f32 %v1165
    %vm1172 = vweird.f32 %v1166
    %vm1173 = vmor %vm1171, %vm1172
    %v1174 = vsel %vm1173, %v1166, %v1170
    %v1175 = vand.u32 2147483647, %v1165
    %vm1176 = vcmp.eq.f32.partialorder %v1175, 8.507059e+37
    %v1177 = vand.u32 %v1165, 2147483648
    %v1178 = vor.u32 1.1754944e-38, %v1177
    %v1179 = vsel %vm1176, %v1178, %v1174
    %v1180 = vmul.f32 1.0, %v1179
    %v1181 = vadd.f32 %v367, %v1139
    %v1182 = vxor.u32 %v1181, 2147483648
    %v1183 = vmul.f32 %v1182, 1.442695
    %v1184 = vpow.pop %v1183
    %v1185 = vadd.f32 %v1184, 1.0
    %v1186 = vrcp.pop %v1185
    %v1187 = vmul.f32 %v1185, %v1186
    %v1188 = vsub.f32 1.0, %v1187
    %v1189 = vmul.f32 %v1186, %v1188
    %v1190 = vadd.f32 %v1186, %v1189
    %vm1191 = vweird.f32 %v1185
    %vm1192 = vweird.f32 %v1186
    %vm1193 = vmor %vm1191, %vm1192
    %v1194 = vsel %vm1193, %v1186, %v1190
    %v1195 = vand.u32 2147483647, %v1185
    %vm1196 = vcmp.eq.f32.partialorder %v1195, 8.507059e+37
    %v1197 = vand.u32 %v1185, 2147483648
    %v1198 = vor.u32 1.1754944e-38, %v1197
    %v1199 = vsel %vm1196, %v1198, %v1194
    %v1200 = vmul.f32 1.0, %v1199
    %v1201 = vadd.f32 %v1159, %v450
    %v1202 = vmul.f32 %v1180, %v1201
    %v1203 = vadd.f32 %v396, %v1202
    %v1204 = vtanh.pop %v1203
    %v1205 = vsub.f32 1.0, %v1200
    %v1206 = vmul.f32 %v1205, %v1204
    %v1207 = vmul.f32 %v1200, %v1100
    %v1208 = vadd.f32 %v1206, %v1207
    %1209 = vmatpush.msra.mxu0 %v445
    %1210 = vmatpush.msra.mxu0 %v442
    %1211 = vmatpush.msra.mxu0 %v439
    %1212 = vmatpush.msra.mxu0 %v436
    %1213 = vmatpush.msra.mxu0 %v433
    %1214 = vmatpush.msra.mxu0 %v430
    %1215 = vmatpush.msra.mxu0 %v427
    %1216 = vmatpush.msra.mxu0 %v424
    %1217 = vmatpush.msra.mxu0 %v421
    %1218 = vmatpush.msra.mxu0 %v418
    %1219 = vmatpush.msra.mxu0 %v415
    %1220 = vmatpush.msra.mxu0 %v412
    %1221 = vmatpush.msra.mxu0 %v409
    %1222 = vmatpush.msra.mxu0 %v406
    %1223 = vmatpush.msra.mxu0 %v403
    %1224 = vmatpush.msra.mxu0 %v400
    %1225 = vmatmul.f32.gmra.mxu0 %v1208
    %v1226 = vpop.f32.mrf.mxu0
    %v1227 = vadd.f32 0.0, %v1226
    %1228 = vdwg.mxu0
    %1229 = vmatpush.msra.mxu0 %v446
    %1230 = vmatpush.msra.mxu0 %v443
    %1231 = vmatpush.msra.mxu0 %v440
    %1232 = vmatpush.msra.mxu0 %v437
    %1233 = vmatpush.msra.mxu0 %v434
    %1234 = vmatpush.msra.mxu0 %v431
    %1235 = vmatpush.msra.mxu0 %v428
    %1236 = vmatpush.msra.mxu0 %v425
    %1237 = vmatpush.msra.mxu0 %v422
    %1238 = vmatpush.msra.mxu0 %v419
    %1239 = vmatpush.msra.mxu0 %v416
    %1240 = vmatpush.msra.mxu0 %v413
    %1241 = vmatpush.msra.mxu0 %v410
    %1242 = vmatpush.msra.mxu0 %v407
    %1243 = vmatpush.msra.mxu0 %v404
    %1244 = vmatpush.msra.mxu0 %v401
    %1245 = vmatmul.f32.gmra.mxu0 %v1208
    %v1246 = vpop.f32.mrf.mxu0
    %v1247 = vadd.f32 0.0, %v1246
    %1248 = vdwg.mxu0
    %1249 = vmatpush.msra.mxu0 %v447
    %1250 = vmatpush.msra.mxu0 %v444
    %1251 = vmatpush.msra.mxu0 %v441
    %1252 = vmatpush.msra.mxu0 %v438
    %1253 = vmatpush.msra.mxu0 %v435
    %1254 = vmatpush.msra.mxu0 %v432
    %1255 = vmatpush.msra.mxu0 %v429
    %1256 = vmatpush.msra.mxu0 %v426
    %1257 = vmatpush.msra.mxu0 %v423
    %1258 = vmatpush.msra.mxu0 %v420
    %1259 = vmatpush.msra.mxu0 %v417
    %1260 = vmatpush.msra.mxu0 %v414
    %1261 = vmatpush.msra.mxu0 %v411
    %1262 = vmatpush.msra.mxu0 %v408
    %1263 = vmatpush.msra.mxu0 %v405
    %1264 = vmatpush.msra.mxu0 %v402
    %1265 = vmatmul.f32.gmra.mxu0 %v1208
    %v1266 = vpop.f32.mrf.mxu0
    %v1267 = vadd.f32 0.0, %v1266
    %1268 = vdwg.mxu0
    %v1269 = vadd.f32 %v340, %v1227
    %v1270 = vxor.u32 %v1269, 2147483648
    %v1271 = vmul.f32 %v1270, 1.442695
    %v1272 = vpow.pop %v1271
    %v1273 = vadd.f32 %v1272, 1.0
    %v1274 = vrcp.pop %v1273
    %v1275 = vmul.f32 %v1273, %v1274
    %v1276 = vsub.f32 1.0, %v1275
    %v1277 = vmul.f32 %v1274, %v1276
    %v1278 = vadd.f32 %v1274, %v1277
    %vm1279 = vweird.f32 %v1273
    %vm1280 = vweird.f32 %v1274
    %vm1281 = vmor %vm1279, %vm1280
    %v1282 = vsel %vm1281, %v1274, %v1278
    %v1283 = vand.u32 2147483647, %v1273
    %vm1284 = vcmp.eq.f32.partialorder %v1283, 8.507059e+37
    %v1285 = vand.u32 %v1273, 2147483648
    %v1286 = vor.u32 1.1754944e-38, %v1285
    %v1287 = vsel %vm1284, %v1286, %v1282
    %v1288 = vmul.f32 1.0, %v1287
    %v1289 = vadd.f32 %v369, %v1247
    %v1290 = vxor.u32 %v1289, 2147483648
    %v1291 = vmul.f32 %v1290, 1.442695
    %v1292 = vpow.pop %v1291
    %v1293 = vadd.f32 %v1292, 1.0
    %v1294 = vrcp.pop %v1293
    %v1295 = vmul.f32 %v1293, %v1294
    %v1296 = vsub.f32 1.0, %v1295
    %v1297 = vmul.f32 %v1294, %v1296
    %v1298 = vadd.f32 %v1294, %v1297
    %vm1299 = vweird.f32 %v1293
    %vm1300 = vweird.f32 %v1294
    %vm1301 = vmor %vm1299, %vm1300
    %v1302 = vsel %vm1301, %v1294, %v1298
    %v1303 = vand.u32 2147483647, %v1293
    %vm1304 = vcmp.eq.f32.partialorder %v1303, 8.507059e+37
    %v1305 = vand.u32 %v1293, 2147483648
    %v1306 = vor.u32 1.1754944e-38, %v1305
    %v1307 = vsel %vm1304, %v1306, %v1302
    %v1308 = vmul.f32 1.0, %v1307
    %v1309 = vadd.f32 %v1267, %v450
    %v1310 = vmul.f32 %v1288, %v1309
    %v1311 = vadd.f32 %v398, %v1310
    %v1312 = vtanh.pop %v1311
    %v1313 = vsub.f32 1.0, %v1308
    %v1314 = vmul.f32 %v1313, %v1312
    %v1315 = vmul.f32 %v1308, %v1208
    %v1316 = vadd.f32 %v1314, %v1315
    %1317 = vst [vmem:[#allocation2] sm:$0xff] %v1316
    %v1318 = vpack.c.bf16 %v668, %v560
    %v1319 = vpack.c.bf16 %v884, %v776
    %v1320 = vpack.c.bf16 %v1100, %v992
    %v1321 = vpack.c.bf16 %v1316, %v1208
    %v1322 = vld [vmem:[#allocation7] sm:$0xff]
    %v1323 = vld [vmem:[#allocation7 + $0x8] sm:$0xf]
    %v1324 = vld [vmem:[#allocation7 + $0xc] sm:$0xff]
    %v1325 = vld [vmem:[#allocation7 + $0x14] sm:$0xf]
    %v1326 = vld [vmem:[#allocation7 + $0x18] sm:$0xff]
    %v1327 = vld [vmem:[#allocation7 + $0x20] sm:$0xf]
    %v1328 = vld [vmem:[#allocation7 + $0x24] sm:$0xff]
    %v1329 = vld [vmem:[#allocation7 + $0x2c] sm:$0xf]
    %v1330 = vld [vmem:[#allocation7 + $0x30] sm:$0xff]
    %v1331 = vld [vmem:[#allocation7 + $0x38] sm:$0xf]
    %v1332 = vld [vmem:[#allocation7 + $0x3c] sm:$0xff]
    %v1333 = vld [vmem:[#allocation7 + $0x44] sm:$0xf]
    %v1334 = vld [vmem:[#allocation7 + $0x48] sm:$0xff]
    %v1335 = vld [vmem:[#allocation7 + $0x50] sm:$0xf]
    %v1336 = vld [vmem:[#allocation7 + $0x54] sm:$0xff]
    %v1337 = vld [vmem:[#allocation7 + $0x5c] sm:$0xf]
    %v1338 = vld [vmem:[#allocation7 + $0x60] sm:$0xff]
    %v1339 = vld [vmem:[#allocation7 + $0x68] sm:$0xf]
    %v1340 = vld [vmem:[#allocation7 + $0x6c] sm:$0xff]
    %v1341 = vld [vmem:[#allocation7 + $0x74] sm:$0xf]
    %v1342 = vld [vmem:[#allocation7 + $0x78] sm:$0xff]
    %v1343 = vld [vmem:[#allocation7 + $0x80] sm:$0xf]
    %v1344 = vld [vmem:[#allocation7 + $0x84] sm:$0xff]
    %v1345 = vld [vmem:[#allocation7 + $0x8c] sm:$0xf]
    %v1346 = vld [vmem:[#allocation7 + $0x90] sm:$0xff]
    %v1347 = vld [vmem:[#allocation7 + $0x98] sm:$0xf]
    %v1348 = vld [vmem:[#allocation7 + $0x9c] sm:$0xff]
    %v1349 = vld [vmem:[#allocation7 + $0xa4] sm:$0xf]
    %v1350 = vld [vmem:[#allocation7 + $0xa8] sm:$0xff]
    %v1351 = vld [vmem:[#allocation7 + $0xb0] sm:$0xf]
    %v1352 = vld [vmem:[#allocation7 + $0xb4] sm:$0xff]
    %v1353 = vld [vmem:[#allocation7 + $0xbc] sm:$0xf]
    %v1354 = vld [vmem:[%s7] sm:$0x7]
    %v1356 = vperm.slane %v1354, 0
    %v1357 = vperm.slane %v1354, 1
    %v1358 = vperm.slane %v1354, 2
    %v1394 = vunpack.c.l.b16 %v1322
    %v1395 = vunpack.c.h.b16 %v1322
    %v1396 = vunpack.c.l.b16 %v1323
    %v1397 = vunpack.c.l.b16 %v1324
    %v1398 = vunpack.c.h.b16 %v1324
    %v1399 = vunpack.c.l.b16 %v1325
    %v1400 = vunpack.c.l.b16 %v1326
    %v1401 = vunpack.c.h.b16 %v1326
    %v1402 = vunpack.c.l.b16 %v1327
    %v1403 = vunpack.c.l.b16 %v1328
    %v1404 = vunpack.c.h.b16 %v1328
    %v1405 = vunpack.c.l.b16 %v1329
    %v1406 = vunpack.c.l.b16 %v1330
    %v1407 = vunpack.c.h.b16 %v1330
    %v1408 = vunpack.c.l.b16 %v1331
    %v1409 = vunpack.c.l.b16 %v1332
    %v1410 = vunpack.c.h.b16 %v1332
    %v1411 = vunpack.c.l.b16 %v1333
    %v1412 = vunpack.c.l.b16 %v1334
    %v1413 = vunpack.c.h.b16 %v1334
    %v1414 = vunpack.c.l.b16 %v1335
    %v1415 = vunpack.c.l.b16 %v1336
    %v1416 = vunpack.c.h.b16 %v1336
    %v1417 = vunpack.c.l.b16 %v1337
    %v1418 = vunpack.c.l.b16 %v1338
    %v1419 = vunpack.c.h.b16 %v1338
    %v1420 = vunpack.c.l.b16 %v1339
    %v1421 = vunpack.c.l.b16 %v1340
    %v1422 = vunpack.c.h.b16 %v1340
    %v1423 = vunpack.c.l.b16 %v1341
    %v1424 = vunpack.c.l.b16 %v1342
    %v1425 = vunpack.c.h.b16 %v1342
    %v1426 = vunpack.c.l.b16 %v1343
    %v1427 = vunpack.c.l.b16 %v1344
    %v1428 = vunpack.c.h.b16 %v1344
    %v1429 = vunpack.c.l.b16 %v1345
    %v1430 = vunpack.c.l.b16 %v1346
    %v1431 = vunpack.c.h.b16 %v1346
    %v1432 = vunpack.c.l.b16 %v1347
    %v1433 = vunpack.c.l.b16 %v1348
    %v1434 = vunpack.c.h.b16 %v1348
    %v1435 = vunpack.c.l.b16 %v1349
    %v1436 = vunpack.c.l.b16 %v1350
    %v1437 = vunpack.c.h.b16 %v1350
    %v1438 = vunpack.c.l.b16 %v1351
    %v1439 = vunpack.c.l.b16 %v1352
    %v1440 = vunpack.c.h.b16 %v1352
    %v1441 = vunpack.c.l.b16 %v1353
    %v1442 = vpack.c.b16 %v1397, %v1394
    %v1443 = vpack.c.b16 %v1398, %v1395
    %v1444 = vpack.c.b16 %v1399, %v1396
    %v1445 = vpack.c.b16 %v1403, %v1400
    %v1446 = vpack.c.b16 %v1404, %v1401
    %v1447 = vpack.c.b16 %v1405, %v1402
    %v1448 = vpack.c.b16 %v1409, %v1406
    %v1449 = vpack.c.b16 %v1410, %v1407
    %v1450 = vpack.c.b16 %v1411, %v1408
    %v1451 = vpack.c.b16 %v1415, %v1412
    %v1452 = vpack.c.b16 %v1416, %v1413
    %v1453 = vpack.c.b16 %v1417, %v1414
    %v1454 = vpack.c.b16 %v1421, %v1418
    %v1455 = vpack.c.b16 %v1422, %v1419
    %v1456 = vpack.c.b16 %v1423, %v1420
    %v1457 = vpack.c.b16 %v1427, %v1424
    %v1458 = vpack.c.b16 %v1428, %v1425
    %v1459 = vpack.c.b16 %v1429, %v1426
    %v1460 = vpack.c.b16 %v1433, %v1430
    %v1461 = vpack.c.b16 %v1434, %v1431
    %v1462 = vpack.c.b16 %v1435, %v1432
    %v1463 = vpack.c.b16 %v1439, %v1436
    %v1464 = vpack.c.b16 %v1440, %v1437
    %v1465 = vpack.c.b16 %v1441, %v1438
    %1490 = vmatpush.bf16.msra.mxu0 %v1463
    %1491 = vmatpush.bf16.msra.mxu0 %v1460
    %1492 = vmatpush.bf16.msra.mxu0 %v1457
    %1493 = vmatpush.bf16.msra.mxu0 %v1454
    %1494 = vmatpush.bf16.msra.mxu0 %v1451
    %1495 = vmatpush.bf16.msra.mxu0 %v1448
    %1496 = vmatpush.bf16.msra.mxu0 %v1445
    %1497 = vmatpush.bf16.msra.mxu0 %v1442
    %1498 = vmatmul.bf16.gmra.mxu0 %v1318
    %v1499 = vpop.f32.mrf.mxu0
    %v1500 = vadd.f32 %v1356, %v1499
    %v1501 = vpop.f32.mrf.mxu0
    %v1502 = vadd.f32 %v1356, %v1501
    %1503 = vmatmul.bf16.gmra.mxu0 %v1319
    %v1504 = vpop.f32.mrf.mxu0
    %v1505 = vadd.f32 %v1356, %v1504
    %v1506 = vpop.f32.mrf.mxu0
    %v1507 = vadd.f32 %v1356, %v1506
    %1508 = vmatmul.bf16.gmra.mxu0 %v1320
    %v1509 = vpop.f32.mrf.mxu0
    %v1510 = vadd.f32 %v1356, %v1509
    %v1511 = vpop.f32.mrf.mxu0
    %v1512 = vadd.f32 %v1356, %v1511
    %1513 = vmatmul.bf16.gmra.mxu0 %v1321
    %v1514 = vpop.f32.mrf.mxu0
    %v1515 = vadd.f32 %v1356, %v1514
    %v1516 = vpop.f32.mrf.mxu0
    %v1517 = vadd.f32 %v1356, %v1516
    %1518 = vdwg.mxu0
    %1519 = vmatpush.bf16.msra.mxu0 %v1464
    %1520 = vmatpush.bf16.msra.mxu0 %v1461
    %1521 = vmatpush.bf16.msra.mxu0 %v1458
    %1522 = vmatpush.bf16.msra.mxu0 %v1455
    %1523 = vmatpush.bf16.msra.mxu0 %v1452
    %1524 = vmatpush.bf16.msra.mxu0 %v1449
    %1525 = vmatpush.bf16.msra.mxu0 %v1446
    %1526 = vmatpush.bf16.msra.mxu0 %v1443
    %1527 = vmatmul.bf16.gmra.mxu0 %v1318
    %v1528 = vpop.f32.mrf.mxu0
    %v1529 = vadd.f32 %v1357, %v1528
    %v1530 = vpop.f32.mrf.mxu0
    %v1531 = vadd.f32 %v1357, %v1530
    %1532 = vmatmul.bf16.gmra.mxu0 %v1319
    %v1533 = vpop.f32.mrf.mxu0
    %v1534 = vadd.f32 %v1357, %v1533
    %v1535 = vpop.f32.mrf.mxu0
    %v1536 = vadd.f32 %v1357, %v1535
    %1537 = vmatmul.bf16.gmra.mxu0 %v1320
    %v1538 = vpop.f32.mrf.mxu0
    %v1539 = vadd.f32 %v1357, %v1538
    %v1540 = vpop.f32.mrf.mxu0
    %v1541 = vadd.f32 %v1357, %v1540
    %1542 = vmatmul.bf16.gmra.mxu0 %v1321
    %v1543 = vpop.f32.mrf.mxu0
    %v1544 = vadd.f32 %v1357, %v1543
    %v1545 = vpop.f32.mrf.mxu0
    %v1546 = vadd.f32 %v1357, %v1545
    %1547 = vdwg.mxu0
    %1548 = vmatpush.bf16.msra.mxu0 %v1465
    %1549 = vmatpush.bf16.msra.mxu0 %v1462
    %1550 = vmatpush.bf16.msra.mxu0 %v1459
    %1551 = vmatpush.bf16.msra.mxu0 %v1456
    %1552 = vmatpush.bf16.msra.mxu0 %v1453
    %1553 = vmatpush.bf16.msra.mxu0 %v1450
    %1554 = vmatpush.bf16.msra.mxu0 %v1447
    %1555 = vmatpush.bf16.msra.mxu0 %v1444
    %1556 = vmatmul.bf16.gmra.mxu0 %v1318
    %v1557 = vpop.f32.mrf.mxu0
    %v1558 = vadd.f32 %v1358, %v1557
    %v1559 = vpop.f32.mrf.mxu0
    %v1560 = vadd.f32 %v1358, %v1559
    %1561 = vmatmul.bf16.gmra.mxu0 %v1319
    %v1562 = vpop.f32.mrf.mxu0
    %v1563 = vadd.f32 %v1358, %v1562
    %v1564 = vpop.f32.mrf.mxu0
    %v1565 = vadd.f32 %v1358, %v1564
    %1566 = vmatmul.bf16.gmra.mxu0 %v1320
    %v1567 = vpop.f32.mrf.mxu0
    %v1568 = vadd.f32 %v1358, %v1567
    %v1569 = vpop.f32.mrf.mxu0
    %v1570 = vadd.f32 %v1358, %v1569
    %1571 = vmatmul.bf16.gmra.mxu0 %v1321
    %v1572 = vpop.f32.mrf.mxu0
    %v1573 = vadd.f32 %v1358, %v1572
    %v1574 = vpop.f32.mrf.mxu0
    %v1575 = vadd.f32 %v1358, %v1574
    %1576 = vdwg.mxu0
    %v1577 = vld [vmem:[#allocation8] sm:$0xff]
    %v1578 = vld [vmem:[#allocation8 + $0x8] sm:$0xff]
    %v1579 = vld [vmem:[#allocation8 + $0x10] sm:$0xff]
    %v1580 = vld [vmem:[#allocation8 + $0x18] sm:$0xff]
    %v1581 = vld [vmem:[#allocation8 + $0x20] sm:$0xff]
    %v1582 = vld [vmem:[#allocation8 + $0x28] sm:$0xff]
    %v1583 = vld [vmem:[#allocation8 + $0x30] sm:$0xff]
    %v1584 = vld [vmem:[#allocation8 + $0x38] sm:$0xff]
    %v1585 = vld [vmem:[#allocation8 + $0x40] sm:$0xff]
    %v1586 = vld [vmem:[#allocation8 + $0x48] sm:$0xff]
    %v1587 = vld [vmem:[#allocation8 + $0x50] sm:$0xff]
    %v1588 = vld [vmem:[#allocation8 + $0x58] sm:$0xff]
    %v1589 = vld [vmem:[#allocation8 + $0x60] sm:$0xff]
    %v1590 = vld [vmem:[#allocation8 + $0x68] sm:$0xff]
    %v1591 = vld [vmem:[#allocation8 + $0x70] sm:$0xff]
    %v1592 = vld [vmem:[#allocation8 + $0x78] sm:$0xff]
    %v1593 = vld [vmem:[#allocation8 + $0x80] sm:$0xff]
    %v1594 = vld [vmem:[#allocation8 + $0x88] sm:$0xff]
    %v1595 = vld [vmem:[#allocation8 + $0x90] sm:$0xff]
    %v1596 = vld [vmem:[#allocation8 + $0x98] sm:$0xff]
    %v1597 = vld [vmem:[#allocation8 + $0xa0] sm:$0xff]
    %v1598 = vld [vmem:[#allocation8 + $0xa8] sm:$0xff]
    %v1599 = vld [vmem:[#allocation8 + $0xb0] sm:$0xff]
    %v1600 = vld [vmem:[#allocation8 + $0xb8] sm:$0xff]
    %v1601 = vld [vmem:[#allocation8 + $0xc0] sm:$0xff]
    %v1602 = vld [vmem:[#allocation8 + $0xc8] sm:$0xff]
    %v1603 = vld [vmem:[#allocation8 + $0xd0] sm:$0xff]
    %v1604 = vld [vmem:[#allocation8 + $0xd8] sm:$0xff]
    %v1605 = vld [vmem:[#allocation8 + $0xe0] sm:$0xff]
    %v1606 = vld [vmem:[#allocation8 + $0xe8] sm:$0xff]
    %v1607 = vld [vmem:[#allocation8 + $0xf0] sm:$0xff]
    %v1608 = vld [vmem:[#allocation8 + $0xf8] sm:$0xff]
    %v1609 = vld [vmem:[#allocation8 + $0x100] sm:$0xff]
    %v1610 = vld [vmem:[#allocation8 + $0x108] sm:$0xff]
    %v1611 = vld [vmem:[#allocation8 + $0x110] sm:$0xff]
    %v1612 = vld [vmem:[#allocation8 + $0x118] sm:$0xff]
    %v1613 = vld [vmem:[#allocation8 + $0x120] sm:$0xff]
    %v1614 = vld [vmem:[#allocation8 + $0x128] sm:$0xff]
    %v1615 = vld [vmem:[#allocation8 + $0x130] sm:$0xff]
    %v1616 = vld [vmem:[#allocation8 + $0x138] sm:$0xff]
    %v1617 = vld [vmem:[#allocation8 + $0x140] sm:$0xff]
    %v1618 = vld [vmem:[#allocation8 + $0x148] sm:$0xff]
    %v1619 = vld [vmem:[#allocation8 + $0x150] sm:$0xff]
    %v1620 = vld [vmem:[#allocation8 + $0x158] sm:$0xff]
    %v1621 = vld [vmem:[#allocation8 + $0x160] sm:$0xff]
    %v1622 = vld [vmem:[#allocation8 + $0x168] sm:$0xff]
    %v1623 = vld [vmem:[#allocation8 + $0x170] sm:$0xff]
    %v1624 = vld [vmem:[#allocation8 + $0x178] sm:$0xff]
    %v1625 = vld [vmem:[%s8] sm:$0x1]
    %v1627 = vperm.slane %v1625, 0
    %s1629 = scalar_lea.vmem [#allocation2], 8
    %v1630 = vld [vmem:[%s1629] sm:$0xff]
    %1631 = vmatpush.msra.mxu0 %v1622
    %1632 = vmatpush.msra.mxu0 %v1619
    %1633 = vmatpush.msra.mxu0 %v1616
    %1634 = vmatpush.msra.mxu0 %v1613
    %1635 = vmatpush.msra.mxu0 %v1610
    %1636 = vmatpush.msra.mxu0 %v1607
    %1637 = vmatpush.msra.mxu0 %v1604
    %1638 = vmatpush.msra.mxu0 %v1601
    %1639 = vmatpush.msra.mxu0 %v1598
    %1640 = vmatpush.msra.mxu0 %v1595
    %1641 = vmatpush.msra.mxu0 %v1592
    %1642 = vmatpush.msra.mxu0 %v1589
    %1643 = vmatpush.msra.mxu0 %v1586
    %1644 = vmatpush.msra.mxu0 %v1583
    %1645 = vmatpush.msra.mxu0 %v1580
    %1646 = vmatpush.msra.mxu0 %v1577
    %1647 = vmatmul.f32.gmra.mxu0 %v1630
    %v1648 = vpop.f32.mrf.mxu0
    %v1649 = vadd.f32 0.0, %v1648
    %1650 = vdwg.mxu0
    %1651 = vmatpush.msra.mxu0 %v1623
    %1652 = vmatpush.msra.mxu0 %v1620
    %1653 = vmatpush.msra.mxu0 %v1617
    %1654 = vmatpush.msra.mxu0 %v1614
    %1655 = vmatpush.msra.mxu0 %v1611
    %1656 = vmatpush.msra.mxu0 %v1608
    %1657 = vmatpush.msra.mxu0 %v1605
    %1658 = vmatpush.msra.mxu0 %v1602
    %1659 = vmatpush.msra.mxu0 %v1599
    %1660 = vmatpush.msra.mxu0 %v1596
    %1661 = vmatpush.msra.mxu0 %v1593
    %1662 = vmatpush.msra.mxu0 %v1590
    %1663 = vmatpush.msra.mxu0 %v1587
    %1664 = vmatpush.msra.mxu0 %v1584
    %1665 = vmatpush.msra.mxu0 %v1581
    %1666 = vmatpush.msra.mxu0 %v1578
    %1667 = vmatmul.f32.gmra.mxu0 %v1630
    %v1668 = vpop.f32.mrf.mxu0
    %v1669 = vadd.f32 0.0, %v1668
    %1670 = vdwg.mxu0
    %1671 = vmatpush.msra.mxu0 %v1624
    %1672 = vmatpush.msra.mxu0 %v1621
    %1673 = vmatpush.msra.mxu0 %v1618
    %1674 = vmatpush.msra.mxu0 %v1615
    %1675 = vmatpush.msra.mxu0 %v1612
    %1676 = vmatpush.msra.mxu0 %v1609
    %1677 = vmatpush.msra.mxu0 %v1606
    %1678 = vmatpush.msra.mxu0 %v1603
    %1679 = vmatpush.msra.mxu0 %v1600
    %1680 = vmatpush.msra.mxu0 %v1597
    %1681 = vmatpush.msra.mxu0 %v1594
    %1682 = vmatpush.msra.mxu0 %v1591
    %1683 = vmatpush.msra.mxu0 %v1588
    %1684 = vmatpush.msra.mxu0 %v1585
    %1685 = vmatpush.msra.mxu0 %v1582
    %1686 = vmatpush.msra.mxu0 %v1579
    %1687 = vmatmul.f32.gmra.mxu0 %v1630
    %v1688 = vpop.f32.mrf.mxu0
    %v1689 = vadd.f32 0.0, %v1688
    %1690 = vdwg.mxu0
    %v1691 = vadd.f32 %v1500, %v1649
    %v1692 = vxor.u32 %v1691, 2147483648
    %v1693 = vmul.f32 %v1692, 1.442695
    %v1694 = vpow.pop %v1693
    %v1695 = vadd.f32 %v1694, 1.0
    %v1696 = vrcp.pop %v1695
    %v1697 = vmul.f32 %v1695, %v1696
    %v1698 = vsub.f32 1.0, %v1697
    %v1699 = vmul.f32 %v1696, %v1698
    %v1700 = vadd.f32 %v1696, %v1699
    %vm1701 = vweird.f32 %v1695
    %vm1702 = vweird.f32 %v1696
    %vm1703 = vmor %vm1701, %vm1702
    %v1704 = vsel %vm1703, %v1696, %v1700
    %v1705 = vand.u32 2147483647, %v1695
    %vm1706 = vcmp.eq.f32.partialorder %v1705, 8.507059e+37
    %v1707 = vand.u32 %v1695, 2147483648
    %v1708 = vor.u32 1.1754944e-38, %v1707
    %v1709 = vsel %vm1706, %v1708, %v1704
    %v1710 = vmul.f32 1.0, %v1709
    %v1711 = vadd.f32 %v1529, %v1669
    %v1712 = vxor.u32 %v1711, 2147483648
    %v1713 = vmul.f32 %v1712, 1.442695
    %v1714 = vpow.pop %v1713
    %v1715 = vadd.f32 %v1714, 1.0
    %v1716 = vrcp.pop %v1715
    %v1717 = vmul.f32 %v1715, %v1716
    %v1718 = vsub.f32 1.0, %v1717
    %v1719 = vmul.f32 %v1716, %v1718
    %v1720 = vadd.f32 %v1716, %v1719
    %vm1721 = vweird.f32 %v1715
    %vm1722 = vweird.f32 %v1716
    %vm1723 = vmor %vm1721, %vm1722
    %v1724 = vsel %vm1723, %v1716, %v1720
    %v1725 = vand.u32 2147483647, %v1715
    %vm1726 = vcmp.eq.f32.partialorder %v1725, 8.507059e+37
    %v1727 = vand.u32 %v1715, 2147483648
    %v1728 = vor.u32 1.1754944e-38, %v1727
    %v1729 = vsel %vm1726, %v1728, %v1724
    %v1730 = vmul.f32 1.0, %v1729
    %v1731 = vadd.f32 %v1689, %v1627
    %v1732 = vmul.f32 %v1710, %v1731
    %v1733 = vadd.f32 %v1558, %v1732
    %v1734 = vtanh.pop %v1733
    %v1735 = vsub.f32 1.0, %v1730
    %v1736 = vmul.f32 %v1735, %v1734
    %v1737 = vmul.f32 %v1730, %v1630
    %v1738 = vadd.f32 %v1736, %v1737
    %1739 = vmatpush.msra.mxu0 %v1622
    %1740 = vmatpush.msra.mxu0 %v1619
    %1741 = vmatpush.msra.mxu0 %v1616
    %1742 = vmatpush.msra.mxu0 %v1613
    %1743 = vmatpush.msra.mxu0 %v1610
    %1744 = vmatpush.msra.mxu0 %v1607
    %1745 = vmatpush.msra.mxu0 %v1604
    %1746 = vmatpush.msra.mxu0 %v1601
    %1747 = vmatpush.msra.mxu0 %v1598
    %1748 = vmatpush.msra.mxu0 %v1595
    %1749 = vmatpush.msra.mxu0 %v1592
    %1750 = vmatpush.msra.mxu0 %v1589
    %1751 = vmatpush.msra.mxu0 %v1586
    %1752 = vmatpush.msra.mxu0 %v1583
    %1753 = vmatpush.msra.mxu0 %v1580
    %1754 = vmatpush.msra.mxu0 %v1577
    %1755 = vmatmul.f32.gmra.mxu0 %v1738
    %v1756 = vpop.f32.mrf.mxu0
    %v1757 = vadd.f32 0.0, %v1756
    %1758 = vdwg.mxu0
    %1759 = vmatpush.msra.mxu0 %v1623
    %1760 = vmatpush.msra.mxu0 %v1620
    %1761 = vmatpush.msra.mxu0 %v1617
    %1762 = vmatpush.msra.mxu0 %v1614
    %1763 = vmatpush.msra.mxu0 %v1611
    %1764 = vmatpush.msra.mxu0 %v1608
    %1765 = vmatpush.msra.mxu0 %v1605
    %1766 = vmatpush.msra.mxu0 %v1602
    %1767 = vmatpush.msra.mxu0 %v1599
    %1768 = vmatpush.msra.mxu0 %v1596
    %1769 = vmatpush.msra.mxu0 %v1593
    %1770 = vmatpush.msra.mxu0 %v1590
    %1771 = vmatpush.msra.mxu0 %v1587
    %1772 = vmatpush.msra.mxu0 %v1584
    %1773 = vmatpush.msra.mxu0 %v1581
    %1774 = vmatpush.msra.mxu0 %v1578
    %1775 = vmatmul.f32.gmra.mxu0 %v1738
    %v1776 = vpop.f32.mrf.mxu0
    %v1777 = vadd.f32 0.0, %v1776
    %1778 = vdwg.mxu0
    %1779 = vmatpush.msra.mxu0 %v1624
    %1780 = vmatpush.msra.mxu0 %v1621
    %1781 = vmatpush.msra.mxu0 %v1618
    %1782 = vmatpush.msra.mxu0 %v1615
    %1783 = vmatpush.msra.mxu0 %v1612
    %1784 = vmatpush.msra.mxu0 %v1609
    %1785 = vmatpush.msra.mxu0 %v1606
    %1786 = vmatpush.msra.mxu0 %v1603
    %1787 = vmatpush.msra.mxu0 %v1600
    %1788 = vmatpush.msra.mxu0 %v1597
    %1789 = vmatpush.msra.mxu0 %v1594
    %1790 = vmatpush.msra.mxu0 %v1591
    %1791 = vmatpush.msra.mxu0 %v1588
    %1792 = vmatpush.msra.mxu0 %v1585
    %1793 = vmatpush.msra.mxu0 %v1582
    %1794 = vmatpush.msra.mxu0 %v1579
    %1795 = vmatmul.f32.gmra.mxu0 %v1738
    %v1796 = vpop.f32.mrf.mxu0
    %v1797 = vadd.f32 0.0, %v1796
    %1798 = vdwg.mxu0
    %v1799 = vadd.f32 %v1502, %v1757
    %v1800 = vxor.u32 %v1799, 2147483648
    %v1801 = vmul.f32 %v1800, 1.442695
    %v1802 = vpow.pop %v1801
    %v1803 = vadd.f32 %v1802, 1.0
    %v1804 = vrcp.pop %v1803
    %v1805 = vmul.f32 %v1803, %v1804
    %v1806 = vsub.f32 1.0, %v1805
    %v1807 = vmul.f32 %v1804, %v1806
    %v1808 = vadd.f32 %v1804, %v1807
    %vm1809 = vweird.f32 %v1803
    %vm1810 = vweird.f32 %v1804
    %vm1811 = vmor %vm1809, %vm1810
    %v1812 = vsel %vm1811, %v1804, %v1808
    %v1813 = vand.u32 2147483647, %v1803
    %vm1814 = vcmp.eq.f32.partialorder %v1813, 8.507059e+37
    %v1815 = vand.u32 %v1803, 2147483648
    %v1816 = vor.u32 1.1754944e-38, %v1815
    %v1817 = vsel %vm1814, %v1816, %v1812
    %v1818 = vmul.f32 1.0, %v1817
    %v1819 = vadd.f32 %v1531, %v1777
    %v1820 = vxor.u32 %v1819, 2147483648
    %v1821 = vmul.f32 %v1820, 1.442695
    %v1822 = vpow.pop %v1821
    %v1823 = vadd.f32 %v1822, 1.0
    %v1824 = vrcp.pop %v1823
    %v1825 = vmul.f32 %v1823, %v1824
    %v1826 = vsub.f32 1.0, %v1825
    %v1827 = vmul.f32 %v1824, %v1826
    %v1828 = vadd.f32 %v1824, %v1827
    %vm1829 = vweird.f32 %v1823
    %vm1830 = vweird.f32 %v1824
    %vm1831 = vmor %vm1829, %vm1830
    %v1832 = vsel %vm1831, %v1824, %v1828
    %v1833 = vand.u32 2147483647, %v1823
    %vm1834 = vcmp.eq.f32.partialorder %v1833, 8.507059e+37
    %v1835 = vand.u32 %v1823, 2147483648
    %v1836 = vor.u32 1.1754944e-38, %v1835
    %v1837 = vsel %vm1834, %v1836, %v1832
    %v1838 = vmul.f32 1.0, %v1837
    %v1839 = vadd.f32 %v1797, %v1627
    %v1840 = vmul.f32 %v1818, %v1839
    %v1841 = vadd.f32 %v1560, %v1840
    %v1842 = vtanh.pop %v1841
    %v1843 = vsub.f32 1.0, %v1838
    %v1844 = vmul.f32 %v1843, %v1842
    %v1845 = vmul.f32 %v1838, %v1738
    %v1846 = vadd.f32 %v1844, %v1845
    %1847 = vmatpush.msra.mxu0 %v1622
    %1848 = vmatpush.msra.mxu0 %v1619
    %1849 = vmatpush.msra.mxu0 %v1616
    %1850 = vmatpush.msra.mxu0 %v1613
    %1851 = vmatpush.msra.mxu0 %v1610
    %1852 = vmatpush.msra.mxu0 %v1607
    %1853 = vmatpush.msra.mxu0 %v1604
    %1854 = vmatpush.msra.mxu0 %v1601
    %1855 = vmatpush.msra.mxu0 %v1598
    %1856 = vmatpush.msra.mxu0 %v1595
    %1857 = vmatpush.msra.mxu0 %v1592
    %1858 = vmatpush.msra.mxu0 %v1589
    %1859 = vmatpush.msra.mxu0 %v1586
    %1860 = vmatpush.msra.mxu0 %v1583
    %1861 = vmatpush.msra.mxu0 %v1580
    %1862 = vmatpush.msra.mxu0 %v1577
    %1863 = vmatmul.f32.gmra.mxu0 %v1846
    %v1864 = vpop.f32.mrf.mxu0
    %v1865 = vadd.f32 0.0, %v1864
    %1866 = vdwg.mxu0
    %1867 = vmatpush.msra.mxu0 %v1623
    %1868 = vmatpush.msra.mxu0 %v1620
    %1869 = vmatpush.msra.mxu0 %v1617
    %1870 = vmatpush.msra.mxu0 %v1614
    %1871 = vmatpush.msra.mxu0 %v1611
    %1872 = vmatpush.msra.mxu0 %v1608
    %1873 = vmatpush.msra.mxu0 %v1605
    %1874 = vmatpush.msra.mxu0 %v1602
    %1875 = vmatpush.msra.mxu0 %v1599
    %1876 = vmatpush.msra.mxu0 %v1596
    %1877 = vmatpush.msra.mxu0 %v1593
    %1878 = vmatpush.msra.mxu0 %v1590
    %1879 = vmatpush.msra.mxu0 %v1587
    %1880 = vmatpush.msra.mxu0 %v1584
    %1881 = vmatpush.msra.mxu0 %v1581
    %1882 = vmatpush.msra.mxu0 %v1578
    %1883 = vmatmul.f32.gmra.mxu0 %v1846
    %v1884 = vpop.f32.mrf.mxu0
    %v1885 = vadd.f32 0.0, %v1884
    %1886 = vdwg.mxu0
    %1887 = vmatpush.msra.mxu0 %v1624
    %1888 = vmatpush.msra.mxu0 %v1621
    %1889 = vmatpush.msra.mxu0 %v1618
    %1890 = vmatpush.msra.mxu0 %v1615
    %1891 = vmatpush.msra.mxu0 %v1612
    %1892 = vmatpush.msra.mxu0 %v1609
    %1893 = vmatpush.msra.mxu0 %v1606
    %1894 = vmatpush.msra.mxu0 %v1603
    %1895 = vmatpush.msra.mxu0 %v1600
    %1896 = vmatpush.msra.mxu0 %v1597
    %1897 = vmatpush.msra.mxu0 %v1594
    %1898 = vmatpush.msra.mxu0 %v1591
    %1899 = vmatpush.msra.mxu0 %v1588
    %1900 = vmatpush.msra.mxu0 %v1585
    %1901 = vmatpush.msra.mxu0 %v1582
    %1902 = vmatpush.msra.mxu0 %v1579
    %1903 = vmatmul.f32.gmra.mxu0 %v1846
    %v1904 = vpop.f32.mrf.mxu0
    %v1905 = vadd.f32 0.0, %v1904
    %1906 = vdwg.mxu0
    %v1907 = vadd.f32 %v1505, %v1865
    %v1908 = vxor.u32 %v1907, 2147483648
    %v1909 = vmul.f32 %v1908, 1.442695
    %v1910 = vpow.pop %v1909
    %v1911 = vadd.f32 %v1910, 1.0
    %v1912 = vrcp.pop %v1911
    %v1913 = vmul.f32 %v1911, %v1912
    %v1914 = vsub.f32 1.0, %v1913
    %v1915 = vmul.f32 %v1912, %v1914
    %v1916 = vadd.f32 %v1912, %v1915
    %vm1917 = vweird.f32 %v1911
    %vm1918 = vweird.f32 %v1912
    %vm1919 = vmor %vm1917, %vm1918
    %v1920 = vsel %vm1919, %v1912, %v1916
    %v1921 = vand.u32 2147483647, %v1911
    %vm1922 = vcmp.eq.f32.partialorder %v1921, 8.507059e+37
    %v1923 = vand.u32 %v1911, 2147483648
    %v1924 = vor.u32 1.1754944e-38, %v1923
    %v1925 = vsel %vm1922, %v1924, %v1920
    %v1926 = vmul.f32 1.0, %v1925
    %v1927 = vadd.f32 %v1534, %v1885
    %v1928 = vxor.u32 %v1927, 2147483648
    %v1929 = vmul.f32 %v1928, 1.442695
    %v1930 = vpow.pop %v1929
    %v1931 = vadd.f32 %v1930, 1.0
    %v1932 = vrcp.pop %v1931
    %v1933 = vmul.f32 %v1931, %v1932
    %v1934 = vsub.f32 1.0, %v1933
    %v1935 = vmul.f32 %v1932, %v1934
    %v1936 = vadd.f32 %v1932, %v1935
    %vm1937 = vweird.f32 %v1931
    %vm1938 = vweird.f32 %v1932
    %vm1939 = vmor %vm1937, %vm1938
    %v1940 = vsel %vm1939, %v1932, %v1936
    %v1941 = vand.u32 2147483647, %v1931
    %vm1942 = vcmp.eq.f32.partialorder %v1941, 8.507059e+37
    %v1943 = vand.u32 %v1931, 2147483648
    %v1944 = vor.u32 1.1754944e-38, %v1943
    %v1945 = vsel %vm1942, %v1944, %v1940
    %v1946 = vmul.f32 1.0, %v1945
    %v1947 = vadd.f32 %v1905, %v1627
    %v1948 = vmul.f32 %v1926, %v1947
    %v1949 = vadd.f32 %v1563, %v1948
    %v1950 = vtanh.pop %v1949
    %v1951 = vsub.f32 1.0, %v1946
    %v1952 = vmul.f32 %v1951, %v1950
    %v1953 = vmul.f32 %v1946, %v1846
    %v1954 = vadd.f32 %v1952, %v1953
    %1955 = vmatpush.msra.mxu0 %v1622
    %1956 = vmatpush.msra.mxu0 %v1619
    %1957 = vmatpush.msra.mxu0 %v1616
    %1958 = vmatpush.msra.mxu0 %v1613
    %1959 = vmatpush.msra.mxu0 %v1610
    %1960 = vmatpush.msra.mxu0 %v1607
    %1961 = vmatpush.msra.mxu0 %v1604
    %1962 = vmatpush.msra.mxu0 %v1601
    %1963 = vmatpush.msra.mxu0 %v1598
    %1964 = vmatpush.msra.mxu0 %v1595
    %1965 = vmatpush.msra.mxu0 %v1592
    %1966 = vmatpush.msra.mxu0 %v1589
    %1967 = vmatpush.msra.mxu0 %v1586
    %1968 = vmatpush.msra.mxu0 %v1583
    %1969 = vmatpush.msra.mxu0 %v1580
    %1970 = vmatpush.msra.mxu0 %v1577
    %1971 = vmatmul.f32.gmra.mxu0 %v1954
    %v1972 = vpop.f32.mrf.mxu0
    %v1973 = vadd.f32 0.0, %v1972
    %1974 = vdwg.mxu0
    %1975 = vmatpush.msra.mxu0 %v1623
    %1976 = vmatpush.msra.mxu0 %v1620
    %1977 = vmatpush.msra.mxu0 %v1617
    %1978 = vmatpush.msra.mxu0 %v1614
    %1979 = vmatpush.msra.mxu0 %v1611
    %1980 = vmatpush.msra.mxu0 %v1608
    %1981 = vmatpush.msra.mxu0 %v1605
    %1982 = vmatpush.msra.mxu0 %v1602
    %1983 = vmatpush.msra.mxu0 %v1599
    %1984 = vmatpush.msra.mxu0 %v1596
    %1985 = vmatpush.msra.mxu0 %v1593
    %1986 = vmatpush.msra.mxu0 %v1590
    %1987 = vmatpush.msra.mxu0 %v1587
    %1988 = vmatpush.msra.mxu0 %v1584
    %1989 = vmatpush.msra.mxu0 %v1581
    %1990 = vmatpush.msra.mxu0 %v1578
    %1991 = vmatmul.f32.gmra.mxu0 %v1954
    %v1992 = vpop.f32.mrf.mxu0
    %v1993 = vadd.f32 0.0, %v1992
    %1994 = vdwg.mxu0
    %1995 = vmatpush.msra.mxu0 %v1624
    %1996 = vmatpush.msra.mxu0 %v1621
    %1997 = vmatpush.msra.mxu0 %v1618
    %1998 = vmatpush.msra.mxu0 %v1615
    %1999 = vmatpush.msra.mxu0 %v1612
    %2000 = vmatpush.msra.mxu0 %v1609
    %2001 = vmatpush.msra.mxu0 %v1606
    %2002 = vmatpush.msra.mxu0 %v1603
    %2003 = vmatpush.msra.mxu0 %v1600
    %2004 = vmatpush.msra.mxu0 %v1597
    %2005 = vmatpush.msra.mxu0 %v1594
    %2006 = vmatpush.msra.mxu0 %v1591
    %2007 = vmatpush.msra.mxu0 %v1588
    %2008 = vmatpush.msra.mxu0 %v1585
    %2009 = vmatpush.msra.mxu0 %v1582
    %2010 = vmatpush.msra.mxu0 %v1579
    %2011 = vmatmul.f32.gmra.mxu0 %v1954
    %v2012 = vpop.f32.mrf.mxu0
    %v2013 = vadd.f32 0.0, %v2012
    %2014 = vdwg.mxu0
    %v2015 = vadd.f32 %v1507, %v1973
    %v2016 = vxor.u32 %v2015, 2147483648
    %v2017 = vmul.f32 %v2016, 1.442695
    %v2018 = vpow.pop %v2017
    %v2019 = vadd.f32 %v2018, 1.0
    %v2020 = vrcp.pop %v2019
    %v2021 = vmul.f32 %v2019, %v2020
    %v2022 = vsub.f32 1.0, %v2021
    %v2023 = vmul.f32 %v2020, %v2022
    %v2024 = vadd.f32 %v2020, %v2023
    %vm2025 = vweird.f32 %v2019
    %vm2026 = vweird.f32 %v2020
    %vm2027 = vmor %vm2025, %vm2026
    %v2028 = vsel %vm2027, %v2020, %v2024
    %v2029 = vand.u32 2147483647, %v2019
    %vm2030 = vcmp.eq.f32.partialorder %v2029, 8.507059e+37
    %v2031 = vand.u32 %v2019, 2147483648
    %v2032 = vor.u32 1.1754944e-38, %v2031
    %v2033 = vsel %vm2030, %v2032, %v2028
    %v2034 = vmul.f32 1.0, %v2033
    %v2035 = vadd.f32 %v1536, %v1993
    %v2036 = vxor.u32 %v2035, 2147483648
    %v2037 = vmul.f32 %v2036, 1.442695
    %v2038 = vpow.pop %v2037
    %v2039 = vadd.f32 %v2038, 1.0
    %v2040 = vrcp.pop %v2039
    %v2041 = vmul.f32 %v2039, %v2040
    %v2042 = vsub.f32 1.0, %v2041
    %v2043 = vmul.f32 %v2040, %v2042
    %v2044 = vadd.f32 %v2040, %v2043
    %vm2045 = vweird.f32 %v2039
    %vm2046 = vweird.f32 %v2040
    %vm2047 = vmor %vm2045, %vm2046
    %v2048 = vsel %vm2047, %v2040, %v2044
    %v2049 = vand.u32 2147483647, %v2039
    %vm2050 = vcmp.eq.f32.partialorder %v2049, 8.507059e+37
    %v2051 = vand.u32 %v2039, 2147483648
    %v2052 = vor.u32 1.1754944e-38, %v2051
    %v2053 = vsel %vm2050, %v2052, %v2048
    %v2054 = vmul.f32 1.0, %v2053
    %v2055 = vadd.f32 %v2013, %v1627
    %v2056 = vmul.f32 %v2034, %v2055
    %v2057 = vadd.f32 %v1565, %v2056
    %v2058 = vtanh.pop %v2057
    %v2059 = vsub.f32 1.0, %v2054
    %v2060 = vmul.f32 %v2059, %v2058
    %v2061 = vmul.f32 %v2054, %v1954
    %v2062 = vadd.f32 %v2060, %v2061
    %2063 = vmatpush.msra.mxu0 %v1622
    %2064 = vmatpush.msra.mxu0 %v1619
    %2065 = vmatpush.msra.mxu0 %v1616
    %2066 = vmatpush.msra.mxu0 %v1613
    %2067 = vmatpush.msra.mxu0 %v1610
    %2068 = vmatpush.msra.mxu0 %v1607
    %2069 = vmatpush.msra.mxu0 %v1604
    %2070 = vmatpush.msra.mxu0 %v1601
    %2071 = vmatpush.msra.mxu0 %v1598
    %2072 = vmatpush.msra.mxu0 %v1595
    %2073 = vmatpush.msra.mxu0 %v1592
    %2074 = vmatpush.msra.mxu0 %v1589
    %2075 = vmatpush.msra.mxu0 %v1586
    %2076 = vmatpush.msra.mxu0 %v1583
    %2077 = vmatpush.msra.mxu0 %v1580
    %2078 = vmatpush.msra.mxu0 %v1577
    %2079 = vmatmul.f32.gmra.mxu0 %v2062
    %v2080 = vpop.f32.mrf.mxu0
    %v2081 = vadd.f32 0.0, %v2080
    %2082 = vdwg.mxu0
    %2083 = vmatpush.msra.mxu0 %v1623
    %2084 = vmatpush.msra.mxu0 %v1620
    %2085 = vmatpush.msra.mxu0 %v1617
    %2086 = vmatpush.msra.mxu0 %v1614
    %2087 = vmatpush.msra.mxu0 %v1611
    %2088 = vmatpush.msra.mxu0 %v1608
    %2089 = vmatpush.msra.mxu0 %v1605
    %2090 = vmatpush.msra.mxu0 %v1602
    %2091 = vmatpush.msra.mxu0 %v1599
    %2092 = vmatpush.msra.mxu0 %v1596
    %2093 = vmatpush.msra.mxu0 %v1593
    %2094 = vmatpush.msra.mxu0 %v1590
    %2095 = vmatpush.msra.mxu0 %v1587
    %2096 = vmatpush.msra.mxu0 %v1584
    %2097 = vmatpush.msra.mxu0 %v1581
    %2098 = vmatpush.msra.mxu0 %v1578
    %2099 = vmatmul.f32.gmra.mxu0 %v2062
    %v2100 = vpop.f32.mrf.mxu0
    %v2101 = vadd.f32 0.0, %v2100
    %2102 = vdwg.mxu0
    %2103 = vmatpush.msra.mxu0 %v1624
    %2104 = vmatpush.msra.mxu0 %v1621
    %2105 = vmatpush.msra.mxu0 %v1618
    %2106 = vmatpush.msra.mxu0 %v1615
    %2107 = vmatpush.msra.mxu0 %v1612
    %2108 = vmatpush.msra.mxu0 %v1609
    %2109 = vmatpush.msra.mxu0 %v1606
    %2110 = vmatpush.msra.mxu0 %v1603
    %2111 = vmatpush.msra.mxu0 %v1600
    %2112 = vmatpush.msra.mxu0 %v1597
    %2113 = vmatpush.msra.mxu0 %v1594
    %2114 = vmatpush.msra.mxu0 %v1591
    %2115 = vmatpush.msra.mxu0 %v1588
    %2116 = vmatpush.msra.mxu0 %v1585
    %2117 = vmatpush.msra.mxu0 %v1582
    %2118 = vmatpush.msra.mxu0 %v1579
    %2119 = vmatmul.f32.gmra.mxu0 %v2062
    %v2120 = vpop.f32.mrf.mxu0
    %v2121 = vadd.f32 0.0, %v2120
    %2122 = vdwg.mxu0
    %v2123 = vadd.f32 %v1510, %v2081
    %v2124 = vxor.u32 %v2123, 2147483648
    %v2125 = vmul.f32 %v2124, 1.442695
    %v2126 = vpow.pop %v2125
    %v2127 = vadd.f32 %v2126, 1.0
    %v2128 = vrcp.pop %v2127
    %v2129 = vmul.f32 %v2127, %v2128
    %v2130 = vsub.f32 1.0, %v2129
    %v2131 = vmul.f32 %v2128, %v2130
    %v2132 = vadd.f32 %v2128, %v2131
    %vm2133 = vweird.f32 %v2127
    %vm2134 = vweird.f32 %v2128
    %vm2135 = vmor %vm2133, %vm2134
    %v2136 = vsel %vm2135, %v2128, %v2132
    %v2137 = vand.u32 2147483647, %v2127
    %vm2138 = vcmp.eq.f32.partialorder %v2137, 8.507059e+37
    %v2139 = vand.u32 %v2127, 2147483648
    %v2140 = vor.u32 1.1754944e-38, %v2139
    %v2141 = vsel %vm2138, %v2140, %v2136
    %v2142 = vmul.f32 1.0, %v2141
    %v2143 = vadd.f32 %v1539, %v2101
    %v2144 = vxor.u32 %v2143, 2147483648
    %v2145 = vmul.f32 %v2144, 1.442695
    %v2146 = vpow.pop %v2145
    %v2147 = vadd.f32 %v2146, 1.0
    %v2148 = vrcp.pop %v2147
    %v2149 = vmul.f32 %v2147, %v2148
    %v2150 = vsub.f32 1.0, %v2149
    %v2151 = vmul.f32 %v2148, %v2150
    %v2152 = vadd.f32 %v2148, %v2151
    %vm2153 = vweird.f32 %v2147
    %vm2154 = vweird.f32 %v2148
    %vm2155 = vmor %vm2153, %vm2154
    %v2156 = vsel %vm2155, %v2148, %v2152
    %v2157 = vand.u32 2147483647, %v2147
    %vm2158 = vcmp.eq.f32.partialorder %v2157, 8.507059e+37
    %v2159 = vand.u32 %v2147, 2147483648
    %v2160 = vor.u32 1.1754944e-38, %v2159
    %v2161 = vsel %vm2158, %v2160, %v2156
    %v2162 = vmul.f32 1.0, %v2161
    %v2163 = vadd.f32 %v2121, %v1627
    %v2164 = vmul.f32 %v2142, %v2163
    %v2165 = vadd.f32 %v1568, %v2164
    %v2166 = vtanh.pop %v2165
    %v2167 = vsub.f32 1.0, %v2162
    %v2168 = vmul.f32 %v2167, %v2166
    %v2169 = vmul.f32 %v2162, %v2062
    %v2170 = vadd.f32 %v2168, %v2169
    %2171 = vmatpush.msra.mxu0 %v1622
    %2172 = vmatpush.msra.mxu0 %v1619
    %2173 = vmatpush.msra.mxu0 %v1616
    %2174 = vmatpush.msra.mxu0 %v1613
    %2175 = vmatpush.msra.mxu0 %v1610
    %2176 = vmatpush.msra.mxu0 %v1607
    %2177 = vmatpush.msra.mxu0 %v1604
    %2178 = vmatpush.msra.mxu0 %v1601
    %2179 = vmatpush.msra.mxu0 %v1598
    %2180 = vmatpush.msra.mxu0 %v1595
    %2181 = vmatpush.msra.mxu0 %v1592
    %2182 = vmatpush.msra.mxu0 %v1589
    %2183 = vmatpush.msra.mxu0 %v1586
    %2184 = vmatpush.msra.mxu0 %v1583
    %2185 = vmatpush.msra.mxu0 %v1580
    %2186 = vmatpush.msra.mxu0 %v1577
    %2187 = vmatmul.f32.gmra.mxu0 %v2170
    %v2188 = vpop.f32.mrf.mxu0
    %v2189 = vadd.f32 0.0, %v2188
    %2190 = vdwg.mxu0
    %2191 = vmatpush.msra.mxu0 %v1623
    %2192 = vmatpush.msra.mxu0 %v1620
    %2193 = vmatpush.msra.mxu0 %v1617
    %2194 = vmatpush.msra.mxu0 %v1614
    %2195 = vmatpush.msra.mxu0 %v1611
    %2196 = vmatpush.msra.mxu0 %v1608
    %2197 = vmatpush.msra.mxu0 %v1605
    %2198 = vmatpush.msra.mxu0 %v1602
    %2199 = vmatpush.msra.mxu0 %v1599
    %2200 = vmatpush.msra.mxu0 %v1596
    %2201 = vmatpush.msra.mxu0 %v1593
    %2202 = vmatpush.msra.mxu0 %v1590
    %2203 = vmatpush.msra.mxu0 %v1587
    %2204 = vmatpush.msra.mxu0 %v1584
    %2205 = vmatpush.msra.mxu0 %v1581
    %2206 = vmatpush.msra.mxu0 %v1578
    %2207 = vmatmul.f32.gmra.mxu0 %v2170
    %v2208 = vpop.f32.mrf.mxu0
    %v2209 = vadd.f32 0.0, %v2208
    %2210 = vdwg.mxu0
    %2211 = vmatpush.msra.mxu0 %v1624
    %2212 = vmatpush.msra.mxu0 %v1621
    %2213 = vmatpush.msra.mxu0 %v1618
    %2214 = vmatpush.msra.mxu0 %v1615
    %2215 = vmatpush.msra.mxu0 %v1612
    %2216 = vmatpush.msra.mxu0 %v1609
    %2217 = vmatpush.msra.mxu0 %v1606
    %2218 = vmatpush.msra.mxu0 %v1603
    %2219 = vmatpush.msra.mxu0 %v1600
    %2220 = vmatpush.msra.mxu0 %v1597
    %2221 = vmatpush.msra.mxu0 %v1594
    %2222 = vmatpush.msra.mxu0 %v1591
    %2223 = vmatpush.msra.mxu0 %v1588
    %2224 = vmatpush.msra.mxu0 %v1585
    %2225 = vmatpush.msra.mxu0 %v1582
    %2226 = vmatpush.msra.mxu0 %v1579
    %2227 = vmatmul.f32.gmra.mxu0 %v2170
    %v2228 = vpop.f32.mrf.mxu0
    %v2229 = vadd.f32 0.0, %v2228
    %2230 = vdwg.mxu0
    %v2231 = vadd.f32 %v1512, %v2189
    %v2232 = vxor.u32 %v2231, 2147483648
    %v2233 = vmul.f32 %v2232, 1.442695
    %v2234 = vpow.pop %v2233
    %v2235 = vadd.f32 %v2234, 1.0
    %v2236 = vrcp.pop %v2235
    %v2237 = vmul.f32 %v2235, %v2236
    %v2238 = vsub.f32 1.0, %v2237
    %v2239 = vmul.f32 %v2236, %v2238
    %v2240 = vadd.f32 %v2236, %v2239
    %vm2241 = vweird.f32 %v2235
    %vm2242 = vweird.f32 %v2236
    %vm2243 = vmor %vm2241, %vm2242
    %v2244 = vsel %vm2243, %v2236, %v2240
    %v2245 = vand.u32 2147483647, %v2235
    %vm2246 = vcmp.eq.f32.partialorder %v2245, 8.507059e+37
    %v2247 = vand.u32 %v2235, 2147483648
    %v2248 = vor.u32 1.1754944e-38, %v2247
    %v2249 = vsel %vm2246, %v2248, %v2244
    %v2250 = vmul.f32 1.0, %v2249
    %v2251 = vadd.f32 %v1541, %v2209
    %v2252 = vxor.u32 %v2251, 2147483648
    %v2253 = vmul.f32 %v2252, 1.442695
    %v2254 = vpow.pop %v2253
    %v2255 = vadd.f32 %v2254, 1.0
    %v2256 = vrcp.pop %v2255
    %v2257 = vmul.f32 %v2255, %v2256
    %v2258 = vsub.f32 1.0, %v2257
    %v2259 = vmul.f32 %v2256, %v2258
    %v2260 = vadd.f32 %v2256, %v2259
    %vm2261 = vweird.f32 %v2255
    %vm2262 = vweird.f32 %v2256
    %vm2263 = vmor %vm2261, %vm2262
    %v2264 = vsel %vm2263, %v2256, %v2260
    %v2265 = vand.u32 2147483647, %v2255
    %vm2266 = vcmp.eq.f32.partialorder %v2265, 8.507059e+37
    %v2267 = vand.u32 %v2255, 2147483648
    %v2268 = vor.u32 1.1754944e-38, %v2267
    %v2269 = vsel %vm2266, %v2268, %v2264
    %v2270 = vmul.f32 1.0, %v2269
    %v2271 = vadd.f32 %v2229, %v1627
    %v2272 = vmul.f32 %v2250, %v2271
    %v2273 = vadd.f32 %v1570, %v2272
    %v2274 = vtanh.pop %v2273
    %v2275 = vsub.f32 1.0, %v2270
    %v2276 = vmul.f32 %v2275, %v2274
    %v2277 = vmul.f32 %v2270, %v2170
    %v2278 = vadd.f32 %v2276, %v2277
    %2279 = vmatpush.msra.mxu0 %v1622
    %2280 = vmatpush.msra.mxu0 %v1619
    %2281 = vmatpush.msra.mxu0 %v1616
    %2282 = vmatpush.msra.mxu0 %v1613
    %2283 = vmatpush.msra.mxu0 %v1610
    %2284 = vmatpush.msra.mxu0 %v1607
    %2285 = vmatpush.msra.mxu0 %v1604
    %2286 = vmatpush.msra.mxu0 %v1601
    %2287 = vmatpush.msra.mxu0 %v1598
    %2288 = vmatpush.msra.mxu0 %v1595
    %2289 = vmatpush.msra.mxu0 %v1592
    %2290 = vmatpush.msra.mxu0 %v1589
    %2291 = vmatpush.msra.mxu0 %v1586
    %2292 = vmatpush.msra.mxu0 %v1583
    %2293 = vmatpush.msra.mxu0 %v1580
    %2294 = vmatpush.msra.mxu0 %v1577
    %2295 = vmatmul.f32.gmra.mxu0 %v2278
    %v2296 = vpop.f32.mrf.mxu0
    %v2297 = vadd.f32 0.0, %v2296
    %2298 = vdwg.mxu0
    %2299 = vmatpush.msra.mxu0 %v1623
    %2300 = vmatpush.msra.mxu0 %v1620
    %2301 = vmatpush.msra.mxu0 %v1617
    %2302 = vmatpush.msra.mxu0 %v1614
    %2303 = vmatpush.msra.mxu0 %v1611
    %2304 = vmatpush.msra.mxu0 %v1608
    %2305 = vmatpush.msra.mxu0 %v1605
    %2306 = vmatpush.msra.mxu0 %v1602
    %2307 = vmatpush.msra.mxu0 %v1599
    %2308 = vmatpush.msra.mxu0 %v1596
    %2309 = vmatpush.msra.mxu0 %v1593
    %2310 = vmatpush.msra.mxu0 %v1590
    %2311 = vmatpush.msra.mxu0 %v1587
    %2312 = vmatpush.msra.mxu0 %v1584
    %2313 = vmatpush.msra.mxu0 %v1581
    %2314 = vmatpush.msra.mxu0 %v1578
    %2315 = vmatmul.f32.gmra.mxu0 %v2278
    %v2316 = vpop.f32.mrf.mxu0
    %v2317 = vadd.f32 0.0, %v2316
    %2318 = vdwg.mxu0
    %2319 = vmatpush.msra.mxu0 %v1624
    %2320 = vmatpush.msra.mxu0 %v1621
    %2321 = vmatpush.msra.mxu0 %v1618
    %2322 = vmatpush.msra.mxu0 %v1615
    %2323 = vmatpush.msra.mxu0 %v1612
    %2324 = vmatpush.msra.mxu0 %v1609
    %2325 = vmatpush.msra.mxu0 %v1606
    %2326 = vmatpush.msra.mxu0 %v1603
    %2327 = vmatpush.msra.mxu0 %v1600
    %2328 = vmatpush.msra.mxu0 %v1597
    %2329 = vmatpush.msra.mxu0 %v1594
    %2330 = vmatpush.msra.mxu0 %v1591
    %2331 = vmatpush.msra.mxu0 %v1588
    %2332 = vmatpush.msra.mxu0 %v1585
    %2333 = vmatpush.msra.mxu0 %v1582
    %2334 = vmatpush.msra.mxu0 %v1579
    %2335 = vmatmul.f32.gmra.mxu0 %v2278
    %v2336 = vpop.f32.mrf.mxu0
    %v2337 = vadd.f32 0.0, %v2336
    %2338 = vdwg.mxu0
    %v2339 = vadd.f32 %v1515, %v2297
    %v2340 = vxor.u32 %v2339, 2147483648
    %v2341 = vmul.f32 %v2340, 1.442695
    %v2342 = vpow.pop %v2341
    %v2343 = vadd.f32 %v2342, 1.0
    %v2344 = vrcp.pop %v2343
    %v2345 = vmul.f32 %v2343, %v2344
    %v2346 = vsub.f32 1.0, %v2345
    %v2347 = vmul.f32 %v2344, %v2346
    %v2348 = vadd.f32 %v2344, %v2347
    %vm2349 = vweird.f32 %v2343
    %vm2350 = vweird.f32 %v2344
    %vm2351 = vmor %vm2349, %vm2350
    %v2352 = vsel %vm2351, %v2344, %v2348
    %v2353 = vand.u32 2147483647, %v2343
    %vm2354 = vcmp.eq.f32.partialorder %v2353, 8.507059e+37
    %v2355 = vand.u32 %v2343, 2147483648
    %v2356 = vor.u32 1.1754944e-38, %v2355
    %v2357 = vsel %vm2354, %v2356, %v2352
    %v2358 = vmul.f32 1.0, %v2357
    %v2359 = vadd.f32 %v1544, %v2317
    %v2360 = vxor.u32 %v2359, 2147483648
    %v2361 = vmul.f32 %v2360, 1.442695
    %v2362 = vpow.pop %v2361
    %v2363 = vadd.f32 %v2362, 1.0
    %v2364 = vrcp.pop %v2363
    %v2365 = vmul.f32 %v2363, %v2364
    %v2366 = vsub.f32 1.0, %v2365
    %v2367 = vmul.f32 %v2364, %v2366
    %v2368 = vadd.f32 %v2364, %v2367
    %vm2369 = vweird.f32 %v2363
    %vm2370 = vweird.f32 %v2364
    %vm2371 = vmor %vm2369, %vm2370
    %v2372 = vsel %vm2371, %v2364, %v2368
    %v2373 = vand.u32 2147483647, %v2363
    %vm2374 = vcmp.eq.f32.partialorder %v2373, 8.507059e+37
    %v2375 = vand.u32 %v2363, 2147483648
    %v2376 = vor.u32 1.1754944e-38, %v2375
    %v2377 = vsel %vm2374, %v2376, %v2372
    %v2378 = vmul.f32 1.0, %v2377
    %v2379 = vadd.f32 %v2337, %v1627
    %v2380 = vmul.f32 %v2358, %v2379
    %v2381 = vadd.f32 %v1573, %v2380
    %v2382 = vtanh.pop %v2381
    %v2383 = vsub.f32 1.0, %v2378
    %v2384 = vmul.f32 %v2383, %v2382
    %v2385 = vmul.f32 %v2378, %v2278
    %v2386 = vadd.f32 %v2384, %v2385
    %2387 = vmatpush.msra.mxu0 %v1622
    %2388 = vmatpush.msra.mxu0 %v1619
    %2389 = vmatpush.msra.mxu0 %v1616
    %2390 = vmatpush.msra.mxu0 %v1613
    %2391 = vmatpush.msra.mxu0 %v1610
    %2392 = vmatpush.msra.mxu0 %v1607
    %2393 = vmatpush.msra.mxu0 %v1604
    %2394 = vmatpush.msra.mxu0 %v1601
    %2395 = vmatpush.msra.mxu0 %v1598
    %2396 = vmatpush.msra.mxu0 %v1595
    %2397 = vmatpush.msra.mxu0 %v1592
    %2398 = vmatpush.msra.mxu0 %v1589
    %2399 = vmatpush.msra.mxu0 %v1586
    %2400 = vmatpush.msra.mxu0 %v1583
    %2401 = vmatpush.msra.mxu0 %v1580
    %2402 = vmatpush.msra.mxu0 %v1577
    %2403 = vmatmul.f32.gmra.mxu0 %v2386
    %v2404 = vpop.f32.mrf.mxu0
    %v2405 = vadd.f32 0.0, %v2404
    %2406 = vdwg.mxu0
    %2407 = vmatpush.msra.mxu0 %v1623
    %2408 = vmatpush.msra.mxu0 %v1620
    %2409 = vmatpush.msra.mxu0 %v1617
    %2410 = vmatpush.msra.mxu0 %v1614
    %2411 = vmatpush.msra.mxu0 %v1611
    %2412 = vmatpush.msra.mxu0 %v1608
    %2413 = vmatpush.msra.mxu0 %v1605
    %2414 = vmatpush.msra.mxu0 %v1602
    %2415 = vmatpush.msra.mxu0 %v1599
    %2416 = vmatpush.msra.mxu0 %v1596
    %2417 = vmatpush.msra.mxu0 %v1593
    %2418 = vmatpush.msra.mxu0 %v1590
    %2419 = vmatpush.msra.mxu0 %v1587
    %2420 = vmatpush.msra.mxu0 %v1584
    %2421 = vmatpush.msra.mxu0 %v1581
    %2422 = vmatpush.msra.mxu0 %v1578
    %2423 = vmatmul.f32.gmra.mxu0 %v2386
    %v2424 = vpop.f32.mrf.mxu0
    %v2425 = vadd.f32 0.0, %v2424
    %2426 = vdwg.mxu0
    %2427 = vmatpush.msra.mxu0 %v1624
    %2428 = vmatpush.msra.mxu0 %v1621
    %2429 = vmatpush.msra.mxu0 %v1618
    %2430 = vmatpush.msra.mxu0 %v1615
    %2431 = vmatpush.msra.mxu0 %v1612
    %2432 = vmatpush.msra.mxu0 %v1609
    %2433 = vmatpush.msra.mxu0 %v1606
    %2434 = vmatpush.msra.mxu0 %v1603
    %2435 = vmatpush.msra.mxu0 %v1600
    %2436 = vmatpush.msra.mxu0 %v1597
    %2437 = vmatpush.msra.mxu0 %v1594
    %2438 = vmatpush.msra.mxu0 %v1591
    %2439 = vmatpush.msra.mxu0 %v1588
    %2440 = vmatpush.msra.mxu0 %v1585
    %2441 = vmatpush.msra.mxu0 %v1582
    %2442 = vmatpush.msra.mxu0 %v1579
    %2443 = vmatmul.f32.gmra.mxu0 %v2386
    %v2444 = vpop.f32.mrf.mxu0
    %v2445 = vadd.f32 0.0, %v2444
    %2446 = vdwg.mxu0
    %v2447 = vadd.f32 %v1517, %v2405
    %v2448 = vxor.u32 %v2447, 2147483648
    %v2449 = vmul.f32 %v2448, 1.442695
    %v2450 = vpow.pop %v2449
    %v2451 = vadd.f32 %v2450, 1.0
    %v2452 = vrcp.pop %v2451
    %v2453 = vmul.f32 %v2451, %v2452
    %v2454 = vsub.f32 1.0, %v2453
    %v2455 = vmul.f32 %v2452, %v2454
    %v2456 = vadd.f32 %v2452, %v2455
    %vm2457 = vweird.f32 %v2451
    %vm2458 = vweird.f32 %v2452
    %vm2459 = vmor %vm2457, %vm2458
    %v2460 = vsel %vm2459, %v2452, %v2456
    %v2461 = vand.u32 2147483647, %v2451
    %vm2462 = vcmp.eq.f32.partialorder %v2461, 8.507059e+37
    %v2463 = vand.u32 %v2451, 2147483648
    %v2464 = vor.u32 1.1754944e-38, %v2463
    %v2465 = vsel %vm2462, %v2464, %v2460
    %v2466 = vmul.f32 1.0, %v2465
    %v2467 = vadd.f32 %v1546, %v2425
    %v2468 = vxor.u32 %v2467, 2147483648
    %v2469 = vmul.f32 %v2468, 1.442695
    %v2470 = vpow.pop %v2469
    %v2471 = vadd.f32 %v2470, 1.0
    %v2472 = vrcp.pop %v2471
    %v2473 = vmul.f32 %v2471, %v2472
    %v2474 = vsub.f32 1.0, %v2473
    %v2475 = vmul.f32 %v2472, %v2474
    %v2476 = vadd.f32 %v2472, %v2475
    %vm2477 = vweird.f32 %v2471
    %vm2478 = vweird.f32 %v2472
    %vm2479 = vmor %vm2477, %vm2478
    %v2480 = vsel %vm2479, %v2472, %v2476
    %v2481 = vand.u32 2147483647, %v2471
    %vm2482 = vcmp.eq.f32.partialorder %v2481, 8.507059e+37
    %v2483 = vand.u32 %v2471, 2147483648
    %v2484 = vor.u32 1.1754944e-38, %v2483
    %v2485 = vsel %vm2482, %v2484, %v2480
    %v2486 = vmul.f32 1.0, %v2485
    %v2487 = vadd.f32 %v2445, %v1627
    %v2488 = vmul.f32 %v2466, %v2487
    %v2489 = vadd.f32 %v1575, %v2488
    %v2490 = vtanh.pop %v2489
    %v2491 = vsub.f32 1.0, %v2486
    %v2492 = vmul.f32 %v2491, %v2490
    %v2493 = vmul.f32 %v2486, %v2386
    %v2494 = vadd.f32 %v2492, %v2493
    %2495 = vst [vmem:[%s1629] sm:$0xff] %v2494
    // Predicated region
    $region74: #{rem_forward.1} parent=1 // pred_check
      %p2496 = pneg %p107
    $region75: #{rem_forward.1} parent=1 // pred_check_branch
      %2498 = sbr.rel (%p2496) target = $region77
    $region76: #{rem_forward.1} parent=1 // pred_region
      %2499 = vadd.xlane.f32.xlu0 %v2494
      %v2500 = vpop.xlane.xlu0 %2499
      %v2501 = vmul.f32 %v2500, 0.03125
      %v2502 = vmul.f32 %v2494, %v2494
      %2503 = vadd.xlane.f32.xlu0 %v2502
      %v2504 = vpop.xlane.xlu0 %2503
      %v2505 = vmul.f32 %v2504, 0.03125
      %v2506 = vmul.f32 %v2501, %v2501
      %v2507 = vsub.f32 %v2505, %v2506
      %v2508 = vmax.f32 %v2507, 0.0
      %v2509 = vsub.f32 %v2494, %v2501
      %v2510 = vadd.f32 %v2508, 1e-05
      %v2511 = vrsqrt.pop %v2510
      %v2512 = vmul.f32 %v2511, %v2510
      %v2513 = vmul.f32 %v2512, %v2511
      %v2514 = vmul.f32 0.5, %v2513
      %v2515 = vsub.f32 1.5, %v2514
      %v2516 = vmul.f32 %v2511, %v2515
      %vm2517 = vweird.f32 %v2510
      %vm2518 = vweird.f32 %v2511
      %vm2519 = vmor %vm2517, %vm2518
      %v2520 = vsel %vm2519, %v2511, %v2516
      %v2521 = vmul.f32 %v2509, %v2520
      %v2522 = vld [vmem:[%s9] sm:$0x1]
      %v2524 = vperm.slane %v2522, 0
      %v2526 = vmul.f32 %v2521, %v2524
      %v2527 = vld [vmem:[%s10] sm:$0x1]
      %v2529 = vperm.slane %v2527, 0
      %v2531 = vadd.f32 %v2526, %v2529
      %v2532 = vpack.c.bf16 %v2531, %v2531
      %v2533 = vld [vmem:[%s11] sm:$0xf]
      %v2534 = vld [vmem:[%s11 + $0x4] sm:$0xf]
      %v2535 = vld [vmem:[%s11 + $0x8] sm:$0xf]
      %v2536 = vld [vmem:[%s11 + $0xc] sm:$0xf]
      %v2537 = vld [vmem:[%s11 + $0x10] sm:$0xf]
      %v2538 = vld [vmem:[%s11 + $0x14] sm:$0xf]
      %v2539 = vld [vmem:[%s11 + $0x18] sm:$0xf]
      %v2540 = vld [vmem:[%s11 + $0x1c] sm:$0xf]
      %v2541 = vld [vmem:[%s11 + $0x20] sm:$0xf]
      %v2542 = vld [vmem:[%s11 + $0x24] sm:$0xf]
      %v2543 = vld [vmem:[%s11 + $0x28] sm:$0xf]
      %v2544 = vld [vmem:[%s11 + $0x2c] sm:$0xf]
      %v2545 = vld [vmem:[%s11 + $0x30] sm:$0xf]
      %v2546 = vld [vmem:[%s11 + $0x34] sm:$0xf]
      %v2547 = vld [vmem:[%s11 + $0x38] sm:$0xf]
      %v2548 = vld [vmem:[%s11 + $0x3c] sm:$0xf]
      %v2549 = vld [vmem:[%s12] sm:$0x1]
      %v2551 = vperm.slane %v2549, 0
      %v2569 = vunpack.c.l.b16 %v2533
      %v2570 = vunpack.c.l.b16 %v2534
      %v2571 = vunpack.c.l.b16 %v2535
      %v2572 = vunpack.c.l.b16 %v2536
      %v2573 = vunpack.c.l.b16 %v2537
      %v2574 = vunpack.c.l.b16 %v2538
      %v2575 = vunpack.c.l.b16 %v2539
      %v2576 = vunpack.c.l.b16 %v2540
      %v2577 = vunpack.c.l.b16 %v2541
      %v2578 = vunpack.c.l.b16 %v2542
      %v2579 = vunpack.c.l.b16 %v2543
      %v2580 = vunpack.c.l.b16 %v2544
      %v2581 = vunpack.c.l.b16 %v2545
      %v2582 = vunpack.c.l.b16 %v2546
      %v2583 = vunpack.c.l.b16 %v2547
      %v2584 = vunpack.c.l.b16 %v2548
      %v2585 = vpack.c.b16 %v2570, %v2569
      %v2586 = vpack.c.b16 %v2572, %v2571
      %v2587 = vpack.c.b16 %v2574, %v2573
      %v2588 = vpack.c.b16 %v2576, %v2575
      %v2589 = vpack.c.b16 %v2578, %v2577
      %v2590 = vpack.c.b16 %v2580, %v2579
      %v2591 = vpack.c.b16 %v2582, %v2581
      %v2592 = vpack.c.b16 %v2584, %v2583
      %2601 = vmatpush.bf16.msra.mxu0 %v2592
      %2602 = vmatpush.bf16.msra.mxu0 %v2591
      %2603 = vmatpush.bf16.msra.mxu0 %v2590
      %2604 = vmatpush.bf16.msra.mxu0 %v2589
      %2605 = vmatpush.bf16.msra.mxu0 %v2588
      %2606 = vmatpush.bf16.msra.mxu0 %v2587
      %2607 = vmatpush.bf16.msra.mxu0 %v2586
      %2608 = vmatpush.bf16.msra.mxu0 %v2585
      %2609 = vmatmul.bf16.gmra.mxu0 %v2532
      %v2610 = vpop.f32.mrf.mxu0
      %v2611 = vadd.f32 %v2551, %v2610
      %v2612 = vpop.f32.mrf.mxu0
      %2613 = vdwg.mxu0
      %2614 = vst [vmem:[%s13] sm:$0xff] %v2611
    $region77: #{rem_forward.1} parent=1 // pred_fallthru
      _
    // Predicated region
    $region78: #{rem_forward.1} parent=1 // pred_check
      _
    $region79: #{rem_forward.1} parent=1 // pred_check_branch
      %2616 = sbr.rel (0) target = $region81
    $region80: #{rem_forward.1} parent=1 // pred_region
      _
    $region81: #{rem_forward.1} parent=1 // pred_fallthru
      _
    // Predicated region
    $region82: #{rem_forward.1} parent=1 // pred_check
      _
    $region83: #{rem_forward.1} parent=1 // pred_check_branch
      %2618 = sbr.rel (0) target = $region85
    $region84: #{rem_forward.1} parent=1 // pred_region
      _
    $region85: #{rem_forward.1} parent=1 // pred_fallthru
      _
    %2619 = vsyncpa [#allocation4], 1
    %2620 = vsyncpa [#allocation6], 1
    %2621 = vsyncpa [#allocation9], 1

</llo_original>
